<compile_context>
chip_gen: v5e
topology: v5e:2x2
jax: 0.10.0
libtpu: 0.0.40
codegen_flags: <defaults>
</compile_context>

<pallas_src>
import numpy as np
import jax
import jax.numpy as jnp
from jax.experimental import pallas as pl
from jax.experimental.pallas import tpu as pltpu

F32 = jnp.float32

# ----------------------------- model sizes -----------------------------------
SRC_VOCAB = 20
TGT_VOCAB = 32          # decoder.output_dim (must be <= 128 - 3*HID for packing)
EMB = 16
HID = 32                # encoder hidden == decoder hidden
ATTN = 32
S_LEN = 8               # src length
T_LEN = 6               # tgt length
BATCH = 2

LANES = 128
GATES = 3 * HID         # 96 fused GRU gate columns [r|z|n]; lanes 96:128 carry
                        # the fused attention / output-projection columns.

# -------- row offsets of each weight block inside the packed (192,128) slab --
_R_EWIH = 0                       # (EMB, 128)  enc W_ih, lanes 0:96
_R_EWHH = _R_EWIH + EMB           # (HID, 128)  enc W_hh, lanes 0:96
_R_UA = _R_EWHH + HID             # (HID, 128)  attn Ua,  lanes 0:32
_R_WDH = _R_UA + HID              # (HID, 128)  [dec W_hh | attn Wa]
_R_WDE = _R_WDH + HID             # (EMB, 128)  [dec W_ih(emb)  | W_out(emb)]
_R_WDC = _R_WDE + EMB             # (HID, 128)  [dec W_ih(ctx)  | W_out(ctx)]
_R_WOH = _R_WDC + HID             # (HID, 128)  W_out(h), lanes 96:128
_W_ROWS = _R_WOH + HID            # 192


# ============================ Pallas kernel ===================================
def _seq2seq_kernel(enc_emb_ref, dec_emb_ref, mask_ref, w_ref, b_ref,
                    out_ref, attn_ref):
    """Fused encoder GRU + teacher-forced Bahdanau-attention decoder.

    enc_emb:(S,B,E), dec_emb:(T-1,B,E) pre-gathered embeddings.
    mask:(B,S) additive mask (0 / -1e9).
    w:(192,128) packed weight slab, b:(8,128) packed bias slab (see wrapper).
    out:(T,B,V)  attn:(T-1,B,S).
    """
    S, B, E = enc_emb_ref.shape
    T, _, V = out_ref.shape
    H, A, G = HID, ATTN, GATES

    def fused_gru(gi, gh, h):
        # gi/gh: (B, >=96); gate columns ordered [r | z | n] at lanes 0:96.
        r = jax.nn.sigmoid(gi[:, :H] + gh[:, :H])
        z = jax.nn.sigmoid(gi[:, H:2 * H] + gh[:, H:2 * H])
        n = jnp.tanh(gi[:, 2 * H:G] + r * gh[:, 2 * H:G])
        return (1.0 - z) * n + z * h

    # ---- hoisted weight / bias loads (static slices of the packed slabs) ----
    ewih = w_ref[_R_EWIH:_R_EWIH + E, :]          # (E,128)
    ewhh = w_ref[_R_EWHH:_R_EWHH + H, :]          # (H,128)
    ua = w_ref[_R_UA:_R_UA + H, :A]               # (H,A)
    wdh = w_ref[_R_WDH:_R_WDH + H, :]             # (H,128) [dwhh | wa]
    wde = w_ref[_R_WDE:_R_WDE + E, :]             # (E,128) [dwih_e | woe]
    wdc = w_ref[_R_WDC:_R_WDC + H, :]             # (H,128) [dwih_c | woc]
    woh = w_ref[_R_WOH:_R_WOH + H, :]             # (H,128) woh at lanes 96:128

    ebih_b = jnp.broadcast_to(b_ref[0:1, :], (B, LANES))
    ebhh_b = jnp.broadcast_to(b_ref[1:2, :], (B, LANES))
    dbih_b = jnp.broadcast_to(b_ref[2:3, :], (B, LANES))
    dbhh_b = jnp.broadcast_to(b_ref[3:4, :], (B, LANES))
    va_b = b_ref[4:5, :A].reshape(1, 1, A)        # (1,1,A)
    bout_b = jnp.broadcast_to(b_ref[5:6, :], (B, LANES))   # bout at lanes 96:128
    mask_add = mask_ref[...]                      # (B,S) additive mask

    # ----------------------------- encoder ------------------------------------
    h = jnp.zeros((B, H), F32)
    enc_list = []
    for t in range(S):                       # fully unrolled (static trip count)
        x = enc_emb_ref[t]                                            # (B,E)
        gi = jnp.dot(x, ewih, preferred_element_type=F32) + ebih_b    # (B,128)
        gh = jnp.dot(h, ewhh, preferred_element_type=F32) + ebhh_b    # (B,128)
        h = fused_gru(gi, gh, h)
        enc_list.append(h)

    enc = jnp.stack(enc_list, axis=1)                                 # (B,S,H)
    # Batched encoder-side attention projection (one matmul for all steps).
    ue = jnp.dot(enc.reshape(B * S, H), ua,
                 preferred_element_type=F32).reshape(B, S, A)         # (B,S,A)

    # ----------------------------- decoder ------------------------------------
    logits_list, attn_list = [], []
    for t in range(T - 1):                   # fully unrolled decode loop
        emb = dec_emb_ref[t]                                          # (B,E)

        # h @ [dwhh | wa]: GRU hidden gates (lanes 0:96) + attention query
        # projection (lanes 96:128) in one 128-lane matmul.
        hW = jnp.dot(h, wdh, preferred_element_type=F32) + dbhh_b     # (B,128)
        wh = hW[:, G:]                                                # (B,A)

        # ---- Bahdanau attention, (B,S,.) layout, scores via VPU + reduce ----
        e = jnp.tanh(ue + wh[:, None, :])                             # (B,S,A)
        scores = jnp.sum(e * va_b, axis=-1) + mask_add                # (B,S)
        m = jnp.max(scores, axis=-1, keepdims=True)
        ex = jnp.exp(scores - m)
        attn = ex / jnp.sum(ex, axis=-1, keepdims=True)               # (B,S)
        context = jnp.sum(attn[:, :, None] * enc, axis=1)             # (B,H)

        # ---- fused GRU-input / output-projection matmuls (128 lanes each) ----
        eW = (jnp.dot(emb, wde, preferred_element_type=F32)
              + jnp.dot(context, wdc, preferred_element_type=F32)
              + dbih_b)                                               # (B,128)
        h = fused_gru(eW, hW, h)
        # lanes 96:128 of eW already hold emb@woe + ctx@woc; add h@woh + bout.
        logits = (eW + jnp.dot(h, woh, preferred_element_type=F32)
                  + bout_b)[:, G:]                                    # (B,V)

        logits_list.append(logits)
        attn_list.append(attn)

    # ---- single stores (outputs[0] stays zero, like the torch module) ----
    out_ref[...] = jnp.concatenate(
        [jnp.zeros((1, B, V), F32), jnp.stack(logits_list, axis=0)], axis=0)
    attn_ref[...] = jnp.stack(attn_list, axis=0)                      # (T-1,B,S)


_VMEM = pl.BlockSpec(memory_space=pltpu.MemorySpace.VMEM)


# ============================ wrapper (glue) ==================================
def _fuse_w(w):   # (3, In, H) -> (In, 3H), column blocks ordered [r | z | n]
    return jnp.transpose(w, (1, 0, 2)).reshape(w.shape[1], 3 * w.shape[2])


def _fuse_b(b):   # (3, 1, H) -> (1, 3H)
    return jnp.transpose(b, (1, 0, 2)).reshape(1, 3 * b.shape[2])


def _pad128(w, offset=0):
    """Place a (rows, cols) block into a zero (rows, 128) slab at lane `offset`."""
    return jnp.zeros((w.shape[0], LANES), F32).at[:, offset:offset + w.shape[1]].set(w)


def bahdanau_seq2seq_forward(params, src, tgt, src_mask=None,
                             teacher_forcing_ratio=1.0,
                             return_attentions=False):
    """Mirrors BahdanauSeq2Seq.forward (teacher_forcing_ratio == 1.0 path)."""
    # TODO(synk): stochastic teacher forcing (random.random()) and greedy argmax
    #             feedback would need an in-kernel argmax feedback path; only the
    #             always-teacher-force path is implemented.
    assert teacher_forcing_ratio == 1.0

    T, B = tgt.shape
    S = src.shape[0]

    # Additive attention mask in (B,S) layout (0 where visible, -1e9 masked).
    if src_mask is None:
        mask_add = jnp.zeros((B, S), F32)
    else:
        mask_add = jnp.where(jnp.asarray(src_mask, F32) > 0.0, 0.0, -1e9).astype(F32)

    # ---- embeddings gathered outside the kernel (dense VMEM inputs) ----
    enc_emb_seq = params['enc_emb'][src]                   # (S, B, E)
    dec_emb_seq = params['dec_emb'][tgt[:-1]]              # (T-1, B, E)

    # ---- one-time weight layout prep: fused gates + 128-lane packed slabs ----
    enc_wih_f = _fuse_w(params['enc_wih'])                 # (E, 96)
    enc_whh_f = _fuse_w(params['enc_whh'])                 # (H, 96)
    dwih_f = _fuse_w(params['dec_wih'])                    # (E+H, 96)
    dwih_e, dwih_c = dwih_f[:EMB], dwih_f[EMB:]
    dwhh_f = _fuse_w(params['dec_whh'])                    # (H, 96)
    wout = params['dec_wout']                              # (2H+E, V)
    wout_h, wout_c, wout_e = wout[:HID], wout[HID:2 * HID], wout[2 * HID:]

    w_slab = jnp.concatenate([
        _pad128(enc_wih_f),                                # rows   0: 16
        _pad128(enc_whh_f),                                # rows  16: 48
        _pad128(params['att_ua']),                         # rows  48: 80
        jnp.concatenate([dwhh_f, params['att_wa']], axis=1),   # rows  80:112
        jnp.concatenate([dwih_e, wout_e], axis=1),         # rows 112:128
        jnp.concatenate([dwih_c, wout_c], axis=1),         # rows 128:160
        _pad128(wout_h, offset=GATES),                     # rows 160:192
    ], axis=0).astype(F32)                                 # (192, 128)

    b_slab = jnp.concatenate([
        _pad128(_fuse_b(params['enc_bih'])),               # row 0
        _pad128(_fuse_b(params['enc_bhh'])),               # row 1
        _pad128(_fuse_b(params['dec_bih'])),               # row 2
        _pad128(_fuse_b(params['dec_bhh'])),               # row 3
        _pad128(params['att_va'].reshape(1, ATTN)),        # row 4 (va)
        _pad128(params['dec_bout'], offset=GATES),         # row 5 (bout @ 96:128)
        jnp.zeros((2, LANES), F32),                        # rows 6-7 padding
    ], axis=0).astype(F32)                                 # (8, 128)

    outputs, attn_tbs = pl.pallas_call(
        _seq2seq_kernel,
        out_shape=(jax.ShapeDtypeStruct((T, B, TGT_VOCAB), F32),
                   jax.ShapeDtypeStruct((T - 1, B, S), F32)),
        in_specs=[_VMEM] * 5,
        out_specs=(_VMEM, _VMEM),
    )(enc_emb_seq.astype(F32), dec_emb_seq.astype(F32), mask_add, w_slab, b_slab)

    attentions = jnp.transpose(attn_tbs, (1, 2, 0))        # (B, S, T-1)
    if return_attentions:
        return outputs, attentions
    return outputs


# ============================ plain-JAX reference =============================
def _gru_step_ref(p_wih, p_whh, p_bih, p_bhh, x, h):
    def g(i):
        return (x @ p_wih[i] + p_bih[i], h @ p_whh[i] + p_bhh[i])
    (ir, hr), (iz, hz), (inn, hn) = g(0), g(1), g(2)
    r = jax.nn.sigmoid(ir + hr)
    z = jax.nn.sigmoid(iz + hz)
    n = jnp.tanh(inn + r * hn)
    return (1.0 - z) * n + z * h


def reference_forward(params, src, tgt, src_mask=None):
    S, B = src.shape
    T = tgt.shape[0]
    emb = params['enc_emb'][src]
    h = jnp.zeros((B, HID), F32)
    enc_list = []
    for t in range(S):
        h = _gru_step_ref(params['enc_wih'], params['enc_whh'],
                          params['enc_bih'], params['enc_bhh'], emb[t], h)
        enc_list.append(h)
    enc = jnp.stack(enc_list, axis=0)                      # (S,B,H)

    mask_sb = jnp.ones((S, B), F32) if src_mask is None else jnp.asarray(src_mask, F32).T
    outputs = [jnp.zeros((B, TGT_VOCAB), F32)]
    attns = []
    hd = h
    ue = jnp.einsum('sbh,ha->sba', enc, params['att_ua'])
    for t in range(T - 1):
        e_in = params['dec_emb'][tgt[t]]
        wh = hd @ params['att_wa']
        en = jnp.tanh(wh[None] + ue)
        sc = jnp.einsum('sba,ao->sbo', en, params['att_va'])[..., 0]
        sc = jnp.where(mask_sb > 0, sc, -1e9)
        at = jax.nn.softmax(sc, axis=0)                    # (S,B)
        ctx = jnp.sum(at[:, :, None] * enc, axis=0)
        x = jnp.concatenate([e_in, ctx], axis=-1)
        hd = _gru_step_ref(params['dec_wih'], params['dec_whh'],
                           params['dec_bih'], params['dec_bhh'], x, hd)
        feat = jnp.concatenate([hd, ctx, e_in], axis=-1)
        outputs.append(feat @ params['dec_wout'] + params['dec_bout'][0])
        attns.append(at.T)                                 # (B,S)
    return jnp.stack(outputs, axis=0), jnp.stack(attns, axis=-1)


# ============================ params / main ===================================
def init_params(key):
    ks = jax.random.split(key, 16)
    n = lambda k, shp, s=0.1: (s * jax.random.normal(k, shp)).astype(F32)
    return {
        'enc_emb': n(ks[0], (SRC_VOCAB, EMB)),
        'dec_emb': n(ks[1], (TGT_VOCAB, EMB)),
        'enc_wih': n(ks[2], (3, EMB, HID)),
        'enc_whh': n(ks[3], (3, HID, HID)),
        'enc_bih': n(ks[4], (3, 1, HID)),
        'enc_bhh': n(ks[5], (3, 1, HID)),
        'att_wa':  n(ks[6], (HID, ATTN)),
        'att_ua':  n(ks[7], (HID, ATTN)),
        'att_va':  n(ks[8], (ATTN, 1)),
        'dec_wih': n(ks[9], (3, EMB + HID, HID)),
        'dec_whh': n(ks[10], (3, HID, HID)),
        'dec_bih': n(ks[11], (3, 1, HID)),
        'dec_bhh': n(ks[12], (3, 1, HID)),
        'dec_wout': n(ks[13], (2 * HID + EMB, TGT_VOCAB)),
        'dec_bout': n(ks[14], (1, TGT_VOCAB)),
    }


if __name__ == "__main__":
    key = jax.random.PRNGKey(0)
    pkey, skey, tkey = jax.random.split(key, 3)
    params = init_params(pkey)

    src = jax.random.randint(skey, (S_LEN, BATCH), 0, SRC_VOCAB, dtype=jnp.int32)
    tgt = jax.random.randint(tkey, (T_LEN, BATCH), 0, TGT_VOCAB, dtype=jnp.int32)
    # src_mask: (B, S); mask out the last two source positions of batch item 1.
    src_mask = np.ones((BATCH, S_LEN), np.float32)
    src_mask[1, -2:] = 0.0
    src_mask = jnp.asarray(src_mask)

    fwd = jax.jit(lambda p, s, t, m: bahdanau_seq2seq_forward(
        p, s, t, src_mask=m, teacher_forcing_ratio=1.0, return_attentions=True))
    out, attn = fwd(params, src, tgt, src_mask)
    out = jax.block_until_ready(out)
    attn = jax.block_until_ready(attn)

    ref_out, ref_attn = reference_forward(params, src, tgt, src_mask=src_mask)
    # Exact softmax divide is used in-kernel now; remaining differences are only
    # f32 summation-order effects from the fused/split matmuls.
    np.testing.assert_allclose(np.asarray(out), np.asarray(ref_out),
                               rtol=1e-4, atol=1e-4)
    np.testing.assert_allclose(np.asarray(attn), np.asarray(ref_attn),
                               rtol=1e-4, atol=1e-4)
    assert out.shape == (T_LEN, BATCH, TGT_VOCAB)
    assert attn.shape == (BATCH, S_LEN, T_LEN - 1)
    print("KERNEL_OK")
</pallas_src>

<mosaic_0001>
module attributes {stable_mosaic.version = 11 : i64} {
  func.func @_seq2seq_kernel(%arg0: memref<8x2x16xf32, #tpu.memory_space<vmem>>, %arg1: memref<5x2x16xf32, #tpu.memory_space<vmem>>, %arg2: memref<2x8xf32, #tpu.memory_space<vmem>>, %arg3: memref<192x128xf32, #tpu.memory_space<vmem>>, %arg4: memref<8x128xf32, #tpu.memory_space<vmem>>, %arg5: memref<6x2x32xf32, #tpu.memory_space<vmem>>, %arg6: memref<5x2x8xf32, #tpu.memory_space<vmem>>) attributes {dimension_semantics = [], scalar_prefetch = 0 : i64, scratch_operands = 0 : i64, tpu.core_type = #tpu.core_type<tc>} {
    %c0 = arith.constant 0 : index
    %c0_0 = arith.constant 0 : index
    %0 = vector.load %arg3[%c0, %c0_0] : memref<192x128xf32, #tpu.memory_space<vmem>>, vector<16x128xf32>
    %c16 = arith.constant 16 : index
    %c0_1 = arith.constant 0 : index
    %1 = vector.load %arg3[%c16, %c0_1] : memref<192x128xf32, #tpu.memory_space<vmem>>, vector<32x128xf32>
    %c48 = arith.constant 48 : index
    %c0_2 = arith.constant 0 : index
    %2 = vector.load %arg3[%c48, %c0_2] : memref<192x128xf32, #tpu.memory_space<vmem>>, vector<32x32xf32>
    %c80 = arith.constant 80 : index
    %c0_3 = arith.constant 0 : index
    %3 = vector.load %arg3[%c80, %c0_3] : memref<192x128xf32, #tpu.memory_space<vmem>>, vector<32x128xf32>
    %c112 = arith.constant 112 : index
    %c0_4 = arith.constant 0 : index
    %4 = vector.load %arg3[%c112, %c0_4] : memref<192x128xf32, #tpu.memory_space<vmem>>, vector<16x128xf32>
    %c128 = arith.constant 128 : index
    %c0_5 = arith.constant 0 : index
    %5 = vector.load %arg3[%c128, %c0_5] : memref<192x128xf32, #tpu.memory_space<vmem>>, vector<32x128xf32>
    %c160 = arith.constant 160 : index
    %c0_6 = arith.constant 0 : index
    %6 = vector.load %arg3[%c160, %c0_6] : memref<192x128xf32, #tpu.memory_space<vmem>>, vector<32x128xf32>
    %c0_7 = arith.constant 0 : index
    %c0_8 = arith.constant 0 : index
    %7 = vector.load %arg4[%c0_7, %c0_8] : memref<8x128xf32, #tpu.memory_space<vmem>>, vector<1x128xf32>
    %8 = vector.shape_cast %7 : vector<1x128xf32> to vector<1x128xf32>
    %9 = vector.broadcast %8 : vector<1x128xf32> to vector<2x128xf32>
    %c1 = arith.constant 1 : index
    %c0_9 = arith.constant 0 : index
    %10 = vector.load %arg4[%c1, %c0_9] : memref<8x128xf32, #tpu.memory_space<vmem>>, vector<1x128xf32>
    %11 = vector.shape_cast %10 : vector<1x128xf32> to vector<1x128xf32>
    %12 = vector.broadcast %11 : vector<1x128xf32> to vector<2x128xf32>
    %c2 = arith.constant 2 : index
    %c0_10 = arith.constant 0 : index
    %13 = vector.load %arg4[%c2, %c0_10] : memref<8x128xf32, #tpu.memory_space<vmem>>, vector<1x128xf32>
    %14 = vector.shape_cast %13 : vector<1x128xf32> to vector<1x128xf32>
    %15 = vector.broadcast %14 : vector<1x128xf32> to vector<2x128xf32>
    %c3 = arith.constant 3 : index
    %c0_11 = arith.constant 0 : index
    %16 = vector.load %arg4[%c3, %c0_11] : memref<8x128xf32, #tpu.memory_space<vmem>>, vector<1x128xf32>
    %17 = vector.shape_cast %16 : vector<1x128xf32> to vector<1x128xf32>
    %18 = vector.broadcast %17 : vector<1x128xf32> to vector<2x128xf32>
    %c4 = arith.constant 4 : index
    %c0_12 = arith.constant 0 : index
    %19 = vector.load %arg4[%c4, %c0_12] : memref<8x128xf32, #tpu.memory_space<vmem>>, vector<1x32xf32>
    %20 = vector.shape_cast %19 : vector<1x32xf32> to vector<1x1x32xf32>
    %c5 = arith.constant 5 : index
    %c0_13 = arith.constant 0 : index
    %21 = vector.load %arg4[%c5, %c0_13] : memref<8x128xf32, #tpu.memory_space<vmem>>, vector<1x128xf32>
    %22 = vector.shape_cast %21 : vector<1x128xf32> to vector<1x128xf32>
    %23 = vector.broadcast %22 : vector<1x128xf32> to vector<2x128xf32>
    %c0_14 = arith.constant 0 : index
    %c0_15 = arith.constant 0 : index
    %24 = vector.load %arg2[%c0_14, %c0_15] : memref<2x8xf32, #tpu.memory_space<vmem>>, vector<2x8xf32>
    %cst = arith.constant 0.000000e+00 : f32
    %25 = vector.broadcast %cst : f32 to vector<2x32xf32>
    %c0_16 = arith.constant 0 : index
    %c0_17 = arith.constant 0 : index
    %c0_18 = arith.constant 0 : index
    %26 = vector.load %arg0[%c0_16, %c0_17, %c0_18] : memref<8x2x16xf32, #tpu.memory_space<vmem>>, vector<1x2x16xf32>
    %27 = vector.shape_cast %26 : vector<1x2x16xf32> to vector<2x16xf32>
    %cst_19 = arith.constant dense<0.000000e+00> : vector<2x128xf32>
    %28 = tpu.matmul %27, %0, %cst_19 {dimension_numbers = #tpu.dot_dimension_numbers<[1], [0], [0], [1], [0, 0, 1, 1], [], []>} : vector<2x16xf32>, vector<16x128xf32>, vector<2x128xf32> -> vector<2x128xf32>
    %29 = arith.addf %28, %9 : vector<2x128xf32>
    %cst_20 = arith.constant dense<0.000000e+00> : vector<2x128xf32>
    %30 = tpu.matmul %25, %1, %cst_20 {dimension_numbers = #tpu.dot_dimension_numbers<[1], [0], [0], [1], [0, 0, 1, 1], [], []>} : vector<2x32xf32>, vector<32x128xf32>, vector<2x128xf32> -> vector<2x128xf32>
    %31 = arith.addf %30, %12 : vector<2x128xf32>
    %32 = vector.extract_strided_slice %29 {offsets = [0, 0], sizes = [2, 32], strides = [1, 1]} : vector<2x128xf32> to vector<2x32xf32>
    %33 = vector.extract_strided_slice %31 {offsets = [0, 0], sizes = [2, 32], strides = [1, 1]} : vector<2x128xf32> to vector<2x32xf32>
    %34 = arith.addf %32, %33 : vector<2x32xf32>
    %35 = arith.negf %34 : vector<2x32xf32>
    %36 = math.exp %35 : vector<2x32xf32>
    %cst_21 = arith.constant 1.000000e+00 : f32
    %37 = vector.broadcast %cst_21 : f32 to vector<2x32xf32>
    %38 = arith.addf %37, %36 : vector<2x32xf32>
    %39 = arith.divf %37, %38 : vector<2x32xf32>
    %40 = vector.extract_strided_slice %29 {offsets = [0, 32], sizes = [2, 32], strides = [1, 1]} : vector<2x128xf32> to vector<2x32xf32>
    %41 = vector.extract_strided_slice %31 {offsets = [0, 32], sizes = [2, 32], strides = [1, 1]} : vector<2x128xf32> to vector<2x32xf32>
    %42 = arith.addf %40, %41 : vector<2x32xf32>
    %43 = arith.negf %42 : vector<2x32xf32>
    %44 = math.exp %43 : vector<2x32xf32>
    %cst_22 = arith.constant 1.000000e+00 : f32
    %45 = vector.broadcast %cst_22 : f32 to vector<2x32xf32>
    %46 = arith.addf %45, %44 : vector<2x32xf32>
    %47 = arith.divf %45, %46 : vector<2x32xf32>
    %48 = vector.extract_strided_slice %29 {offsets = [0, 64], sizes = [2, 32], strides = [1, 1]} : vector<2x128xf32> to vector<2x32xf32>
    %49 = vector.extract_strided_slice %31 {offsets = [0, 64], sizes = [2, 32], strides = [1, 1]} : vector<2x128xf32> to vector<2x32xf32>
    %50 = arith.mulf %39, %49 : vector<2x32xf32>
    %51 = arith.addf %48, %50 : vector<2x32xf32>
    %52 = math.tanh %51 : vector<2x32xf32>
    %cst_23 = arith.constant 1.000000e+00 : f32
    %53 = vector.broadcast %cst_23 : f32 to vector<2x32xf32>
    %54 = arith.subf %53, %47 : vector<2x32xf32>
    %55 = arith.mulf %54, %52 : vector<2x32xf32>
    %56 = arith.mulf %47, %25 : vector<2x32xf32>
    %57 = arith.addf %55, %56 : vector<2x32xf32>
    %c1_24 = arith.constant 1 : index
    %c0_25 = arith.constant 0 : index
    %c0_26 = arith.constant 0 : index
    %58 = vector.load %arg0[%c1_24, %c0_25, %c0_26] : memref<8x2x16xf32, #tpu.memory_space<vmem>>, vector<1x2x16xf32>
    %59 = vector.shape_cast %58 : vector<1x2x16xf32> to vector<2x16xf32>
    %cst_27 = arith.constant dense<0.000000e+00> : vector<2x128xf32>
    %60 = tpu.matmul %59, %0, %cst_27 {dimension_numbers = #tpu.dot_dimension_numbers<[1], [0], [0], [1], [0, 0, 1, 1], [], []>} : vector<2x16xf32>, vector<16x128xf32>, vector<2x128xf32> -> vector<2x128xf32>
    %61 = arith.addf %60, %9 : vector<2x128xf32>
    %cst_28 = arith.constant dense<0.000000e+00> : vector<2x128xf32>
    %62 = tpu.matmul %57, %1, %cst_28 {dimension_numbers = #tpu.dot_dimension_numbers<[1], [0], [0], [1], [0, 0, 1, 1], [], []>} : vector<2x32xf32>, vector<32x128xf32>, vector<2x128xf32> -> vector<2x128xf32>
    %63 = arith.addf %62, %12 : vector<2x128xf32>
    %64 = vector.extract_strided_slice %61 {offsets = [0, 0], sizes = [2, 32], strides = [1, 1]} : vector<2x128xf32> to vector<2x32xf32>
    %65 = vector.extract_strided_slice %63 {offsets = [0, 0], sizes = [2, 32], strides = [1, 1]} : vector<2x128xf32> to vector<2x32xf32>
    %66 = arith.addf %64, %65 : vector<2x32xf32>
    %67 = arith.negf %66 : vector<2x32xf32>
    %68 = math.exp %67 : vector<2x32xf32>
    %cst_29 = arith.constant 1.000000e+00 : f32
    %69 = vector.broadcast %cst_29 : f32 to vector<2x32xf32>
    %70 = arith.addf %69, %68 : vector<2x32xf32>
    %71 = arith.divf %69, %70 : vector<2x32xf32>
    %72 = vector.extract_strided_slice %61 {offsets = [0, 32], sizes = [2, 32], strides = [1, 1]} : vector<2x128xf32> to vector<2x32xf32>
    %73 = vector.extract_strided_slice %63 {offsets = [0, 32], sizes = [2, 32], strides = [1, 1]} : vector<2x128xf32> to vector<2x32xf32>
    %74 = arith.addf %72, %73 : vector<2x32xf32>
    %75 = arith.negf %74 : vector<2x32xf32>
    %76 = math.exp %75 : vector<2x32xf32>
    %cst_30 = arith.constant 1.000000e+00 : f32
    %77 = vector.broadcast %cst_30 : f32 to vector<2x32xf32>
    %78 = arith.addf %77, %76 : vector<2x32xf32>
    %79 = arith.divf %77, %78 : vector<2x32xf32>
    %80 = vector.extract_strided_slice %61 {offsets = [0, 64], sizes = [2, 32], strides = [1, 1]} : vector<2x128xf32> to vector<2x32xf32>
    %81 = vector.extract_strided_slice %63 {offsets = [0, 64], sizes = [2, 32], strides = [1, 1]} : vector<2x128xf32> to vector<2x32xf32>
    %82 = arith.mulf %71, %81 : vector<2x32xf32>
    %83 = arith.addf %80, %82 : vector<2x32xf32>
    %84 = math.tanh %83 : vector<2x32xf32>
    %cst_31 = arith.constant 1.000000e+00 : f32
    %85 = vector.broadcast %cst_31 : f32 to vector<2x32xf32>
    %86 = arith.subf %85, %79 : vector<2x32xf32>
    %87 = arith.mulf %86, %84 : vector<2x32xf32>
    %88 = arith.mulf %79, %57 : vector<2x32xf32>
    %89 = arith.addf %87, %88 : vector<2x32xf32>
    %c2_32 = arith.constant 2 : index
    %c0_33 = arith.constant 0 : index
    %c0_34 = arith.constant 0 : index
    %90 = vector.load %arg0[%c2_32, %c0_33, %c0_34] : memref<8x2x16xf32, #tpu.memory_space<vmem>>, vector<1x2x16xf32>
    %91 = vector.shape_cast %90 : vector<1x2x16xf32> to vector<2x16xf32>
    %cst_35 = arith.constant dense<0.000000e+00> : vector<2x128xf32>
    %92 = tpu.matmul %91, %0, %cst_35 {dimension_numbers = #tpu.dot_dimension_numbers<[1], [0], [0], [1], [0, 0, 1, 1], [], []>} : vector<2x16xf32>, vector<16x128xf32>, vector<2x128xf32> -> vector<2x128xf32>
    %93 = arith.addf %92, %9 : vector<2x128xf32>
    %cst_36 = arith.constant dense<0.000000e+00> : vector<2x128xf32>
    %94 = tpu.matmul %89, %1, %cst_36 {dimension_numbers = #tpu.dot_dimension_numbers<[1], [0], [0], [1], [0, 0, 1, 1], [], []>} : vector<2x32xf32>, vector<32x128xf32>, vector<2x128xf32> -> vector<2x128xf32>
    %95 = arith.addf %94, %12 : vector<2x128xf32>
    %96 = vector.extract_strided_slice %93 {offsets = [0, 0], sizes = [2, 32], strides = [1, 1]} : vector<2x128xf32> to vector<2x32xf32>
    %97 = vector.extract_strided_slice %95 {offsets = [0, 0], sizes = [2, 32], strides = [1, 1]} : vector<2x128xf32> to vector<2x32xf32>
    %98 = arith.addf %96, %97 : vector<2x32xf32>
    %99 = arith.negf %98 : vector<2x32xf32>
    %100 = math.exp %99 : vector<2x32xf32>
    %cst_37 = arith.constant 1.000000e+00 : f32
    %101 = vector.broadcast %cst_37 : f32 to vector<2x32xf32>
    %102 = arith.addf %101, %100 : vector<2x32xf32>
    %103 = arith.divf %101, %102 : vector<2x32xf32>
    %104 = vector.extract_strided_slice %93 {offsets = [0, 32], sizes = [2, 32], strides = [1, 1]} : vector<2x128xf32> to vector<2x32xf32>
    %105 = vector.extract_strided_slice %95 {offsets = [0, 32], sizes = [2, 32], strides = [1, 1]} : vector<2x128xf32> to vector<2x32xf32>
    %106 = arith.addf %104, %105 : vector<2x32xf32>
    %107 = arith.negf %106 : vector<2x32xf32>
    %108 = math.exp %107 : vector<2x32xf32>
    %cst_38 = arith.constant 1.000000e+00 : f32
    %109 = vector.broadcast %cst_38 : f32 to vector<2x32xf32>
    %110 = arith.addf %109, %108 : vector<2x32xf32>
    %111 = arith.divf %109, %110 : vector<2x32xf32>
    %112 = vector.extract_strided_slice %93 {offsets = [0, 64], sizes = [2, 32], strides = [1, 1]} : vector<2x128xf32> to vector<2x32xf32>
    %113 = vector.extract_strided_slice %95 {offsets = [0, 64], sizes = [2, 32], strides = [1, 1]} : vector<2x128xf32> to vector<2x32xf32>
    %114 = arith.mulf %103, %113 : vector<2x32xf32>
    %115 = arith.addf %112, %114 : vector<2x32xf32>
    %116 = math.tanh %115 : vector<2x32xf32>
    %cst_39 = arith.constant 1.000000e+00 : f32
    %117 = vector.broadcast %cst_39 : f32 to vector<2x32xf32>
    %118 = arith.subf %117, %111 : vector<2x32xf32>
    %119 = arith.mulf %118, %116 : vector<2x32xf32>
    %120 = arith.mulf %111, %89 : vector<2x32xf32>
    %121 = arith.addf %119, %120 : vector<2x32xf32>
    %c3_40 = arith.constant 3 : index
    %c0_41 = arith.constant 0 : index
    %c0_42 = arith.constant 0 : index
    %122 = vector.load %arg0[%c3_40, %c0_41, %c0_42] : memref<8x2x16xf32, #tpu.memory_space<vmem>>, vector<1x2x16xf32>
    %123 = vector.shape_cast %122 : vector<1x2x16xf32> to vector<2x16xf32>
    %cst_43 = arith.constant dense<0.000000e+00> : vector<2x128xf32>
    %124 = tpu.matmul %123, %0, %cst_43 {dimension_numbers = #tpu.dot_dimension_numbers<[1], [0], [0], [1], [0, 0, 1, 1], [], []>} : vector<2x16xf32>, vector<16x128xf32>, vector<2x128xf32> -> vector<2x128xf32>
    %125 = arith.addf %124, %9 : vector<2x128xf32>
    %cst_44 = arith.constant dense<0.000000e+00> : vector<2x128xf32>
    %126 = tpu.matmul %121, %1, %cst_44 {dimension_numbers = #tpu.dot_dimension_numbers<[1], [0], [0], [1], [0, 0, 1, 1], [], []>} : vector<2x32xf32>, vector<32x128xf32>, vector<2x128xf32> -> vector<2x128xf32>
    %127 = arith.addf %126, %12 : vector<2x128xf32>
    %128 = vector.extract_strided_slice %125 {offsets = [0, 0], sizes = [2, 32], strides = [1, 1]} : vector<2x128xf32> to vector<2x32xf32>
    %129 = vector.extract_strided_slice %127 {offsets = [0, 0], sizes = [2, 32], strides = [1, 1]} : vector<2x128xf32> to vector<2x32xf32>
    %130 = arith.addf %128, %129 : vector<2x32xf32>
    %131 = arith.negf %130 : vector<2x32xf32>
    %132 = math.exp %131 : vector<2x32xf32>
    %cst_45 = arith.constant 1.000000e+00 : f32
    %133 = vector.broadcast %cst_45 : f32 to vector<2x32xf32>
    %134 = arith.addf %133, %132 : vector<2x32xf32>
    %135 = arith.divf %133, %134 : vector<2x32xf32>
    %136 = vector.extract_strided_slice %125 {offsets = [0, 32], sizes = [2, 32], strides = [1, 1]} : vector<2x128xf32> to vector<2x32xf32>
    %137 = vector.extract_strided_slice %127 {offsets = [0, 32], sizes = [2, 32], strides = [1, 1]} : vector<2x128xf32> to vector<2x32xf32>
    %138 = arith.addf %136, %137 : vector<2x32xf32>
    %139 = arith.negf %138 : vector<2x32xf32>
    %140 = math.exp %139 : vector<2x32xf32>
    %cst_46 = arith.constant 1.000000e+00 : f32
    %141 = vector.broadcast %cst_46 : f32 to vector<2x32xf32>
    %142 = arith.addf %141, %140 : vector<2x32xf32>
    %143 = arith.divf %141, %142 : vector<2x32xf32>
    %144 = vector.extract_strided_slice %125 {offsets = [0, 64], sizes = [2, 32], strides = [1, 1]} : vector<2x128xf32> to vector<2x32xf32>
    %145 = vector.extract_strided_slice %127 {offsets = [0, 64], sizes = [2, 32], strides = [1, 1]} : vector<2x128xf32> to vector<2x32xf32>
    %146 = arith.mulf %135, %145 : vector<2x32xf32>
    %147 = arith.addf %144, %146 : vector<2x32xf32>
    %148 = math.tanh %147 : vector<2x32xf32>
    %cst_47 = arith.constant 1.000000e+00 : f32
    %149 = vector.broadcast %cst_47 : f32 to vector<2x32xf32>
    %150 = arith.subf %149, %143 : vector<2x32xf32>
    %151 = arith.mulf %150, %148 : vector<2x32xf32>
    %152 = arith.mulf %143, %121 : vector<2x32xf32>
    %153 = arith.addf %151, %152 : vector<2x32xf32>
    %c4_48 = arith.constant 4 : index
    %c0_49 = arith.constant 0 : index
    %c0_50 = arith.constant 0 : index
    %154 = vector.load %arg0[%c4_48, %c0_49, %c0_50] : memref<8x2x16xf32, #tpu.memory_space<vmem>>, vector<1x2x16xf32>
    %155 = vector.shape_cast %154 : vector<1x2x16xf32> to vector<2x16xf32>
    %cst_51 = arith.constant dense<0.000000e+00> : vector<2x128xf32>
    %156 = tpu.matmul %155, %0, %cst_51 {dimension_numbers = #tpu.dot_dimension_numbers<[1], [0], [0], [1], [0, 0, 1, 1], [], []>} : vector<2x16xf32>, vector<16x128xf32>, vector<2x128xf32> -> vector<2x128xf32>
    %157 = arith.addf %156, %9 : vector<2x128xf32>
    %cst_52 = arith.constant dense<0.000000e+00> : vector<2x128xf32>
    %158 = tpu.matmul %153, %1, %cst_52 {dimension_numbers = #tpu.dot_dimension_numbers<[1], [0], [0], [1], [0, 0, 1, 1], [], []>} : vector<2x32xf32>, vector<32x128xf32>, vector<2x128xf32> -> vector<2x128xf32>
    %159 = arith.addf %158, %12 : vector<2x128xf32>
    %160 = vector.extract_strided_slice %157 {offsets = [0, 0], sizes = [2, 32], strides = [1, 1]} : vector<2x128xf32> to vector<2x32xf32>
    %161 = vector.extract_strided_slice %159 {offsets = [0, 0], sizes = [2, 32], strides = [1, 1]} : vector<2x128xf32> to vector<2x32xf32>
    %162 = arith.addf %160, %161 : vector<2x32xf32>
    %163 = arith.negf %162 : vector<2x32xf32>
    %164 = math.exp %163 : vector<2x32xf32>
    %cst_53 = arith.constant 1.000000e+00 : f32
    %165 = vector.broadcast %cst_53 : f32 to vector<2x32xf32>
    %166 = arith.addf %165, %164 : vector<2x32xf32>
    %167 = arith.divf %165, %166 : vector<2x32xf32>
    %168 = vector.extract_strided_slice %157 {offsets = [0, 32], sizes = [2, 32], strides = [1, 1]} : vector<2x128xf32> to vector<2x32xf32>
    %169 = vector.extract_strided_slice %159 {offsets = [0, 32], sizes = [2, 32], strides = [1, 1]} : vector<2x128xf32> to vector<2x32xf32>
    %170 = arith.addf %168, %169 : vector<2x32xf32>
    %171 = arith.negf %170 : vector<2x32xf32>
    %172 = math.exp %171 : vector<2x32xf32>
    %cst_54 = arith.constant 1.000000e+00 : f32
    %173 = vector.broadcast %cst_54 : f32 to vector<2x32xf32>
    %174 = arith.addf %173, %172 : vector<2x32xf32>
    %175 = arith.divf %173, %174 : vector<2x32xf32>
    %176 = vector.extract_strided_slice %157 {offsets = [0, 64], sizes = [2, 32], strides = [1, 1]} : vector<2x128xf32> to vector<2x32xf32>
    %177 = vector.extract_strided_slice %159 {offsets = [0, 64], sizes = [2, 32], strides = [1, 1]} : vector<2x128xf32> to vector<2x32xf32>
    %178 = arith.mulf %167, %177 : vector<2x32xf32>
    %179 = arith.addf %176, %178 : vector<2x32xf32>
    %180 = math.tanh %179 : vector<2x32xf32>
    %cst_55 = arith.constant 1.000000e+00 : f32
    %181 = vector.broadcast %cst_55 : f32 to vector<2x32xf32>
    %182 = arith.subf %181, %175 : vector<2x32xf32>
    %183 = arith.mulf %182, %180 : vector<2x32xf32>
    %184 = arith.mulf %175, %153 : vector<2x32xf32>
    %185 = arith.addf %183, %184 : vector<2x32xf32>
    %c5_56 = arith.constant 5 : index
    %c0_57 = arith.constant 0 : index
    %c0_58 = arith.constant 0 : index
    %186 = vector.load %arg0[%c5_56, %c0_57, %c0_58] : memref<8x2x16xf32, #tpu.memory_space<vmem>>, vector<1x2x16xf32>
    %187 = vector.shape_cast %186 : vector<1x2x16xf32> to vector<2x16xf32>
    %cst_59 = arith.constant dense<0.000000e+00> : vector<2x128xf32>
    %188 = tpu.matmul %187, %0, %cst_59 {dimension_numbers = #tpu.dot_dimension_numbers<[1], [0], [0], [1], [0, 0, 1, 1], [], []>} : vector<2x16xf32>, vector<16x128xf32>, vector<2x128xf32> -> vector<2x128xf32>
    %189 = arith.addf %188, %9 : vector<2x128xf32>
    %cst_60 = arith.constant dense<0.000000e+00> : vector<2x128xf32>
    %190 = tpu.matmul %185, %1, %cst_60 {dimension_numbers = #tpu.dot_dimension_numbers<[1], [0], [0], [1], [0, 0, 1, 1], [], []>} : vector<2x32xf32>, vector<32x128xf32>, vector<2x128xf32> -> vector<2x128xf32>
    %191 = arith.addf %190, %12 : vector<2x128xf32>
    %192 = vector.extract_strided_slice %189 {offsets = [0, 0], sizes = [2, 32], strides = [1, 1]} : vector<2x128xf32> to vector<2x32xf32>
    %193 = vector.extract_strided_slice %191 {offsets = [0, 0], sizes = [2, 32], strides = [1, 1]} : vector<2x128xf32> to vector<2x32xf32>
    %194 = arith.addf %192, %193 : vector<2x32xf32>
    %195 = arith.negf %194 : vector<2x32xf32>
    %196 = math.exp %195 : vector<2x32xf32>
    %cst_61 = arith.constant 1.000000e+00 : f32
    %197 = vector.broadcast %cst_61 : f32 to vector<2x32xf32>
    %198 = arith.addf %197, %196 : vector<2x32xf32>
    %199 = arith.divf %197, %198 : vector<2x32xf32>
    %200 = vector.extract_strided_slice %189 {offsets = [0, 32], sizes = [2, 32], strides = [1, 1]} : vector<2x128xf32> to vector<2x32xf32>
    %201 = vector.extract_strided_slice %191 {offsets = [0, 32], sizes = [2, 32], strides = [1, 1]} : vector<2x128xf32> to vector<2x32xf32>
    %202 = arith.addf %200, %201 : vector<2x32xf32>
    %203 = arith.negf %202 : vector<2x32xf32>
    %204 = math.exp %203 : vector<2x32xf32>
    %cst_62 = arith.constant 1.000000e+00 : f32
    %205 = vector.broadcast %cst_62 : f32 to vector<2x32xf32>
    %206 = arith.addf %205, %204 : vector<2x32xf32>
    %207 = arith.divf %205, %206 : vector<2x32xf32>
    %208 = vector.extract_strided_slice %189 {offsets = [0, 64], sizes = [2, 32], strides = [1, 1]} : vector<2x128xf32> to vector<2x32xf32>
    %209 = vector.extract_strided_slice %191 {offsets = [0, 64], sizes = [2, 32], strides = [1, 1]} : vector<2x128xf32> to vector<2x32xf32>
    %210 = arith.mulf %199, %209 : vector<2x32xf32>
    %211 = arith.addf %208, %210 : vector<2x32xf32>
    %212 = math.tanh %211 : vector<2x32xf32>
    %cst_63 = arith.constant 1.000000e+00 : f32
    %213 = vector.broadcast %cst_63 : f32 to vector<2x32xf32>
    %214 = arith.subf %213, %207 : vector<2x32xf32>
    %215 = arith.mulf %214, %212 : vector<2x32xf32>
    %216 = arith.mulf %207, %185 : vector<2x32xf32>
    %217 = arith.addf %215, %216 : vector<2x32xf32>
    %c6 = arith.constant 6 : index
    %c0_64 = arith.constant 0 : index
    %c0_65 = arith.constant 0 : index
    %218 = vector.load %arg0[%c6, %c0_64, %c0_65] : memref<8x2x16xf32, #tpu.memory_space<vmem>>, vector<1x2x16xf32>
    %219 = vector.shape_cast %218 : vector<1x2x16xf32> to vector<2x16xf32>
    %cst_66 = arith.constant dense<0.000000e+00> : vector<2x128xf32>
    %220 = tpu.matmul %219, %0, %cst_66 {dimension_numbers = #tpu.dot_dimension_numbers<[1], [0], [0], [1], [0, 0, 1, 1], [], []>} : vector<2x16xf32>, vector<16x128xf32>, vector<2x128xf32> -> vector<2x128xf32>
    %221 = arith.addf %220, %9 : vector<2x128xf32>
    %cst_67 = arith.constant dense<0.000000e+00> : vector<2x128xf32>
    %222 = tpu.matmul %217, %1, %cst_67 {dimension_numbers = #tpu.dot_dimension_numbers<[1], [0], [0], [1], [0, 0, 1, 1], [], []>} : vector<2x32xf32>, vector<32x128xf32>, vector<2x128xf32> -> vector<2x128xf32>
    %223 = arith.addf %222, %12 : vector<2x128xf32>
    %224 = vector.extract_strided_slice %221 {offsets = [0, 0], sizes = [2, 32], strides = [1, 1]} : vector<2x128xf32> to vector<2x32xf32>
    %225 = vector.extract_strided_slice %223 {offsets = [0, 0], sizes = [2, 32], strides = [1, 1]} : vector<2x128xf32> to vector<2x32xf32>
    %226 = arith.addf %224, %225 : vector<2x32xf32>
    %227 = arith.negf %226 : vector<2x32xf32>
    %228 = math.exp %227 : vector<2x32xf32>
    %cst_68 = arith.constant 1.000000e+00 : f32
    %229 = vector.broadcast %cst_68 : f32 to vector<2x32xf32>
    %230 = arith.addf %229, %228 : vector<2x32xf32>
    %231 = arith.divf %229, %230 : vector<2x32xf32>
    %232 = vector.extract_strided_slice %221 {offsets = [0, 32], sizes = [2, 32], strides = [1, 1]} : vector<2x128xf32> to vector<2x32xf32>
    %233 = vector.extract_strided_slice %223 {offsets = [0, 32], sizes = [2, 32], strides = [1, 1]} : vector<2x128xf32> to vector<2x32xf32>
    %234 = arith.addf %232, %233 : vector<2x32xf32>
    %235 = arith.negf %234 : vector<2x32xf32>
    %236 = math.exp %235 : vector<2x32xf32>
    %cst_69 = arith.constant 1.000000e+00 : f32
    %237 = vector.broadcast %cst_69 : f32 to vector<2x32xf32>
    %238 = arith.addf %237, %236 : vector<2x32xf32>
    %239 = arith.divf %237, %238 : vector<2x32xf32>
    %240 = vector.extract_strided_slice %221 {offsets = [0, 64], sizes = [2, 32], strides = [1, 1]} : vector<2x128xf32> to vector<2x32xf32>
    %241 = vector.extract_strided_slice %223 {offsets = [0, 64], sizes = [2, 32], strides = [1, 1]} : vector<2x128xf32> to vector<2x32xf32>
    %242 = arith.mulf %231, %241 : vector<2x32xf32>
    %243 = arith.addf %240, %242 : vector<2x32xf32>
    %244 = math.tanh %243 : vector<2x32xf32>
    %cst_70 = arith.constant 1.000000e+00 : f32
    %245 = vector.broadcast %cst_70 : f32 to vector<2x32xf32>
    %246 = arith.subf %245, %239 : vector<2x32xf32>
    %247 = arith.mulf %246, %244 : vector<2x32xf32>
    %248 = arith.mulf %239, %217 : vector<2x32xf32>
    %249 = arith.addf %247, %248 : vector<2x32xf32>
    %c7 = arith.constant 7 : index
    %c0_71 = arith.constant 0 : index
    %c0_72 = arith.constant 0 : index
    %250 = vector.load %arg0[%c7, %c0_71, %c0_72] : memref<8x2x16xf32, #tpu.memory_space<vmem>>, vector<1x2x16xf32>
    %251 = vector.shape_cast %250 : vector<1x2x16xf32> to vector<2x16xf32>
    %cst_73 = arith.constant dense<0.000000e+00> : vector<2x128xf32>
    %252 = tpu.matmul %251, %0, %cst_73 {dimension_numbers = #tpu.dot_dimension_numbers<[1], [0], [0], [1], [0, 0, 1, 1], [], []>} : vector<2x16xf32>, vector<16x128xf32>, vector<2x128xf32> -> vector<2x128xf32>
    %253 = arith.addf %252, %9 : vector<2x128xf32>
    %cst_74 = arith.constant dense<0.000000e+00> : vector<2x128xf32>
    %254 = tpu.matmul %249, %1, %cst_74 {dimension_numbers = #tpu.dot_dimension_numbers<[1], [0], [0], [1], [0, 0, 1, 1], [], []>} : vector<2x32xf32>, vector<32x128xf32>, vector<2x128xf32> -> vector<2x128xf32>
    %255 = arith.addf %254, %12 : vector<2x128xf32>
    %256 = vector.extract_strided_slice %253 {offsets = [0, 0], sizes = [2, 32], strides = [1, 1]} : vector<2x128xf32> to vector<2x32xf32>
    %257 = vector.extract_strided_slice %255 {offsets = [0, 0], sizes = [2, 32], strides = [1, 1]} : vector<2x128xf32> to vector<2x32xf32>
    %258 = arith.addf %256, %257 : vector<2x32xf32>
    %259 = arith.negf %258 : vector<2x32xf32>
    %260 = math.exp %259 : vector<2x32xf32>
    %cst_75 = arith.constant 1.000000e+00 : f32
    %261 = vector.broadcast %cst_75 : f32 to vector<2x32xf32>
    %262 = arith.addf %261, %260 : vector<2x32xf32>
    %263 = arith.divf %261, %262 : vector<2x32xf32>
    %264 = vector.extract_strided_slice %253 {offsets = [0, 32], sizes = [2, 32], strides = [1, 1]} : vector<2x128xf32> to vector<2x32xf32>
    %265 = vector.extract_strided_slice %255 {offsets = [0, 32], sizes = [2, 32], strides = [1, 1]} : vector<2x128xf32> to vector<2x32xf32>
    %266 = arith.addf %264, %265 : vector<2x32xf32>
    %267 = arith.negf %266 : vector<2x32xf32>
    %268 = math.exp %267 : vector<2x32xf32>
    %cst_76 = arith.constant 1.000000e+00 : f32
    %269 = vector.broadcast %cst_76 : f32 to vector<2x32xf32>
    %270 = arith.addf %269, %268 : vector<2x32xf32>
    %271 = arith.divf %269, %270 : vector<2x32xf32>
    %272 = vector.extract_strided_slice %253 {offsets = [0, 64], sizes = [2, 32], strides = [1, 1]} : vector<2x128xf32> to vector<2x32xf32>
    %273 = vector.extract_strided_slice %255 {offsets = [0, 64], sizes = [2, 32], strides = [1, 1]} : vector<2x128xf32> to vector<2x32xf32>
    %274 = arith.mulf %263, %273 : vector<2x32xf32>
    %275 = arith.addf %272, %274 : vector<2x32xf32>
    %276 = math.tanh %275 : vector<2x32xf32>
    %cst_77 = arith.constant 1.000000e+00 : f32
    %277 = vector.broadcast %cst_77 : f32 to vector<2x32xf32>
    %278 = arith.subf %277, %271 : vector<2x32xf32>
    %279 = arith.mulf %278, %276 : vector<2x32xf32>
    %280 = arith.mulf %271, %249 : vector<2x32xf32>
    %281 = arith.addf %279, %280 : vector<2x32xf32>
    %282 = vector.shape_cast %57 : vector<2x32xf32> to vector<2x1x32xf32>
    %283 = vector.shape_cast %89 : vector<2x32xf32> to vector<2x1x32xf32>
    %284 = vector.shape_cast %121 : vector<2x32xf32> to vector<2x1x32xf32>
    %285 = vector.shape_cast %153 : vector<2x32xf32> to vector<2x1x32xf32>
    %286 = vector.shape_cast %185 : vector<2x32xf32> to vector<2x1x32xf32>
    %287 = vector.shape_cast %217 : vector<2x32xf32> to vector<2x1x32xf32>
    %288 = vector.shape_cast %249 : vector<2x32xf32> to vector<2x1x32xf32>
    %289 = vector.shape_cast %281 : vector<2x32xf32> to vector<2x1x32xf32>
    %290 = tpu.concatenate %282, %283, %284, %285, %286, %287, %288, %289 in 1 : vector<2x1x32xf32>, vector<2x1x32xf32>, vector<2x1x32xf32>, vector<2x1x32xf32>, vector<2x1x32xf32>, vector<2x1x32xf32>, vector<2x1x32xf32>, vector<2x1x32xf32> -> vector<2x8x32xf32>
    %291 = vector.shape_cast %290 : vector<2x8x32xf32> to vector<16x32xf32>
    %cst_78 = arith.constant dense<0.000000e+00> : vector<16x32xf32>
    %292 = tpu.matmul %291, %2, %cst_78 {dimension_numbers = #tpu.dot_dimension_numbers<[1], [0], [0], [1], [0, 0, 1, 1], [], []>} : vector<16x32xf32>, vector<32x32xf32>, vector<16x32xf32> -> vector<16x32xf32>
    %293 = vector.shape_cast %292 : vector<16x32xf32> to vector<2x8x32xf32>
    %c0_79 = arith.constant 0 : index
    %c0_80 = arith.constant 0 : index
    %c0_81 = arith.constant 0 : index
    %294 = vector.load %arg1[%c0_79, %c0_80, %c0_81] : memref<5x2x16xf32, #tpu.memory_space<vmem>>, vector<1x2x16xf32>
    %295 = vector.shape_cast %294 : vector<1x2x16xf32> to vector<2x16xf32>
    %cst_82 = arith.constant dense<0.000000e+00> : vector<2x128xf32>
    %296 = tpu.matmul %281, %3, %cst_82 {dimension_numbers = #tpu.dot_dimension_numbers<[1], [0], [0], [1], [0, 0, 1, 1], [], []>} : vector<2x32xf32>, vector<32x128xf32>, vector<2x128xf32> -> vector<2x128xf32>
    %297 = arith.addf %296, %18 : vector<2x128xf32>
    %298 = vector.extract_strided_slice %297 {offsets = [0, 96], sizes = [2, 32], strides = [1, 1]} : vector<2x128xf32> to vector<2x32xf32>
    %299 = vector.shape_cast %298 : vector<2x32xf32> to vector<2x1x32xf32>
    %300 = vector.broadcast %299 : vector<2x1x32xf32> to vector<2x8x32xf32>
    %301 = arith.addf %293, %300 : vector<2x8x32xf32>
    %302 = math.tanh %301 : vector<2x8x32xf32>
    %303 = vector.broadcast %20 : vector<1x1x32xf32> to vector<2x8x32xf32>
    %304 = arith.mulf %302, %303 : vector<2x8x32xf32>
    %cst_83 = arith.constant dense<0.000000e+00> : vector<2x8xf32>
    %305 = vector.multi_reduction <add>, %304, %cst_83 [2] : vector<2x8x32xf32> to vector<2x8xf32>
    %306 = arith.addf %305, %24 : vector<2x8xf32>
    %cst_84 = arith.constant dense<0xFF800000> : vector<2xf32>
    %307 = vector.multi_reduction <maximumf>, %306, %cst_84 [1] : vector<2x8xf32> to vector<2xf32>
    %308 = vector.shape_cast %307 : vector<2xf32> to vector<2x1xf32>
    %309 = vector.broadcast %308 : vector<2x1xf32> to vector<2x8xf32>
    %310 = arith.subf %306, %309 : vector<2x8xf32>
    %311 = math.exp %310 : vector<2x8xf32>
    %cst_85 = arith.constant dense<0.000000e+00> : vector<2xf32>
    %312 = vector.multi_reduction <add>, %311, %cst_85 [1] : vector<2x8xf32> to vector<2xf32>
    %313 = vector.shape_cast %312 : vector<2xf32> to vector<2x1xf32>
    %314 = vector.broadcast %313 : vector<2x1xf32> to vector<2x8xf32>
    %315 = arith.divf %311, %314 : vector<2x8xf32>
    %316 = vector.shape_cast %315 : vector<2x8xf32> to vector<2x8x1xf32>
    %317 = vector.broadcast %316 : vector<2x8x1xf32> to vector<2x8x32xf32>
    %318 = arith.mulf %317, %290 : vector<2x8x32xf32>
    %cst_86 = arith.constant dense<0.000000e+00> : vector<2x32xf32>
    %319 = vector.multi_reduction <add>, %318, %cst_86 [1] : vector<2x8x32xf32> to vector<2x32xf32>
    %cst_87 = arith.constant dense<0.000000e+00> : vector<2x128xf32>
    %320 = tpu.matmul %295, %4, %cst_87 {dimension_numbers = #tpu.dot_dimension_numbers<[1], [0], [0], [1], [0, 0, 1, 1], [], []>} : vector<2x16xf32>, vector<16x128xf32>, vector<2x128xf32> -> vector<2x128xf32>
    %cst_88 = arith.constant dense<0.000000e+00> : vector<2x128xf32>
    %321 = tpu.matmul %319, %5, %cst_88 {dimension_numbers = #tpu.dot_dimension_numbers<[1], [0], [0], [1], [0, 0, 1, 1], [], []>} : vector<2x32xf32>, vector<32x128xf32>, vector<2x128xf32> -> vector<2x128xf32>
    %322 = arith.addf %320, %321 : vector<2x128xf32>
    %323 = arith.addf %322, %15 : vector<2x128xf32>
    %324 = vector.extract_strided_slice %323 {offsets = [0, 0], sizes = [2, 32], strides = [1, 1]} : vector<2x128xf32> to vector<2x32xf32>
    %325 = vector.extract_strided_slice %297 {offsets = [0, 0], sizes = [2, 32], strides = [1, 1]} : vector<2x128xf32> to vector<2x32xf32>
    %326 = arith.addf %324, %325 : vector<2x32xf32>
    %327 = arith.negf %326 : vector<2x32xf32>
    %328 = math.exp %327 : vector<2x32xf32>
    %cst_89 = arith.constant 1.000000e+00 : f32
    %329 = vector.broadcast %cst_89 : f32 to vector<2x32xf32>
    %330 = arith.addf %329, %328 : vector<2x32xf32>
    %331 = arith.divf %329, %330 : vector<2x32xf32>
    %332 = vector.extract_strided_slice %323 {offsets = [0, 32], sizes = [2, 32], strides = [1, 1]} : vector<2x128xf32> to vector<2x32xf32>
    %333 = vector.extract_strided_slice %297 {offsets = [0, 32], sizes = [2, 32], strides = [1, 1]} : vector<2x128xf32> to vector<2x32xf32>
    %334 = arith.addf %332, %333 : vector<2x32xf32>
    %335 = arith.negf %334 : vector<2x32xf32>
    %336 = math.exp %335 : vector<2x32xf32>
    %cst_90 = arith.constant 1.000000e+00 : f32
    %337 = vector.broadcast %cst_90 : f32 to vector<2x32xf32>
    %338 = arith.addf %337, %336 : vector<2x32xf32>
    %339 = arith.divf %337, %338 : vector<2x32xf32>
    %340 = vector.extract_strided_slice %323 {offsets = [0, 64], sizes = [2, 32], strides = [1, 1]} : vector<2x128xf32> to vector<2x32xf32>
    %341 = vector.extract_strided_slice %297 {offsets = [0, 64], sizes = [2, 32], strides = [1, 1]} : vector<2x128xf32> to vector<2x32xf32>
    %342 = arith.mulf %331, %341 : vector<2x32xf32>
    %343 = arith.addf %340, %342 : vector<2x32xf32>
    %344 = math.tanh %343 : vector<2x32xf32>
    %cst_91 = arith.constant 1.000000e+00 : f32
    %345 = vector.broadcast %cst_91 : f32 to vector<2x32xf32>
    %346 = arith.subf %345, %339 : vector<2x32xf32>
    %347 = arith.mulf %346, %344 : vector<2x32xf32>
    %348 = arith.mulf %339, %281 : vector<2x32xf32>
    %349 = arith.addf %347, %348 : vector<2x32xf32>
    %cst_92 = arith.constant dense<0.000000e+00> : vector<2x128xf32>
    %350 = tpu.matmul %349, %6, %cst_92 {dimension_numbers = #tpu.dot_dimension_numbers<[1], [0], [0], [1], [0, 0, 1, 1], [], []>} : vector<2x32xf32>, vector<32x128xf32>, vector<2x128xf32> -> vector<2x128xf32>
    %351 = arith.addf %323, %350 : vector<2x128xf32>
    %352 = arith.addf %351, %23 : vector<2x128xf32>
    %353 = vector.extract_strided_slice %352 {offsets = [0, 96], sizes = [2, 32], strides = [1, 1]} : vector<2x128xf32> to vector<2x32xf32>
    %c1_93 = arith.constant 1 : index
    %c0_94 = arith.constant 0 : index
    %c0_95 = arith.constant 0 : index
    %354 = vector.load %arg1[%c1_93, %c0_94, %c0_95] : memref<5x2x16xf32, #tpu.memory_space<vmem>>, vector<1x2x16xf32>
    %355 = vector.shape_cast %354 : vector<1x2x16xf32> to vector<2x16xf32>
    %cst_96 = arith.constant dense<0.000000e+00> : vector<2x128xf32>
    %356 = tpu.matmul %349, %3, %cst_96 {dimension_numbers = #tpu.dot_dimension_numbers<[1], [0], [0], [1], [0, 0, 1, 1], [], []>} : vector<2x32xf32>, vector<32x128xf32>, vector<2x128xf32> -> vector<2x128xf32>
    %357 = arith.addf %356, %18 : vector<2x128xf32>
    %358 = vector.extract_strided_slice %357 {offsets = [0, 96], sizes = [2, 32], strides = [1, 1]} : vector<2x128xf32> to vector<2x32xf32>
    %359 = vector.shape_cast %358 : vector<2x32xf32> to vector<2x1x32xf32>
    %360 = vector.broadcast %359 : vector<2x1x32xf32> to vector<2x8x32xf32>
    %361 = arith.addf %293, %360 : vector<2x8x32xf32>
    %362 = math.tanh %361 : vector<2x8x32xf32>
    %363 = vector.broadcast %20 : vector<1x1x32xf32> to vector<2x8x32xf32>
    %364 = arith.mulf %362, %363 : vector<2x8x32xf32>
    %cst_97 = arith.constant dense<0.000000e+00> : vector<2x8xf32>
    %365 = vector.multi_reduction <add>, %364, %cst_97 [2] : vector<2x8x32xf32> to vector<2x8xf32>
    %366 = arith.addf %365, %24 : vector<2x8xf32>
    %cst_98 = arith.constant dense<0xFF800000> : vector<2xf32>
    %367 = vector.multi_reduction <maximumf>, %366, %cst_98 [1] : vector<2x8xf32> to vector<2xf32>
    %368 = vector.shape_cast %367 : vector<2xf32> to vector<2x1xf32>
    %369 = vector.broadcast %368 : vector<2x1xf32> to vector<2x8xf32>
    %370 = arith.subf %366, %369 : vector<2x8xf32>
    %371 = math.exp %370 : vector<2x8xf32>
    %cst_99 = arith.constant dense<0.000000e+00> : vector<2xf32>
    %372 = vector.multi_reduction <add>, %371, %cst_99 [1] : vector<2x8xf32> to vector<2xf32>
    %373 = vector.shape_cast %372 : vector<2xf32> to vector<2x1xf32>
    %374 = vector.broadcast %373 : vector<2x1xf32> to vector<2x8xf32>
    %375 = arith.divf %371, %374 : vector<2x8xf32>
    %376 = vector.shape_cast %375 : vector<2x8xf32> to vector<2x8x1xf32>
    %377 = vector.broadcast %376 : vector<2x8x1xf32> to vector<2x8x32xf32>
    %378 = arith.mulf %377, %290 : vector<2x8x32xf32>
    %cst_100 = arith.constant dense<0.000000e+00> : vector<2x32xf32>
    %379 = vector.multi_reduction <add>, %378, %cst_100 [1] : vector<2x8x32xf32> to vector<2x32xf32>
    %cst_101 = arith.constant dense<0.000000e+00> : vector<2x128xf32>
    %380 = tpu.matmul %355, %4, %cst_101 {dimension_numbers = #tpu.dot_dimension_numbers<[1], [0], [0], [1], [0, 0, 1, 1], [], []>} : vector<2x16xf32>, vector<16x128xf32>, vector<2x128xf32> -> vector<2x128xf32>
    %cst_102 = arith.constant dense<0.000000e+00> : vector<2x128xf32>
    %381 = tpu.matmul %379, %5, %cst_102 {dimension_numbers = #tpu.dot_dimension_numbers<[1], [0], [0], [1], [0, 0, 1, 1], [], []>} : vector<2x32xf32>, vector<32x128xf32>, vector<2x128xf32> -> vector<2x128xf32>
    %382 = arith.addf %380, %381 : vector<2x128xf32>
    %383 = arith.addf %382, %15 : vector<2x128xf32>
    %384 = vector.extract_strided_slice %383 {offsets = [0, 0], sizes = [2, 32], strides = [1, 1]} : vector<2x128xf32> to vector<2x32xf32>
    %385 = vector.extract_strided_slice %357 {offsets = [0, 0], sizes = [2, 32], strides = [1, 1]} : vector<2x128xf32> to vector<2x32xf32>
    %386 = arith.addf %384, %385 : vector<2x32xf32>
    %387 = arith.negf %386 : vector<2x32xf32>
    %388 = math.exp %387 : vector<2x32xf32>
    %cst_103 = arith.constant 1.000000e+00 : f32
    %389 = vector.broadcast %cst_103 : f32 to vector<2x32xf32>
    %390 = arith.addf %389, %388 : vector<2x32xf32>
    %391 = arith.divf %389, %390 : vector<2x32xf32>
    %392 = vector.extract_strided_slice %383 {offsets = [0, 32], sizes = [2, 32], strides = [1, 1]} : vector<2x128xf32> to vector<2x32xf32>
    %393 = vector.extract_strided_slice %357 {offsets = [0, 32], sizes = [2, 32], strides = [1, 1]} : vector<2x128xf32> to vector<2x32xf32>
    %394 = arith.addf %392, %393 : vector<2x32xf32>
    %395 = arith.negf %394 : vector<2x32xf32>
    %396 = math.exp %395 : vector<2x32xf32>
    %cst_104 = arith.constant 1.000000e+00 : f32
    %397 = vector.broadcast %cst_104 : f32 to vector<2x32xf32>
    %398 = arith.addf %397, %396 : vector<2x32xf32>
    %399 = arith.divf %397, %398 : vector<2x32xf32>
    %400 = vector.extract_strided_slice %383 {offsets = [0, 64], sizes = [2, 32], strides = [1, 1]} : vector<2x128xf32> to vector<2x32xf32>
    %401 = vector.extract_strided_slice %357 {offsets = [0, 64], sizes = [2, 32], strides = [1, 1]} : vector<2x128xf32> to vector<2x32xf32>
    %402 = arith.mulf %391, %401 : vector<2x32xf32>
    %403 = arith.addf %400, %402 : vector<2x32xf32>
    %404 = math.tanh %403 : vector<2x32xf32>
    %cst_105 = arith.constant 1.000000e+00 : f32
    %405 = vector.broadcast %cst_105 : f32 to vector<2x32xf32>
    %406 = arith.subf %405, %399 : vector<2x32xf32>
    %407 = arith.mulf %406, %404 : vector<2x32xf32>
    %408 = arith.mulf %399, %349 : vector<2x32xf32>
    %409 = arith.addf %407, %408 : vector<2x32xf32>
    %cst_106 = arith.constant dense<0.000000e+00> : vector<2x128xf32>
    %410 = tpu.matmul %409, %6, %cst_106 {dimension_numbers = #tpu.dot_dimension_numbers<[1], [0], [0], [1], [0, 0, 1, 1], [], []>} : vector<2x32xf32>, vector<32x128xf32>, vector<2x128xf32> -> vector<2x128xf32>
    %411 = arith.addf %383, %410 : vector<2x128xf32>
    %412 = arith.addf %411, %23 : vector<2x128xf32>
    %413 = vector.extract_strided_slice %412 {offsets = [0, 96], sizes = [2, 32], strides = [1, 1]} : vector<2x128xf32> to vector<2x32xf32>
    %c2_107 = arith.constant 2 : index
    %c0_108 = arith.constant 0 : index
    %c0_109 = arith.constant 0 : index
    %414 = vector.load %arg1[%c2_107, %c0_108, %c0_109] : memref<5x2x16xf32, #tpu.memory_space<vmem>>, vector<1x2x16xf32>
    %415 = vector.shape_cast %414 : vector<1x2x16xf32> to vector<2x16xf32>
    %cst_110 = arith.constant dense<0.000000e+00> : vector<2x128xf32>
    %416 = tpu.matmul %409, %3, %cst_110 {dimension_numbers = #tpu.dot_dimension_numbers<[1], [0], [0], [1], [0, 0, 1, 1], [], []>} : vector<2x32xf32>, vector<32x128xf32>, vector<2x128xf32> -> vector<2x128xf32>
    %417 = arith.addf %416, %18 : vector<2x128xf32>
    %418 = vector.extract_strided_slice %417 {offsets = [0, 96], sizes = [2, 32], strides = [1, 1]} : vector<2x128xf32> to vector<2x32xf32>
    %419 = vector.shape_cast %418 : vector<2x32xf32> to vector<2x1x32xf32>
    %420 = vector.broadcast %419 : vector<2x1x32xf32> to vector<2x8x32xf32>
    %421 = arith.addf %293, %420 : vector<2x8x32xf32>
    %422 = math.tanh %421 : vector<2x8x32xf32>
    %423 = vector.broadcast %20 : vector<1x1x32xf32> to vector<2x8x32xf32>
    %424 = arith.mulf %422, %423 : vector<2x8x32xf32>
    %cst_111 = arith.constant dense<0.000000e+00> : vector<2x8xf32>
    %425 = vector.multi_reduction <add>, %424, %cst_111 [2] : vector<2x8x32xf32> to vector<2x8xf32>
    %426 = arith.addf %425, %24 : vector<2x8xf32>
    %cst_112 = arith.constant dense<0xFF800000> : vector<2xf32>
    %427 = vector.multi_reduction <maximumf>, %426, %cst_112 [1] : vector<2x8xf32> to vector<2xf32>
    %428 = vector.shape_cast %427 : vector<2xf32> to vector<2x1xf32>
    %429 = vector.broadcast %428 : vector<2x1xf32> to vector<2x8xf32>
    %430 = arith.subf %426, %429 : vector<2x8xf32>
    %431 = math.exp %430 : vector<2x8xf32>
    %cst_113 = arith.constant dense<0.000000e+00> : vector<2xf32>
    %432 = vector.multi_reduction <add>, %431, %cst_113 [1] : vector<2x8xf32> to vector<2xf32>
    %433 = vector.shape_cast %432 : vector<2xf32> to vector<2x1xf32>
    %434 = vector.broadcast %433 : vector<2x1xf32> to vector<2x8xf32>
    %435 = arith.divf %431, %434 : vector<2x8xf32>
    %436 = vector.shape_cast %435 : vector<2x8xf32> to vector<2x8x1xf32>
    %437 = vector.broadcast %436 : vector<2x8x1xf32> to vector<2x8x32xf32>
    %438 = arith.mulf %437, %290 : vector<2x8x32xf32>
    %cst_114 = arith.constant dense<0.000000e+00> : vector<2x32xf32>
    %439 = vector.multi_reduction <add>, %438, %cst_114 [1] : vector<2x8x32xf32> to vector<2x32xf32>
    %cst_115 = arith.constant dense<0.000000e+00> : vector<2x128xf32>
    %440 = tpu.matmul %415, %4, %cst_115 {dimension_numbers = #tpu.dot_dimension_numbers<[1], [0], [0], [1], [0, 0, 1, 1], [], []>} : vector<2x16xf32>, vector<16x128xf32>, vector<2x128xf32> -> vector<2x128xf32>
    %cst_116 = arith.constant dense<0.000000e+00> : vector<2x128xf32>
    %441 = tpu.matmul %439, %5, %cst_116 {dimension_numbers = #tpu.dot_dimension_numbers<[1], [0], [0], [1], [0, 0, 1, 1], [], []>} : vector<2x32xf32>, vector<32x128xf32>, vector<2x128xf32> -> vector<2x128xf32>
    %442 = arith.addf %440, %441 : vector<2x128xf32>
    %443 = arith.addf %442, %15 : vector<2x128xf32>
    %444 = vector.extract_strided_slice %443 {offsets = [0, 0], sizes = [2, 32], strides = [1, 1]} : vector<2x128xf32> to vector<2x32xf32>
    %445 = vector.extract_strided_slice %417 {offsets = [0, 0], sizes = [2, 32], strides = [1, 1]} : vector<2x128xf32> to vector<2x32xf32>
    %446 = arith.addf %444, %445 : vector<2x32xf32>
    %447 = arith.negf %446 : vector<2x32xf32>
    %448 = math.exp %447 : vector<2x32xf32>
    %cst_117 = arith.constant 1.000000e+00 : f32
    %449 = vector.broadcast %cst_117 : f32 to vector<2x32xf32>
    %450 = arith.addf %449, %448 : vector<2x32xf32>
    %451 = arith.divf %449, %450 : vector<2x32xf32>
    %452 = vector.extract_strided_slice %443 {offsets = [0, 32], sizes = [2, 32], strides = [1, 1]} : vector<2x128xf32> to vector<2x32xf32>
    %453 = vector.extract_strided_slice %417 {offsets = [0, 32], sizes = [2, 32], strides = [1, 1]} : vector<2x128xf32> to vector<2x32xf32>
    %454 = arith.addf %452, %453 : vector<2x32xf32>
    %455 = arith.negf %454 : vector<2x32xf32>
    %456 = math.exp %455 : vector<2x32xf32>
    %cst_118 = arith.constant 1.000000e+00 : f32
    %457 = vector.broadcast %cst_118 : f32 to vector<2x32xf32>
    %458 = arith.addf %457, %456 : vector<2x32xf32>
    %459 = arith.divf %457, %458 : vector<2x32xf32>
    %460 = vector.extract_strided_slice %443 {offsets = [0, 64], sizes = [2, 32], strides = [1, 1]} : vector<2x128xf32> to vector<2x32xf32>
    %461 = vector.extract_strided_slice %417 {offsets = [0, 64], sizes = [2, 32], strides = [1, 1]} : vector<2x128xf32> to vector<2x32xf32>
    %462 = arith.mulf %451, %461 : vector<2x32xf32>
    %463 = arith.addf %460, %462 : vector<2x32xf32>
    %464 = math.tanh %463 : vector<2x32xf32>
    %cst_119 = arith.constant 1.000000e+00 : f32
    %465 = vector.broadcast %cst_119 : f32 to vector<2x32xf32>
    %466 = arith.subf %465, %459 : vector<2x32xf32>
    %467 = arith.mulf %466, %464 : vector<2x32xf32>
    %468 = arith.mulf %459, %409 : vector<2x32xf32>
    %469 = arith.addf %467, %468 : vector<2x32xf32>
    %cst_120 = arith.constant dense<0.000000e+00> : vector<2x128xf32>
    %470 = tpu.matmul %469, %6, %cst_120 {dimension_numbers = #tpu.dot_dimension_numbers<[1], [0], [0], [1], [0, 0, 1, 1], [], []>} : vector<2x32xf32>, vector<32x128xf32>, vector<2x128xf32> -> vector<2x128xf32>
    %471 = arith.addf %443, %470 : vector<2x128xf32>
    %472 = arith.addf %471, %23 : vector<2x128xf32>
    %473 = vector.extract_strided_slice %472 {offsets = [0, 96], sizes = [2, 32], strides = [1, 1]} : vector<2x128xf32> to vector<2x32xf32>
    %c3_121 = arith.constant 3 : index
    %c0_122 = arith.constant 0 : index
    %c0_123 = arith.constant 0 : index
    %474 = vector.load %arg1[%c3_121, %c0_122, %c0_123] : memref<5x2x16xf32, #tpu.memory_space<vmem>>, vector<1x2x16xf32>
    %475 = vector.shape_cast %474 : vector<1x2x16xf32> to vector<2x16xf32>
    %cst_124 = arith.constant dense<0.000000e+00> : vector<2x128xf32>
    %476 = tpu.matmul %469, %3, %cst_124 {dimension_numbers = #tpu.dot_dimension_numbers<[1], [0], [0], [1], [0, 0, 1, 1], [], []>} : vector<2x32xf32>, vector<32x128xf32>, vector<2x128xf32> -> vector<2x128xf32>
    %477 = arith.addf %476, %18 : vector<2x128xf32>
    %478 = vector.extract_strided_slice %477 {offsets = [0, 96], sizes = [2, 32], strides = [1, 1]} : vector<2x128xf32> to vector<2x32xf32>
    %479 = vector.shape_cast %478 : vector<2x32xf32> to vector<2x1x32xf32>
    %480 = vector.broadcast %479 : vector<2x1x32xf32> to vector<2x8x32xf32>
    %481 = arith.addf %293, %480 : vector<2x8x32xf32>
    %482 = math.tanh %481 : vector<2x8x32xf32>
    %483 = vector.broadcast %20 : vector<1x1x32xf32> to vector<2x8x32xf32>
    %484 = arith.mulf %482, %483 : vector<2x8x32xf32>
    %cst_125 = arith.constant dense<0.000000e+00> : vector<2x8xf32>
    %485 = vector.multi_reduction <add>, %484, %cst_125 [2] : vector<2x8x32xf32> to vector<2x8xf32>
    %486 = arith.addf %485, %24 : vector<2x8xf32>
    %cst_126 = arith.constant dense<0xFF800000> : vector<2xf32>
    %487 = vector.multi_reduction <maximumf>, %486, %cst_126 [1] : vector<2x8xf32> to vector<2xf32>
    %488 = vector.shape_cast %487 : vector<2xf32> to vector<2x1xf32>
    %489 = vector.broadcast %488 : vector<2x1xf32> to vector<2x8xf32>
    %490 = arith.subf %486, %489 : vector<2x8xf32>
    %491 = math.exp %490 : vector<2x8xf32>
    %cst_127 = arith.constant dense<0.000000e+00> : vector<2xf32>
    %492 = vector.multi_reduction <add>, %491, %cst_127 [1] : vector<2x8xf32> to vector<2xf32>
    %493 = vector.shape_cast %492 : vector<2xf32> to vector<2x1xf32>
    %494 = vector.broadcast %493 : vector<2x1xf32> to vector<2x8xf32>
    %495 = arith.divf %491, %494 : vector<2x8xf32>
    %496 = vector.shape_cast %495 : vector<2x8xf32> to vector<2x8x1xf32>
    %497 = vector.broadcast %496 : vector<2x8x1xf32> to vector<2x8x32xf32>
    %498 = arith.mulf %497, %290 : vector<2x8x32xf32>
    %cst_128 = arith.constant dense<0.000000e+00> : vector<2x32xf32>
    %499 = vector.multi_reduction <add>, %498, %cst_128 [1] : vector<2x8x32xf32> to vector<2x32xf32>
    %cst_129 = arith.constant dense<0.000000e+00> : vector<2x128xf32>
    %500 = tpu.matmul %475, %4, %cst_129 {dimension_numbers = #tpu.dot_dimension_numbers<[1], [0], [0], [1], [0, 0, 1, 1], [], []>} : vector<2x16xf32>, vector<16x128xf32>, vector<2x128xf32> -> vector<2x128xf32>
    %cst_130 = arith.constant dense<0.000000e+00> : vector<2x128xf32>
    %501 = tpu.matmul %499, %5, %cst_130 {dimension_numbers = #tpu.dot_dimension_numbers<[1], [0], [0], [1], [0, 0, 1, 1], [], []>} : vector<2x32xf32>, vector<32x128xf32>, vector<2x128xf32> -> vector<2x128xf32>
    %502 = arith.addf %500, %501 : vector<2x128xf32>
    %503 = arith.addf %502, %15 : vector<2x128xf32>
    %504 = vector.extract_strided_slice %503 {offsets = [0, 0], sizes = [2, 32], strides = [1, 1]} : vector<2x128xf32> to vector<2x32xf32>
    %505 = vector.extract_strided_slice %477 {offsets = [0, 0], sizes = [2, 32], strides = [1, 1]} : vector<2x128xf32> to vector<2x32xf32>
    %506 = arith.addf %504, %505 : vector<2x32xf32>
    %507 = arith.negf %506 : vector<2x32xf32>
    %508 = math.exp %507 : vector<2x32xf32>
    %cst_131 = arith.constant 1.000000e+00 : f32
    %509 = vector.broadcast %cst_131 : f32 to vector<2x32xf32>
    %510 = arith.addf %509, %508 : vector<2x32xf32>
    %511 = arith.divf %509, %510 : vector<2x32xf32>
    %512 = vector.extract_strided_slice %503 {offsets = [0, 32], sizes = [2, 32], strides = [1, 1]} : vector<2x128xf32> to vector<2x32xf32>
    %513 = vector.extract_strided_slice %477 {offsets = [0, 32], sizes = [2, 32], strides = [1, 1]} : vector<2x128xf32> to vector<2x32xf32>
    %514 = arith.addf %512, %513 : vector<2x32xf32>
    %515 = arith.negf %514 : vector<2x32xf32>
    %516 = math.exp %515 : vector<2x32xf32>
    %cst_132 = arith.constant 1.000000e+00 : f32
    %517 = vector.broadcast %cst_132 : f32 to vector<2x32xf32>
    %518 = arith.addf %517, %516 : vector<2x32xf32>
    %519 = arith.divf %517, %518 : vector<2x32xf32>
    %520 = vector.extract_strided_slice %503 {offsets = [0, 64], sizes = [2, 32], strides = [1, 1]} : vector<2x128xf32> to vector<2x32xf32>
    %521 = vector.extract_strided_slice %477 {offsets = [0, 64], sizes = [2, 32], strides = [1, 1]} : vector<2x128xf32> to vector<2x32xf32>
    %522 = arith.mulf %511, %521 : vector<2x32xf32>
    %523 = arith.addf %520, %522 : vector<2x32xf32>
    %524 = math.tanh %523 : vector<2x32xf32>
    %cst_133 = arith.constant 1.000000e+00 : f32
    %525 = vector.broadcast %cst_133 : f32 to vector<2x32xf32>
    %526 = arith.subf %525, %519 : vector<2x32xf32>
    %527 = arith.mulf %526, %524 : vector<2x32xf32>
    %528 = arith.mulf %519, %469 : vector<2x32xf32>
    %529 = arith.addf %527, %528 : vector<2x32xf32>
    %cst_134 = arith.constant dense<0.000000e+00> : vector<2x128xf32>
    %530 = tpu.matmul %529, %6, %cst_134 {dimension_numbers = #tpu.dot_dimension_numbers<[1], [0], [0], [1], [0, 0, 1, 1], [], []>} : vector<2x32xf32>, vector<32x128xf32>, vector<2x128xf32> -> vector<2x128xf32>
    %531 = arith.addf %503, %530 : vector<2x128xf32>
    %532 = arith.addf %531, %23 : vector<2x128xf32>
    %533 = vector.extract_strided_slice %532 {offsets = [0, 96], sizes = [2, 32], strides = [1, 1]} : vector<2x128xf32> to vector<2x32xf32>
    %c4_135 = arith.constant 4 : index
    %c0_136 = arith.constant 0 : index
    %c0_137 = arith.constant 0 : index
    %534 = vector.load %arg1[%c4_135, %c0_136, %c0_137] : memref<5x2x16xf32, #tpu.memory_space<vmem>>, vector<1x2x16xf32>
    %535 = vector.shape_cast %534 : vector<1x2x16xf32> to vector<2x16xf32>
    %cst_138 = arith.constant dense<0.000000e+00> : vector<2x128xf32>
    %536 = tpu.matmul %529, %3, %cst_138 {dimension_numbers = #tpu.dot_dimension_numbers<[1], [0], [0], [1], [0, 0, 1, 1], [], []>} : vector<2x32xf32>, vector<32x128xf32>, vector<2x128xf32> -> vector<2x128xf32>
    %537 = arith.addf %536, %18 : vector<2x128xf32>
    %538 = vector.extract_strided_slice %537 {offsets = [0, 96], sizes = [2, 32], strides = [1, 1]} : vector<2x128xf32> to vector<2x32xf32>
    %539 = vector.shape_cast %538 : vector<2x32xf32> to vector<2x1x32xf32>
    %540 = vector.broadcast %539 : vector<2x1x32xf32> to vector<2x8x32xf32>
    %541 = arith.addf %293, %540 : vector<2x8x32xf32>
    %542 = math.tanh %541 : vector<2x8x32xf32>
    %543 = vector.broadcast %20 : vector<1x1x32xf32> to vector<2x8x32xf32>
    %544 = arith.mulf %542, %543 : vector<2x8x32xf32>
    %cst_139 = arith.constant dense<0.000000e+00> : vector<2x8xf32>
    %545 = vector.multi_reduction <add>, %544, %cst_139 [2] : vector<2x8x32xf32> to vector<2x8xf32>
    %546 = arith.addf %545, %24 : vector<2x8xf32>
    %cst_140 = arith.constant dense<0xFF800000> : vector<2xf32>
    %547 = vector.multi_reduction <maximumf>, %546, %cst_140 [1] : vector<2x8xf32> to vector<2xf32>
    %548 = vector.shape_cast %547 : vector<2xf32> to vector<2x1xf32>
    %549 = vector.broadcast %548 : vector<2x1xf32> to vector<2x8xf32>
    %550 = arith.subf %546, %549 : vector<2x8xf32>
    %551 = math.exp %550 : vector<2x8xf32>
    %cst_141 = arith.constant dense<0.000000e+00> : vector<2xf32>
    %552 = vector.multi_reduction <add>, %551, %cst_141 [1] : vector<2x8xf32> to vector<2xf32>
    %553 = vector.shape_cast %552 : vector<2xf32> to vector<2x1xf32>
    %554 = vector.broadcast %553 : vector<2x1xf32> to vector<2x8xf32>
    %555 = arith.divf %551, %554 : vector<2x8xf32>
    %556 = vector.shape_cast %555 : vector<2x8xf32> to vector<2x8x1xf32>
    %557 = vector.broadcast %556 : vector<2x8x1xf32> to vector<2x8x32xf32>
    %558 = arith.mulf %557, %290 : vector<2x8x32xf32>
    %cst_142 = arith.constant dense<0.000000e+00> : vector<2x32xf32>
    %559 = vector.multi_reduction <add>, %558, %cst_142 [1] : vector<2x8x32xf32> to vector<2x32xf32>
    %cst_143 = arith.constant dense<0.000000e+00> : vector<2x128xf32>
    %560 = tpu.matmul %535, %4, %cst_143 {dimension_numbers = #tpu.dot_dimension_numbers<[1], [0], [0], [1], [0, 0, 1, 1], [], []>} : vector<2x16xf32>, vector<16x128xf32>, vector<2x128xf32> -> vector<2x128xf32>
    %cst_144 = arith.constant dense<0.000000e+00> : vector<2x128xf32>
    %561 = tpu.matmul %559, %5, %cst_144 {dimension_numbers = #tpu.dot_dimension_numbers<[1], [0], [0], [1], [0, 0, 1, 1], [], []>} : vector<2x32xf32>, vector<32x128xf32>, vector<2x128xf32> -> vector<2x128xf32>
    %562 = arith.addf %560, %561 : vector<2x128xf32>
    %563 = arith.addf %562, %15 : vector<2x128xf32>
    %564 = vector.extract_strided_slice %563 {offsets = [0, 0], sizes = [2, 32], strides = [1, 1]} : vector<2x128xf32> to vector<2x32xf32>
    %565 = vector.extract_strided_slice %537 {offsets = [0, 0], sizes = [2, 32], strides = [1, 1]} : vector<2x128xf32> to vector<2x32xf32>
    %566 = arith.addf %564, %565 : vector<2x32xf32>
    %567 = arith.negf %566 : vector<2x32xf32>
    %568 = math.exp %567 : vector<2x32xf32>
    %cst_145 = arith.constant 1.000000e+00 : f32
    %569 = vector.broadcast %cst_145 : f32 to vector<2x32xf32>
    %570 = arith.addf %569, %568 : vector<2x32xf32>
    %571 = arith.divf %569, %570 : vector<2x32xf32>
    %572 = vector.extract_strided_slice %563 {offsets = [0, 32], sizes = [2, 32], strides = [1, 1]} : vector<2x128xf32> to vector<2x32xf32>
    %573 = vector.extract_strided_slice %537 {offsets = [0, 32], sizes = [2, 32], strides = [1, 1]} : vector<2x128xf32> to vector<2x32xf32>
    %574 = arith.addf %572, %573 : vector<2x32xf32>
    %575 = arith.negf %574 : vector<2x32xf32>
    %576 = math.exp %575 : vector<2x32xf32>
    %cst_146 = arith.constant 1.000000e+00 : f32
    %577 = vector.broadcast %cst_146 : f32 to vector<2x32xf32>
    %578 = arith.addf %577, %576 : vector<2x32xf32>
    %579 = arith.divf %577, %578 : vector<2x32xf32>
    %580 = vector.extract_strided_slice %563 {offsets = [0, 64], sizes = [2, 32], strides = [1, 1]} : vector<2x128xf32> to vector<2x32xf32>
    %581 = vector.extract_strided_slice %537 {offsets = [0, 64], sizes = [2, 32], strides = [1, 1]} : vector<2x128xf32> to vector<2x32xf32>
    %582 = arith.mulf %571, %581 : vector<2x32xf32>
    %583 = arith.addf %580, %582 : vector<2x32xf32>
    %584 = math.tanh %583 : vector<2x32xf32>
    %cst_147 = arith.constant 1.000000e+00 : f32
    %585 = vector.broadcast %cst_147 : f32 to vector<2x32xf32>
    %586 = arith.subf %585, %579 : vector<2x32xf32>
    %587 = arith.mulf %586, %584 : vector<2x32xf32>
    %588 = arith.mulf %579, %529 : vector<2x32xf32>
    %589 = arith.addf %587, %588 : vector<2x32xf32>
    %cst_148 = arith.constant dense<0.000000e+00> : vector<2x128xf32>
    %590 = tpu.matmul %589, %6, %cst_148 {dimension_numbers = #tpu.dot_dimension_numbers<[1], [0], [0], [1], [0, 0, 1, 1], [], []>} : vector<2x32xf32>, vector<32x128xf32>, vector<2x128xf32> -> vector<2x128xf32>
    %591 = arith.addf %563, %590 : vector<2x128xf32>
    %592 = arith.addf %591, %23 : vector<2x128xf32>
    %593 = vector.extract_strided_slice %592 {offsets = [0, 96], sizes = [2, 32], strides = [1, 1]} : vector<2x128xf32> to vector<2x32xf32>
    %cst_149 = arith.constant 0.000000e+00 : f32
    %594 = vector.broadcast %cst_149 : f32 to vector<1x2x32xf32>
    %595 = vector.shape_cast %353 : vector<2x32xf32> to vector<1x2x32xf32>
    %596 = vector.shape_cast %413 : vector<2x32xf32> to vector<1x2x32xf32>
    %597 = vector.shape_cast %473 : vector<2x32xf32> to vector<1x2x32xf32>
    %598 = vector.shape_cast %533 : vector<2x32xf32> to vector<1x2x32xf32>
    %599 = vector.shape_cast %593 : vector<2x32xf32> to vector<1x2x32xf32>
    %600 = tpu.concatenate %595, %596, %597, %598, %599 in 0 : vector<1x2x32xf32>, vector<1x2x32xf32>, vector<1x2x32xf32>, vector<1x2x32xf32>, vector<1x2x32xf32> -> vector<5x2x32xf32>
    %601 = tpu.concatenate %594, %600 in 0 : vector<1x2x32xf32>, vector<5x2x32xf32> -> vector<6x2x32xf32>
    %c0_150 = arith.constant 0 : index
    %c0_151 = arith.constant 0 : index
    %c0_152 = arith.constant 0 : index
    %602 = vector.load %arg5[%c0_150, %c0_151, %c0_152] : memref<6x2x32xf32, #tpu.memory_space<vmem>>, vector<6x2x32xf32>
    tpu.vector_store %arg5[%c0_150, %c0_151, %c0_152], %601 {strides = array<i32>} : memref<6x2x32xf32, #tpu.memory_space<vmem>>, vector<6x2x32xf32>,
    %603 = vector.shape_cast %315 : vector<2x8xf32> to vector<1x2x8xf32>
    %604 = vector.shape_cast %375 : vector<2x8xf32> to vector<1x2x8xf32>
    %605 = vector.shape_cast %435 : vector<2x8xf32> to vector<1x2x8xf32>
    %606 = vector.shape_cast %495 : vector<2x8xf32> to vector<1x2x8xf32>
    %607 = vector.shape_cast %555 : vector<2x8xf32> to vector<1x2x8xf32>
    %608 = tpu.concatenate %603, %604, %605, %606, %607 in 0 : vector<1x2x8xf32>, vector<1x2x8xf32>, vector<1x2x8xf32>, vector<1x2x8xf32>, vector<1x2x8xf32> -> vector<5x2x8xf32>
    %c0_153 = arith.constant 0 : index
    %c0_154 = arith.constant 0 : index
    %c0_155 = arith.constant 0 : index
    %609 = vector.load %arg6[%c0_153, %c0_154, %c0_155] : memref<5x2x8xf32, #tpu.memory_space<vmem>>, vector<5x2x8xf32>
    tpu.vector_store %arg6[%c0_153, %c0_154, %c0_155], %608 {strides = array<i32>} : memref<5x2x8xf32, #tpu.memory_space<vmem>>, vector<5x2x8xf32>,
    return
  }
}

</mosaic_0001>

<llo_original>
// kernel: _lambda_.1
$region0: #{_lambda_.1}
  #allocation0 [shape = 'u32[]', space=smem, size = 0x4, offset = 0x4, fixed_abs, tag = 'smem constant byte address 0x4 - core index']
  #allocation1 [shape = 'u32[72,128]{1,0:T(1,128)}', space=vmem, size = 0x9000, scoped, tag = 'internal scratch']
  %s0 = inlined_call_operand.vmem [shape: f32[8,2,16], index: 0, kind: input, shape index: {}]
  %s1 = inlined_call_operand.vmem [shape: f32[5,2,16], index: 1, kind: input, shape index: {}]
  %s2 = inlined_call_operand.vmem [shape: f32[2,8], index: 2, kind: input, shape index: {}]
  %s3 = inlined_call_operand.vmem [shape: f32[192,128], index: 3, kind: input, shape index: {}]
  %s4 = inlined_call_operand.vmem [shape: f32[8,128], index: 4, kind: input, shape index: {}]
  %s5 = inlined_call_operand.hbm [shape: f32[6,2,32], index: 5, kind: output, shape index: {0}]
  %s6 = inlined_call_operand.hbm [shape: f32[5,2,8], index: 6, kind: output, shape index: {1}]
  %7 = xla_tuple %s5, %s6
  %s8 = sld [smem:[#allocation0]]
  $region38: #{_lambda_.1} parent=0
    _
  %s10 = ssub.s32 1, %s8
  %s11 = scalar_select 0, %s10, %s8
  $region1: #{_lambda_.1} parent=0
    #allocation2 [shape = 'u8[6144]{0}', space=vmem, size = 0x1800, scoped, tag = 'output window, operand 0, single buffered']
    #allocation3 [shape = 's32[1]{0}', space=sflag, size = 0x4, scoped, tag = 'scoped memory for _lambda_.1']
    #allocation4 [shape = 'u8[5120]{0}', space=vmem, size = 0x1400, scoped, tag = 'output window, operand 1, single buffered']
    #allocation5 [shape = 's32[1]{0}', space=sflag, size = 0x4, scoped, tag = 'scoped memory for _lambda_.1']
    %12 = vsyncpa [#allocation3], 0
    %13 = vsyncpa [#allocation5], 0
    // Predicated region
    $region2: #{_lambda_.1} parent=1 // pred_check
      _
    $region3: #{_lambda_.1} parent=1 // pred_check_branch
      %15 = sbr.rel (0) target = $region5
    $region4: #{_lambda_.1} parent=1 // pred_region
      _
    $region5: #{_lambda_.1} parent=1 // pred_fallthru
      _
    // Predicated region
    $region6: #{_lambda_.1} parent=1 // pred_check
      _
    $region7: #{_lambda_.1} parent=1 // pred_check_branch
      %17 = sbr.rel (0) target = $region9
    $region8: #{_lambda_.1} parent=1 // pred_region
      _
    $region9: #{_lambda_.1} parent=1 // pred_fallthru
      _
    // Predicated region
    $region10: #{_lambda_.1} parent=1 // pred_check
      _
    $region11: #{_lambda_.1} parent=1 // pred_check_branch
      %19 = sbr.rel (0) target = $region13
    $region12: #{_lambda_.1} parent=1 // pred_region
      _
    $region13: #{_lambda_.1} parent=1 // pred_fallthru
      _
    // Predicated region
    $region14: #{_lambda_.1} parent=1 // pred_check
      _
    $region15: #{_lambda_.1} parent=1 // pred_check_branch
      %21 = sbr.rel (0) target = $region17
    $region16: #{_lambda_.1} parent=1 // pred_region
      _
    $region17: #{_lambda_.1} parent=1 // pred_fallthru
      _
    // Predicated region
    $region18: #{_lambda_.1} parent=1 // pred_check
      _
    $region19: #{_lambda_.1} parent=1 // pred_check_branch
      %23 = sbr.rel (0) target = $region21
    $region20: #{_lambda_.1} parent=1 // pred_region
      _
    $region21: #{_lambda_.1} parent=1 // pred_fallthru
      _
    %v24 = vld [vmem:[%s3] sm:$0xff]
    %v25 = vld [vmem:[%s3 + $0x8] sm:$0xff]
    %v26 = vld [vmem:[%s3 + $0x10] sm:$0xff]
    %v27 = vld [vmem:[%s3 + $0x18] sm:$0xff]
    %v28 = vld [vmem:[%s3 + $0x20] sm:$0xff]
    %v29 = vld [vmem:[%s3 + $0x28] sm:$0xff]
    %v30 = vld [vmem:[%s3 + $0x30] sm:$0xff]
    %v31 = vld [vmem:[%s3 + $0x38] sm:$0xff]
    %v32 = vld [vmem:[%s3 + $0x40] sm:$0xff]
    %v33 = vld [vmem:[%s3 + $0x48] sm:$0xff]
    %v34 = vld [vmem:[%s3 + $0x50] sm:$0xff]
    %v35 = vld [vmem:[%s3 + $0x58] sm:$0xff]
    %v36 = vld [vmem:[%s3 + $0x60] sm:$0xff]
    %v37 = vld [vmem:[%s3 + $0x68] sm:$0xff]
    %v38 = vld [vmem:[%s3 + $0x70] sm:$0xff]
    %v39 = vld [vmem:[%s3 + $0x78] sm:$0xff]
    %v40 = vld [vmem:[%s3 + $0x80] sm:$0xff]
    %v41 = vld [vmem:[%s3 + $0x88] sm:$0xff]
    %v42 = vld [vmem:[%s3 + $0x90] sm:$0xff]
    %v43 = vld [vmem:[%s3 + $0x98] sm:$0xff]
    %v44 = vld [vmem:[%s3 + $0xa0] sm:$0xff]
    %v45 = vld [vmem:[%s3 + $0xa8] sm:$0xff]
    %v46 = vld [vmem:[%s3 + $0xb0] sm:$0xff]
    %v47 = vld [vmem:[%s3 + $0xb8] sm:$0xff]
    %v48 = vld [vmem:[%s4] sm:$0x1]
    %v49 = vperm.slane %v48, 0
    %v50 = vld [vmem:[%s4 + $0x1] sm:$0x1]
    %v51 = vperm.slane %v50, 0
    %v52 = vld [vmem:[%s4 + $0x2] sm:$0x1]
    %v53 = vperm.slane %v52, 0
    %v54 = vld [vmem:[%s4 + $0x3] sm:$0x1]
    %v55 = vperm.slane %v54, 0
    %v56 = vld [vmem:[%s4 + $0x4] sm:$0x1]
    %v57 = vld [vmem:[%s4 + $0x5] sm:$0x1]
    %v58 = vperm.slane %v57, 0
    %v59 = vld [vmem:[%s2] sm:$0x3]
    %v60 = vld [vmem:[%s0] sm:$0x3]
    %vm61 = vcmask 130048
    %v63 = vsel %vm61, %v60, 0
    %65 = vmatpush.msra.mxu0 0.0
    %66 = vmatpush.msra.mxu0 0.0
    %67 = vmatpush.msra.mxu0 0.0
    %68 = vmatpush.msra.mxu0 0.0
    %69 = vmatpush.msra.mxu0 0.0
    %70 = vmatpush.msra.mxu0 0.0
    %71 = vmatpush.msra.mxu0 0.0
    %72 = vmatpush.msra.mxu0 0.0
    %73 = vmatpush.msra.mxu0 0.0
    %74 = vmatpush.msra.mxu0 0.0
    %75 = vmatpush.msra.mxu0 0.0
    %76 = vmatpush.msra.mxu0 0.0
    %77 = vmatpush.msra.mxu0 0.0
    %78 = vmatpush.msra.mxu0 0.0
    %79 = vmatpush.msra.mxu0 %v25
    %80 = vmatpush.msra.mxu0 %v24
    %81 = vmatmul.f32.gmra.mxu0 %v63
    %v82 = vpop.f32.mrf.mxu0
    %v83 = vadd.f32 %v49, %v82
    %84 = vdwg.mxu0
    %vm85 = vcmask 261120
    %v87 = vsel %vm85, 0.0, 0
    %89 = vmatpush.msra.mxu0 0.0
    %90 = vmatpush.msra.mxu0 0.0
    %91 = vmatpush.msra.mxu0 0.0
    %92 = vmatpush.msra.mxu0 0.0
    %93 = vmatpush.msra.mxu0 0.0
    %94 = vmatpush.msra.mxu0 0.0
    %95 = vmatpush.msra.mxu0 0.0
    %96 = vmatpush.msra.mxu0 0.0
    %97 = vmatpush.msra.mxu0 0.0
    %98 = vmatpush.msra.mxu0 0.0
    %99 = vmatpush.msra.mxu0 0.0
    %100 = vmatpush.msra.mxu0 0.0
    %101 = vmatpush.msra.mxu0 %v29
    %102 = vmatpush.msra.mxu0 %v28
    %103 = vmatpush.msra.mxu0 %v27
    %104 = vmatpush.msra.mxu0 %v26
    %105 = vmatmul.f32.gmra.mxu0 %v87
    %v106 = vpop.f32.mrf.mxu0
    %v107 = vadd.f32 %v51, %v106
    %108 = vdwg.mxu0
    %v109 = vadd.f32 %v83, %v107
    %v110 = vxor.u32 %v109, 2147483648
    %v111 = vmul.f32 %v110, 1.442695
    %v112 = vpow.pop %v111
    %v113 = vadd.f32 %v112, 1.0
    %v114 = vrcp.pop %v113
    %v115 = vmul.f32 %v113, %v114
    %v116 = vsub.f32 1.0, %v115
    %v117 = vmul.f32 %v114, %v116
    %v118 = vadd.f32 %v114, %v117
    %vm119 = vweird.f32 %v113
    %vm120 = vweird.f32 %v114
    %vm121 = vmor %vm119, %vm120
    %v122 = vsel %vm121, %v114, %v118
    %v123 = vand.u32 2147483647, %v113
    %vm124 = vcmp.eq.f32.partialorder %v123, 8.507059e+37
    %v125 = vand.u32 %v113, 2147483648
    %v126 = vor.u32 1.1754944e-38, %v125
    %v127 = vsel %vm124, %v126, %v122
    %v128 = vmul.f32 1.0, %v127
    %130 = vrot.lane.b32.xlu0 %v107, 64
    %v131 = vpop.permute.xlu0 %130
    %v133 = vmul.f32 %v128, %v131
    %135 = vrot.lane.b32.xlu0 %v133, 64
    %v136 = vpop.permute.xlu0 %135
    %v138 = vadd.f32 %v83, %v136
    %v139 = vtanh.pop %v138
    %v140 = vsub.f32 1.0, %v128
    %142 = vrot.lane.b32.xlu0 %v139, 96
    %v143 = vpop.permute.xlu0 %142
    %v145 = vmul.f32 %v140, %v143
    %v146 = vmul.f32 %v128, 0.0
    %v147 = vadd.f32 %v145, %v146
    %s148 = scalar_lea.vmem %s0, 2
    %v149 = vld [vmem:[%s148] sm:$0x3]
    %v151 = vsel %vm61, %v149, 0
    %153 = vmatpush.msra.mxu0 0.0
    %154 = vmatpush.msra.mxu0 0.0
    %155 = vmatpush.msra.mxu0 0.0
    %156 = vmatpush.msra.mxu0 0.0
    %157 = vmatpush.msra.mxu0 0.0
    %158 = vmatpush.msra.mxu0 0.0
    %159 = vmatpush.msra.mxu0 0.0
    %160 = vmatpush.msra.mxu0 0.0
    %161 = vmatpush.msra.mxu0 0.0
    %162 = vmatpush.msra.mxu0 0.0
    %163 = vmatpush.msra.mxu0 0.0
    %164 = vmatpush.msra.mxu0 0.0
    %165 = vmatpush.msra.mxu0 0.0
    %166 = vmatpush.msra.mxu0 0.0
    %167 = vmatpush.msra.mxu0 %v25
    %168 = vmatpush.msra.mxu0 %v24
    %169 = vmatmul.f32.gmra.mxu0 %v151
    %v170 = vpop.f32.mrf.mxu0
    %v171 = vadd.f32 %v49, %v170
    %172 = vdwg.mxu0
    %174 = vrot.lane.b32.xlu0 %v147, 96
    %v175 = vpop.permute.xlu0 %174
    %v176 = vsel %vm85, %v175, 0
    %178 = vmatpush.msra.mxu0 0.0
    %179 = vmatpush.msra.mxu0 0.0
    %180 = vmatpush.msra.mxu0 0.0
    %181 = vmatpush.msra.mxu0 0.0
    %182 = vmatpush.msra.mxu0 0.0
    %183 = vmatpush.msra.mxu0 0.0
    %184 = vmatpush.msra.mxu0 0.0
    %185 = vmatpush.msra.mxu0 0.0
    %186 = vmatpush.msra.mxu0 0.0
    %187 = vmatpush.msra.mxu0 0.0
    %188 = vmatpush.msra.mxu0 0.0
    %189 = vmatpush.msra.mxu0 0.0
    %190 = vmatpush.msra.mxu0 %v29
    %191 = vmatpush.msra.mxu0 %v28
    %192 = vmatpush.msra.mxu0 %v27
    %193 = vmatpush.msra.mxu0 %v26
    %194 = vmatmul.f32.gmra.mxu0 %v176
    %v195 = vpop.f32.mrf.mxu0
    %v196 = vadd.f32 %v51, %v195
    %197 = vdwg.mxu0
    %v198 = vadd.f32 %v171, %v196
    %v199 = vxor.u32 %v198, 2147483648
    %v200 = vmul.f32 %v199, 1.442695
    %v201 = vpow.pop %v200
    %v202 = vadd.f32 %v201, 1.0
    %v203 = vrcp.pop %v202
    %v204 = vmul.f32 %v202, %v203
    %v205 = vsub.f32 1.0, %v204
    %v206 = vmul.f32 %v203, %v205
    %v207 = vadd.f32 %v203, %v206
    %vm208 = vweird.f32 %v202
    %vm209 = vweird.f32 %v203
    %vm210 = vmor %vm208, %vm209
    %v211 = vsel %vm210, %v203, %v207
    %v212 = vand.u32 2147483647, %v202
    %vm213 = vcmp.eq.f32.partialorder %v212, 8.507059e+37
    %v214 = vand.u32 %v202, 2147483648
    %v215 = vor.u32 1.1754944e-38, %v214
    %v216 = vsel %vm213, %v215, %v211
    %v217 = vmul.f32 1.0, %v216
    %219 = vrot.lane.b32.xlu0 %v196, 64
    %v220 = vpop.permute.xlu0 %219
    %v222 = vmul.f32 %v217, %v220
    %224 = vrot.lane.b32.xlu0 %v222, 64
    %v225 = vpop.permute.xlu0 %224
    %v227 = vadd.f32 %v171, %v225
    %v228 = vtanh.pop %v227
    %v229 = vsub.f32 1.0, %v217
    %231 = vrot.lane.b32.xlu0 %v228, 96
    %v232 = vpop.permute.xlu0 %231
    %v234 = vmul.f32 %v229, %v232
    %v235 = vmul.f32 %v217, %v147
    %v236 = vadd.f32 %v234, %v235
    %s237 = scalar_lea.vmem %s0, 4
    %v238 = vld [vmem:[%s237] sm:$0x3]
    %v240 = vsel %vm61, %v238, 0
    %242 = vmatpush.msra.mxu0 0.0
    %243 = vmatpush.msra.mxu0 0.0
    %244 = vmatpush.msra.mxu0 0.0
    %245 = vmatpush.msra.mxu0 0.0
    %246 = vmatpush.msra.mxu0 0.0
    %247 = vmatpush.msra.mxu0 0.0
    %248 = vmatpush.msra.mxu0 0.0
    %249 = vmatpush.msra.mxu0 0.0
    %250 = vmatpush.msra.mxu0 0.0
    %251 = vmatpush.msra.mxu0 0.0
    %252 = vmatpush.msra.mxu0 0.0
    %253 = vmatpush.msra.mxu0 0.0
    %254 = vmatpush.msra.mxu0 0.0
    %255 = vmatpush.msra.mxu0 0.0
    %256 = vmatpush.msra.mxu0 %v25
    %257 = vmatpush.msra.mxu0 %v24
    %258 = vmatmul.f32.gmra.mxu0 %v240
    %v259 = vpop.f32.mrf.mxu0
    %v260 = vadd.f32 %v49, %v259
    %261 = vdwg.mxu0
    %263 = vrot.lane.b32.xlu0 %v236, 96
    %v264 = vpop.permute.xlu0 %263
    %v265 = vsel %vm85, %v264, 0
    %267 = vmatpush.msra.mxu0 0.0
    %268 = vmatpush.msra.mxu0 0.0
    %269 = vmatpush.msra.mxu0 0.0
    %270 = vmatpush.msra.mxu0 0.0
    %271 = vmatpush.msra.mxu0 0.0
    %272 = vmatpush.msra.mxu0 0.0
    %273 = vmatpush.msra.mxu0 0.0
    %274 = vmatpush.msra.mxu0 0.0
    %275 = vmatpush.msra.mxu0 0.0
    %276 = vmatpush.msra.mxu0 0.0
    %277 = vmatpush.msra.mxu0 0.0
    %278 = vmatpush.msra.mxu0 0.0
    %279 = vmatpush.msra.mxu0 %v29
    %280 = vmatpush.msra.mxu0 %v28
    %281 = vmatpush.msra.mxu0 %v27
    %282 = vmatpush.msra.mxu0 %v26
    %283 = vmatmul.f32.gmra.mxu0 %v265
    %v284 = vpop.f32.mrf.mxu0
    %v285 = vadd.f32 %v51, %v284
    %286 = vdwg.mxu0
    %v287 = vadd.f32 %v260, %v285
    %v288 = vxor.u32 %v287, 2147483648
    %v289 = vmul.f32 %v288, 1.442695
    %v290 = vpow.pop %v289
    %v291 = vadd.f32 %v290, 1.0
    %v292 = vrcp.pop %v291
    %v293 = vmul.f32 %v291, %v292
    %v294 = vsub.f32 1.0, %v293
    %v295 = vmul.f32 %v292, %v294
    %v296 = vadd.f32 %v292, %v295
    %vm297 = vweird.f32 %v291
    %vm298 = vweird.f32 %v292
    %vm299 = vmor %vm297, %vm298
    %v300 = vsel %vm299, %v292, %v296
    %v301 = vand.u32 2147483647, %v291
    %vm302 = vcmp.eq.f32.partialorder %v301, 8.507059e+37
    %v303 = vand.u32 %v291, 2147483648
    %v304 = vor.u32 1.1754944e-38, %v303
    %v305 = vsel %vm302, %v304, %v300
    %v306 = vmul.f32 1.0, %v305
    %308 = vrot.lane.b32.xlu0 %v285, 64
    %v309 = vpop.permute.xlu0 %308
    %v311 = vmul.f32 %v306, %v309
    %313 = vrot.lane.b32.xlu0 %v311, 64
    %v314 = vpop.permute.xlu0 %313
    %v316 = vadd.f32 %v260, %v314
    %v317 = vtanh.pop %v316
    %v318 = vsub.f32 1.0, %v306
    %320 = vrot.lane.b32.xlu0 %v317, 96
    %v321 = vpop.permute.xlu0 %320
    %v323 = vmul.f32 %v318, %v321
    %v324 = vmul.f32 %v306, %v236
    %v325 = vadd.f32 %v323, %v324
    %s326 = scalar_lea.vmem %s0, 6
    %v327 = vld [vmem:[%s326] sm:$0x3]
    %v329 = vsel %vm61, %v327, 0
    %331 = vmatpush.msra.mxu0 0.0
    %332 = vmatpush.msra.mxu0 0.0
    %333 = vmatpush.msra.mxu0 0.0
    %334 = vmatpush.msra.mxu0 0.0
    %335 = vmatpush.msra.mxu0 0.0
    %336 = vmatpush.msra.mxu0 0.0
    %337 = vmatpush.msra.mxu0 0.0
    %338 = vmatpush.msra.mxu0 0.0
    %339 = vmatpush.msra.mxu0 0.0
    %340 = vmatpush.msra.mxu0 0.0
    %341 = vmatpush.msra.mxu0 0.0
    %342 = vmatpush.msra.mxu0 0.0
    %343 = vmatpush.msra.mxu0 0.0
    %344 = vmatpush.msra.mxu0 0.0
    %345 = vmatpush.msra.mxu0 %v25
    %346 = vmatpush.msra.mxu0 %v24
    %347 = vmatmul.f32.gmra.mxu0 %v329
    %v348 = vpop.f32.mrf.mxu0
    %v349 = vadd.f32 %v49, %v348
    %350 = vdwg.mxu0
    %352 = vrot.lane.b32.xlu0 %v325, 96
    %v353 = vpop.permute.xlu0 %352
    %v354 = vsel %vm85, %v353, 0
    %356 = vmatpush.msra.mxu0 0.0
    %357 = vmatpush.msra.mxu0 0.0
    %358 = vmatpush.msra.mxu0 0.0
    %359 = vmatpush.msra.mxu0 0.0
    %360 = vmatpush.msra.mxu0 0.0
    %361 = vmatpush.msra.mxu0 0.0
    %362 = vmatpush.msra.mxu0 0.0
    %363 = vmatpush.msra.mxu0 0.0
    %364 = vmatpush.msra.mxu0 0.0
    %365 = vmatpush.msra.mxu0 0.0
    %366 = vmatpush.msra.mxu0 0.0
    %367 = vmatpush.msra.mxu0 0.0
    %368 = vmatpush.msra.mxu0 %v29
    %369 = vmatpush.msra.mxu0 %v28
    %370 = vmatpush.msra.mxu0 %v27
    %371 = vmatpush.msra.mxu0 %v26
    %372 = vmatmul.f32.gmra.mxu0 %v354
    %v373 = vpop.f32.mrf.mxu0
    %v374 = vadd.f32 %v51, %v373
    %375 = vdwg.mxu0
    %v376 = vadd.f32 %v349, %v374
    %v377 = vxor.u32 %v376, 2147483648
    %v378 = vmul.f32 %v377, 1.442695
    %v379 = vpow.pop %v378
    %v380 = vadd.f32 %v379, 1.0
    %v381 = vrcp.pop %v380
    %v382 = vmul.f32 %v380, %v381
    %v383 = vsub.f32 1.0, %v382
    %v384 = vmul.f32 %v381, %v383
    %v385 = vadd.f32 %v381, %v384
    %vm386 = vweird.f32 %v380
    %vm387 = vweird.f32 %v381
    %vm388 = vmor %vm386, %vm387
    %v389 = vsel %vm388, %v381, %v385
    %v390 = vand.u32 2147483647, %v380
    %vm391 = vcmp.eq.f32.partialorder %v390, 8.507059e+37
    %v392 = vand.u32 %v380, 2147483648
    %v393 = vor.u32 1.1754944e-38, %v392
    %v394 = vsel %vm391, %v393, %v389
    %v395 = vmul.f32 1.0, %v394
    %397 = vrot.lane.b32.xlu0 %v374, 64
    %v398 = vpop.permute.xlu0 %397
    %v400 = vmul.f32 %v395, %v398
    %402 = vrot.lane.b32.xlu0 %v400, 64
    %v403 = vpop.permute.xlu0 %402
    %v405 = vadd.f32 %v349, %v403
    %v406 = vtanh.pop %v405
    %v407 = vsub.f32 1.0, %v395
    %409 = vrot.lane.b32.xlu0 %v406, 96
    %v410 = vpop.permute.xlu0 %409
    %v412 = vmul.f32 %v407, %v410
    %v413 = vmul.f32 %v395, %v325
    %v414 = vadd.f32 %v412, %v413
    %s415 = scalar_lea.vmem %s0, 8
    %v416 = vld [vmem:[%s415] sm:$0x3]
    %v418 = vsel %vm61, %v416, 0
    %420 = vmatpush.msra.mxu0 0.0
    %421 = vmatpush.msra.mxu0 0.0
    %422 = vmatpush.msra.mxu0 0.0
    %423 = vmatpush.msra.mxu0 0.0
    %424 = vmatpush.msra.mxu0 0.0
    %425 = vmatpush.msra.mxu0 0.0
    %426 = vmatpush.msra.mxu0 0.0
    %427 = vmatpush.msra.mxu0 0.0
    %428 = vmatpush.msra.mxu0 0.0
    %429 = vmatpush.msra.mxu0 0.0
    %430 = vmatpush.msra.mxu0 0.0
    %431 = vmatpush.msra.mxu0 0.0
    %432 = vmatpush.msra.mxu0 0.0
    %433 = vmatpush.msra.mxu0 0.0
    %434 = vmatpush.msra.mxu0 %v25
    %435 = vmatpush.msra.mxu0 %v24
    %436 = vmatmul.f32.gmra.mxu0 %v418
    %v437 = vpop.f32.mrf.mxu0
    %v438 = vadd.f32 %v49, %v437
    %439 = vdwg.mxu0
    %441 = vrot.lane.b32.xlu0 %v414, 96
    %v442 = vpop.permute.xlu0 %441
    %v443 = vsel %vm85, %v442, 0
    %445 = vmatpush.msra.mxu0 0.0
    %446 = vmatpush.msra.mxu0 0.0
    %447 = vmatpush.msra.mxu0 0.0
    %448 = vmatpush.msra.mxu0 0.0
    %449 = vmatpush.msra.mxu0 0.0
    %450 = vmatpush.msra.mxu0 0.0
    %451 = vmatpush.msra.mxu0 0.0
    %452 = vmatpush.msra.mxu0 0.0
    %453 = vmatpush.msra.mxu0 0.0
    %454 = vmatpush.msra.mxu0 0.0
    %455 = vmatpush.msra.mxu0 0.0
    %456 = vmatpush.msra.mxu0 0.0
    %457 = vmatpush.msra.mxu0 %v29
    %458 = vmatpush.msra.mxu0 %v28
    %459 = vmatpush.msra.mxu0 %v27
    %460 = vmatpush.msra.mxu0 %v26
    %461 = vmatmul.f32.gmra.mxu0 %v443
    %v462 = vpop.f32.mrf.mxu0
    %v463 = vadd.f32 %v51, %v462
    %464 = vdwg.mxu0
    %v465 = vadd.f32 %v438, %v463
    %v466 = vxor.u32 %v465, 2147483648
    %v467 = vmul.f32 %v466, 1.442695
    %v468 = vpow.pop %v467
    %v469 = vadd.f32 %v468, 1.0
    %v470 = vrcp.pop %v469
    %v471 = vmul.f32 %v469, %v470
    %v472 = vsub.f32 1.0, %v471
    %v473 = vmul.f32 %v470, %v472
    %v474 = vadd.f32 %v470, %v473
    %vm475 = vweird.f32 %v469
    %vm476 = vweird.f32 %v470
    %vm477 = vmor %vm475, %vm476
    %v478 = vsel %vm477, %v470, %v474
    %v479 = vand.u32 2147483647, %v469
    %vm480 = vcmp.eq.f32.partialorder %v479, 8.507059e+37
    %v481 = vand.u32 %v469, 2147483648
    %v482 = vor.u32 1.1754944e-38, %v481
    %v483 = vsel %vm480, %v482, %v478
    %v484 = vmul.f32 1.0, %v483
    %486 = vrot.lane.b32.xlu0 %v463, 64
    %v487 = vpop.permute.xlu0 %486
    %v489 = vmul.f32 %v484, %v487
    %491 = vrot.lane.b32.xlu0 %v489, 64
    %v492 = vpop.permute.xlu0 %491
    %v494 = vadd.f32 %v438, %v492
    %v495 = vtanh.pop %v494
    %v496 = vsub.f32 1.0, %v484
    %498 = vrot.lane.b32.xlu0 %v495, 96
    %v499 = vpop.permute.xlu0 %498
    %v501 = vmul.f32 %v496, %v499
    %v502 = vmul.f32 %v484, %v414
    %v503 = vadd.f32 %v501, %v502
    %s504 = scalar_lea.vmem %s0, 10
    %v505 = vld [vmem:[%s504] sm:$0x3]
    %v507 = vsel %vm61, %v505, 0
    %509 = vmatpush.msra.mxu0 0.0
    %510 = vmatpush.msra.mxu0 0.0
    %511 = vmatpush.msra.mxu0 0.0
    %512 = vmatpush.msra.mxu0 0.0
    %513 = vmatpush.msra.mxu0 0.0
    %514 = vmatpush.msra.mxu0 0.0
    %515 = vmatpush.msra.mxu0 0.0
    %516 = vmatpush.msra.mxu0 0.0
    %517 = vmatpush.msra.mxu0 0.0
    %518 = vmatpush.msra.mxu0 0.0
    %519 = vmatpush.msra.mxu0 0.0
    %520 = vmatpush.msra.mxu0 0.0
    %521 = vmatpush.msra.mxu0 0.0
    %522 = vmatpush.msra.mxu0 0.0
    %523 = vmatpush.msra.mxu0 %v25
    %524 = vmatpush.msra.mxu0 %v24
    %525 = vmatmul.f32.gmra.mxu0 %v507
    %v526 = vpop.f32.mrf.mxu0
    %v527 = vadd.f32 %v49, %v526
    %528 = vdwg.mxu0
    %530 = vrot.lane.b32.xlu0 %v503, 96
    %v531 = vpop.permute.xlu0 %530
    %v532 = vsel %vm85, %v531, 0
    %534 = vmatpush.msra.mxu0 0.0
    %535 = vmatpush.msra.mxu0 0.0
    %536 = vmatpush.msra.mxu0 0.0
    %537 = vmatpush.msra.mxu0 0.0
    %538 = vmatpush.msra.mxu0 0.0
    %539 = vmatpush.msra.mxu0 0.0
    %540 = vmatpush.msra.mxu0 0.0
    %541 = vmatpush.msra.mxu0 0.0
    %542 = vmatpush.msra.mxu0 0.0
    %543 = vmatpush.msra.mxu0 0.0
    %544 = vmatpush.msra.mxu0 0.0
    %545 = vmatpush.msra.mxu0 0.0
    %546 = vmatpush.msra.mxu0 %v29
    %547 = vmatpush.msra.mxu0 %v28
    %548 = vmatpush.msra.mxu0 %v27
    %549 = vmatpush.msra.mxu0 %v26
    %550 = vmatmul.f32.gmra.mxu0 %v532
    %v551 = vpop.f32.mrf.mxu0
    %v552 = vadd.f32 %v51, %v551
    %553 = vdwg.mxu0
    %v554 = vadd.f32 %v527, %v552
    %v555 = vxor.u32 %v554, 2147483648
    %v556 = vmul.f32 %v555, 1.442695
    %v557 = vpow.pop %v556
    %v558 = vadd.f32 %v557, 1.0
    %v559 = vrcp.pop %v558
    %v560 = vmul.f32 %v558, %v559
    %v561 = vsub.f32 1.0, %v560
    %v562 = vmul.f32 %v559, %v561
    %v563 = vadd.f32 %v559, %v562
    %vm564 = vweird.f32 %v558
    %vm565 = vweird.f32 %v559
    %vm566 = vmor %vm564, %vm565
    %v567 = vsel %vm566, %v559, %v563
    %v568 = vand.u32 2147483647, %v558
    %vm569 = vcmp.eq.f32.partialorder %v568, 8.507059e+37
    %v570 = vand.u32 %v558, 2147483648
    %v571 = vor.u32 1.1754944e-38, %v570
    %v572 = vsel %vm569, %v571, %v567
    %v573 = vmul.f32 1.0, %v572
    %575 = vrot.lane.b32.xlu0 %v552, 64
    %v576 = vpop.permute.xlu0 %575
    %v578 = vmul.f32 %v573, %v576
    %580 = vrot.lane.b32.xlu0 %v578, 64
    %v581 = vpop.permute.xlu0 %580
    %v583 = vadd.f32 %v527, %v581
    %v584 = vtanh.pop %v583
    %v585 = vsub.f32 1.0, %v573
    %587 = vrot.lane.b32.xlu0 %v584, 96
    %v588 = vpop.permute.xlu0 %587
    %v590 = vmul.f32 %v585, %v588
    %v591 = vmul.f32 %v573, %v503
    %v592 = vadd.f32 %v590, %v591
    %s593 = scalar_lea.vmem %s0, 12
    %v594 = vld [vmem:[%s593] sm:$0x3]
    %v596 = vsel %vm61, %v594, 0
    %598 = vmatpush.msra.mxu0 0.0
    %599 = vmatpush.msra.mxu0 0.0
    %600 = vmatpush.msra.mxu0 0.0
    %601 = vmatpush.msra.mxu0 0.0
    %602 = vmatpush.msra.mxu0 0.0
    %603 = vmatpush.msra.mxu0 0.0
    %604 = vmatpush.msra.mxu0 0.0
    %605 = vmatpush.msra.mxu0 0.0
    %606 = vmatpush.msra.mxu0 0.0
    %607 = vmatpush.msra.mxu0 0.0
    %608 = vmatpush.msra.mxu0 0.0
    %609 = vmatpush.msra.mxu0 0.0
    %610 = vmatpush.msra.mxu0 0.0
    %611 = vmatpush.msra.mxu0 0.0
    %612 = vmatpush.msra.mxu0 %v25
    %613 = vmatpush.msra.mxu0 %v24
    %614 = vmatmul.f32.gmra.mxu0 %v596
    %v615 = vpop.f32.mrf.mxu0
    %v616 = vadd.f32 %v49, %v615
    %617 = vdwg.mxu0
    %619 = vrot.lane.b32.xlu0 %v592, 96
    %v620 = vpop.permute.xlu0 %619
    %v621 = vsel %vm85, %v620, 0
    %623 = vmatpush.msra.mxu0 0.0
    %624 = vmatpush.msra.mxu0 0.0
    %625 = vmatpush.msra.mxu0 0.0
    %626 = vmatpush.msra.mxu0 0.0
    %627 = vmatpush.msra.mxu0 0.0
    %628 = vmatpush.msra.mxu0 0.0
    %629 = vmatpush.msra.mxu0 0.0
    %630 = vmatpush.msra.mxu0 0.0
    %631 = vmatpush.msra.mxu0 0.0
    %632 = vmatpush.msra.mxu0 0.0
    %633 = vmatpush.msra.mxu0 0.0
    %634 = vmatpush.msra.mxu0 0.0
    %635 = vmatpush.msra.mxu0 %v29
    %636 = vmatpush.msra.mxu0 %v28
    %637 = vmatpush.msra.mxu0 %v27
    %638 = vmatpush.msra.mxu0 %v26
    %639 = vmatmul.f32.gmra.mxu0 %v621
    %v640 = vpop.f32.mrf.mxu0
    %v641 = vadd.f32 %v51, %v640
    %642 = vdwg.mxu0
    %v643 = vadd.f32 %v616, %v641
    %v644 = vxor.u32 %v643, 2147483648
    %v645 = vmul.f32 %v644, 1.442695
    %v646 = vpow.pop %v645
    %v647 = vadd.f32 %v646, 1.0
    %v648 = vrcp.pop %v647
    %v649 = vmul.f32 %v647, %v648
    %v650 = vsub.f32 1.0, %v649
    %v651 = vmul.f32 %v648, %v650
    %v652 = vadd.f32 %v648, %v651
    %vm653 = vweird.f32 %v647
    %vm654 = vweird.f32 %v648
    %vm655 = vmor %vm653, %vm654
    %v656 = vsel %vm655, %v648, %v652
    %v657 = vand.u32 2147483647, %v647
    %vm658 = vcmp.eq.f32.partialorder %v657, 8.507059e+37
    %v659 = vand.u32 %v647, 2147483648
    %v660 = vor.u32 1.1754944e-38, %v659
    %v661 = vsel %vm658, %v660, %v656
    %v662 = vmul.f32 1.0, %v661
    %664 = vrot.lane.b32.xlu0 %v641, 64
    %v665 = vpop.permute.xlu0 %664
    %v667 = vmul.f32 %v662, %v665
    %669 = vrot.lane.b32.xlu0 %v667, 64
    %v670 = vpop.permute.xlu0 %669
    %v672 = vadd.f32 %v616, %v670
    %v673 = vtanh.pop %v672
    %v674 = vsub.f32 1.0, %v662
    %676 = vrot.lane.b32.xlu0 %v673, 96
    %v677 = vpop.permute.xlu0 %676
    %v679 = vmul.f32 %v674, %v677
    %v680 = vmul.f32 %v662, %v592
    %v681 = vadd.f32 %v679, %v680
    %s682 = scalar_lea.vmem %s0, 14
    %v683 = vld [vmem:[%s682] sm:$0x3]
    %v685 = vsel %vm61, %v683, 0
    %687 = vmatpush.msra.mxu0 0.0
    %688 = vmatpush.msra.mxu0 0.0
    %689 = vmatpush.msra.mxu0 0.0
    %690 = vmatpush.msra.mxu0 0.0
    %691 = vmatpush.msra.mxu0 0.0
    %692 = vmatpush.msra.mxu0 0.0
    %693 = vmatpush.msra.mxu0 0.0
    %694 = vmatpush.msra.mxu0 0.0
    %695 = vmatpush.msra.mxu0 0.0
    %696 = vmatpush.msra.mxu0 0.0
    %697 = vmatpush.msra.mxu0 0.0
    %698 = vmatpush.msra.mxu0 0.0
    %699 = vmatpush.msra.mxu0 0.0
    %700 = vmatpush.msra.mxu0 0.0
    %701 = vmatpush.msra.mxu0 %v25
    %702 = vmatpush.msra.mxu0 %v24
    %703 = vmatmul.f32.gmra.mxu0 %v685
    %v704 = vpop.f32.mrf.mxu0
    %v705 = vadd.f32 %v49, %v704
    %706 = vdwg.mxu0
    %708 = vrot.lane.b32.xlu0 %v681, 96
    %v709 = vpop.permute.xlu0 %708
    %v710 = vsel %vm85, %v709, 0
    %712 = vmatpush.msra.mxu0 0.0
    %713 = vmatpush.msra.mxu0 0.0
    %714 = vmatpush.msra.mxu0 0.0
    %715 = vmatpush.msra.mxu0 0.0
    %716 = vmatpush.msra.mxu0 0.0
    %717 = vmatpush.msra.mxu0 0.0
    %718 = vmatpush.msra.mxu0 0.0
    %719 = vmatpush.msra.mxu0 0.0
    %720 = vmatpush.msra.mxu0 0.0
    %721 = vmatpush.msra.mxu0 0.0
    %722 = vmatpush.msra.mxu0 0.0
    %723 = vmatpush.msra.mxu0 0.0
    %724 = vmatpush.msra.mxu0 %v29
    %725 = vmatpush.msra.mxu0 %v28
    %726 = vmatpush.msra.mxu0 %v27
    %727 = vmatpush.msra.mxu0 %v26
    %728 = vmatmul.f32.gmra.mxu0 %v710
    %v729 = vpop.f32.mrf.mxu0
    %v730 = vadd.f32 %v51, %v729
    %731 = vdwg.mxu0
    %v732 = vadd.f32 %v705, %v730
    %v733 = vxor.u32 %v732, 2147483648
    %v734 = vmul.f32 %v733, 1.442695
    %v735 = vpow.pop %v734
    %v736 = vadd.f32 %v735, 1.0
    %v737 = vrcp.pop %v736
    %v738 = vmul.f32 %v736, %v737
    %v739 = vsub.f32 1.0, %v738
    %v740 = vmul.f32 %v737, %v739
    %v741 = vadd.f32 %v737, %v740
    %vm742 = vweird.f32 %v736
    %vm743 = vweird.f32 %v737
    %vm744 = vmor %vm742, %vm743
    %v745 = vsel %vm744, %v737, %v741
    %v746 = vand.u32 2147483647, %v736
    %vm747 = vcmp.eq.f32.partialorder %v746, 8.507059e+37
    %v748 = vand.u32 %v736, 2147483648
    %v749 = vor.u32 1.1754944e-38, %v748
    %v750 = vsel %vm747, %v749, %v745
    %v751 = vmul.f32 1.0, %v750
    %753 = vrot.lane.b32.xlu0 %v730, 64
    %v754 = vpop.permute.xlu0 %753
    %v756 = vmul.f32 %v751, %v754
    %758 = vrot.lane.b32.xlu0 %v756, 64
    %v759 = vpop.permute.xlu0 %758
    %v761 = vadd.f32 %v705, %v759
    %v762 = vtanh.pop %v761
    %v763 = vsub.f32 1.0, %v751
    %765 = vrot.lane.b32.xlu0 %v762, 96
    %v766 = vpop.permute.xlu0 %765
    %v768 = vmul.f32 %v763, %v766
    %v769 = vmul.f32 %v751, %v681
    %v770 = vadd.f32 %v768, %v769
    %v771 = vrot.slane %v147, 1
    %v773 = vrot.slane %v236, 1
    %v774 = vrot.slane %v325, 1
    %v775 = vrot.slane %v414, 1
    %v776 = vrot.slane %v503, 1
    %v777 = vrot.slane %v592, 1
    %v778 = vrot.slane %v681, 1
    %v780 = vrot.slane %v770, 1
    %v781 = vperm.slane %v236, 0
    %v782 = vperm.slane %v773, 0
    %v785 = vperm.slane %v325, 0
    %v786 = vperm.slane %v774, 0
    %v789 = vperm.slane %v414, 0
    %v790 = vperm.slane %v775, 0
    %v793 = vperm.slane %v503, 0
    %v794 = vperm.slane %v776, 0
    %v797 = vperm.slane %v592, 0
    %v798 = vperm.slane %v777, 0
    %v801 = vperm.slane %v681, 0
    %v802 = vperm.slane %v778, 0
    %v805 = vperm.slane %v770, 0
    %v806 = vperm.slane %v780, 0
    %vm809 = vcmask 1040384
    %v810 = vsel %vm809, %v147, %v781
    %v811 = vsel %vm809, %v771, %v782
    %vm812 = vcmask 1041408
    %v813 = vsel %vm812, %v810, %v785
    %v814 = vsel %vm812, %v811, %v786
    %vm815 = vcmask 1042432
    %v816 = vsel %vm815, %v813, %v789
    %v817 = vsel %vm815, %v814, %v790
    %vm818 = vcmask 1043456
    %v819 = vsel %vm818, %v816, %v793
    %v820 = vsel %vm818, %v817, %v794
    %vm821 = vcmask 1044480
    %v822 = vsel %vm821, %v819, %v797
    %v823 = vsel %vm821, %v820, %v798
    %vm824 = vcmask 1045504
    %v825 = vsel %vm824, %v822, %v801
    %v826 = vsel %vm824, %v823, %v802
    %vm827 = vcmask 1046528
    %v828 = vsel %vm827, %v825, %v805
    %v829 = vsel %vm827, %v826, %v806
    %832 = vrot.lane.b32.xlu0 %v828, 96
    %v833 = vpop.permute.xlu0 %832
    %834 = vrot.lane.b32.xlu0 %v829, 96
    %v835 = vpop.permute.xlu0 %834
    %v836 = vsel %vm85, %v833, 0
    %v838 = vsel %vm85, %v835, 0
    %840 = vmatpush.msra.mxu0 0.0
    %841 = vmatpush.msra.mxu0 0.0
    %842 = vmatpush.msra.mxu0 0.0
    %843 = vmatpush.msra.mxu0 0.0
    %844 = vmatpush.msra.mxu0 0.0
    %845 = vmatpush.msra.mxu0 0.0
    %846 = vmatpush.msra.mxu0 0.0
    %847 = vmatpush.msra.mxu0 0.0
    %848 = vmatpush.msra.mxu0 0.0
    %849 = vmatpush.msra.mxu0 0.0
    %850 = vmatpush.msra.mxu0 0.0
    %851 = vmatpush.msra.mxu0 0.0
    %852 = vmatpush.msra.mxu0 %v33
    %853 = vmatpush.msra.mxu0 %v32
    %854 = vmatpush.msra.mxu0 %v31
    %855 = vmatpush.msra.mxu0 %v30
    %856 = vmatmul.f32.gmra.mxu0 %v836
    %v857 = vpop.f32.mrf.mxu0
    %v858 = vadd.f32 0.0, %v857
    %859 = vmatmul.f32.gmra.mxu0 %v838
    %v860 = vpop.f32.mrf.mxu0
    %v861 = vadd.f32 0.0, %v860
    %862 = vdwg.mxu0
    %v863 = vld [vmem:[%s1] sm:$0x3]
    %864 = vrot.lane.b32.xlu0 %v770, 96
    %v865 = vpop.permute.xlu0 %864
    %v866 = vsel %vm85, %v865, 0
    %868 = vmatpush.msra.mxu0 0.0
    %869 = vmatpush.msra.mxu0 0.0
    %870 = vmatpush.msra.mxu0 0.0
    %871 = vmatpush.msra.mxu0 0.0
    %872 = vmatpush.msra.mxu0 0.0
    %873 = vmatpush.msra.mxu0 0.0
    %874 = vmatpush.msra.mxu0 0.0
    %875 = vmatpush.msra.mxu0 0.0
    %876 = vmatpush.msra.mxu0 0.0
    %877 = vmatpush.msra.mxu0 0.0
    %878 = vmatpush.msra.mxu0 0.0
    %879 = vmatpush.msra.mxu0 0.0
    %880 = vmatpush.msra.mxu0 %v37
    %881 = vmatpush.msra.mxu0 %v36
    %882 = vmatpush.msra.mxu0 %v35
    %883 = vmatpush.msra.mxu0 %v34
    %884 = vmatmul.f32.gmra.mxu0 %v866
    %v885 = vpop.f32.mrf.mxu0
    %v886 = vadd.f32 %v55, %v885
    %887 = vdwg.mxu0
    %v889 = vrot.slane %v886, 1
    %v890 = vperm.slane %v886, 0
    %v891 = vperm.slane %v889, 0
    %892 = vrot.lane.b32.xlu0 %v890, 32
    %v893 = vpop.permute.xlu0 %892
    %894 = vrot.lane.b32.xlu0 %v891, 32
    %v895 = vpop.permute.xlu0 %894
    %v898 = vadd.f32 %v858, %v893
    %v899 = vadd.f32 %v861, %v895
    %v900 = vtanh.pop %v898
    %v901 = vtanh.pop %v899
    %v902 = vperm.slane %v56, 0
    %v903 = vmul.f32 %v900, %v902
    %v904 = vmul.f32 %v901, %v902
    %v905 = vsel %vm85, %v903, 0.0
    %906 = vadd.xlane.f32.xlu0 %v905
    %v907 = vpop.xlane.xlu0 %906
    %v908 = vsel %vm85, %v904, 0.0
    %909 = vadd.xlane.f32.xlu0 %v908
    %v910 = vpop.xlane.xlu0 %909
    %v912 = vperm.slane %v59, 0
    %v913 = vlaneseq
    %v914 = vshrl.u32 %v913, 7
    %916 = vset.pattern.permute.xlu0 %v914
    %917 = vperm.xlu0 %916, %v912
    %v918 = vpop.permute.xlu0 %917
    %v919 = vperm.slane %v59, 1
    %v920 = vlaneseq
    %v921 = vshrl.u32 %v920, 7
    %923 = vset.pattern.permute.xlu0 %v921
    %924 = vperm.xlu0 %923, %v919
    %v925 = vpop.permute.xlu0 %924
    %v928 = vadd.f32 %v907, %v918
    %v929 = vadd.f32 %v910, %v925
    %932 = vset.pattern.permute.xlu0 0
    %933 = vperm.xlu0 %932, %v928
    %v934 = vpop.permute.xlu0 %933
    %935 = vset.pattern.permute.xlu0 0
    %936 = vperm.xlu0 %935, %v929
    %v937 = vpop.permute.xlu0 %936
    %v938 = vlaneseq
    %v939 = vand.u32 %v938, 127
    %v940 = vperm.slane %v934, %v939
    %v941 = vperm.slane %v937, %v939
    %vm942 = vcmask 1041409
    %v943 = vsel %vm942, %v941, %v940
    %vm945 = vcmask 58368
    %v946 = vsel %vm945, %v943, -inf
    %947 = vmax.xlane.f32.xlu0 %v946
    %v948 = vpop.xlane.xlu0 %947
    %v950 = vperm.slane %v948, 0
    %v951 = vperm.slane %v948, 1
    %v954 = vsub.f32 %v928, %v950
    %v955 = vsub.f32 %v929, %v951
    %v956 = vmul.f32 %v954, 1.442695
    %v957 = vpow.pop %v956
    %v958 = vmul.f32 %v955, 1.442695
    %v959 = vpow.pop %v958
    %962 = vset.pattern.permute.xlu0 0
    %963 = vperm.xlu0 %962, %v957
    %v964 = vpop.permute.xlu0 %963
    %965 = vset.pattern.permute.xlu0 0
    %966 = vperm.xlu0 %965, %v959
    %v967 = vpop.permute.xlu0 %966
    %v968 = vperm.slane %v964, %v939
    %v969 = vperm.slane %v967, %v939
    %v970 = vsel %vm942, %v969, %v968
    %v972 = vsel %vm945, %v970, 0.0
    %973 = vadd.xlane.f32.xlu0 %v972
    %v974 = vpop.xlane.xlu0 %973
    %v976 = vperm.slane %v974, 0
    %v977 = vperm.slane %v974, 1
    %v980 = vrcp.pop %v976
    %v981 = vmul.f32 %v976, %v980
    %v982 = vsub.f32 1.0, %v981
    %v983 = vmul.f32 %v980, %v982
    %v984 = vadd.f32 %v980, %v983
    %vm985 = vweird.f32 %v976
    %vm986 = vweird.f32 %v980
    %vm987 = vmor %vm985, %vm986
    %v988 = vsel %vm987, %v980, %v984
    %v989 = vand.u32 2147483647, %v976
    %vm990 = vcmp.eq.f32.partialorder %v989, 8.507059e+37
    %v991 = vand.u32 %v976, 2147483648
    %v992 = vor.u32 1.1754944e-38, %v991
    %v993 = vsel %vm990, %v992, %v988
    %v994 = vmul.f32 %v957, %v993
    %v995 = vrcp.pop %v977
    %v996 = vmul.f32 %v977, %v995
    %v997 = vsub.f32 1.0, %v996
    %v998 = vmul.f32 %v995, %v997
    %v999 = vadd.f32 %v995, %v998
    %vm1000 = vweird.f32 %v977
    %vm1001 = vweird.f32 %v995
    %vm1002 = vmor %vm1000, %vm1001
    %v1003 = vsel %vm1002, %v995, %v999
    %v1004 = vand.u32 2147483647, %v977
    %vm1005 = vcmp.eq.f32.partialorder %v1004, 8.507059e+37
    %v1006 = vand.u32 %v977, 2147483648
    %v1007 = vor.u32 1.1754944e-38, %v1006
    %v1008 = vsel %vm1005, %v1007, %v1003
    %v1009 = vmul.f32 %v959, %v1008
    %1011 = vset.pattern.permute.xlu0 0
    %1012 = vperm.xlu0 %1011, %v994
    %v1013 = vpop.permute.xlu0 %1012
    %1016 = vset.pattern.permute.xlu0 0
    %1017 = vperm.xlu0 %1016, %v1009
    %v1018 = vpop.permute.xlu0 %1017
    %v1020 = vmul.f32 %v1013, %v828
    %v1021 = vmul.f32 %v1018, %v829
    %vm1022 = vcmask 523520
    %v1023 = vsel %vm1022, %v1020, 0.0
    %v1024 = vrot.slane %v1023, 4
    %v1025 = vadd.f32 %v1023, %v1024
    %v1026 = vrot.slane %v1025, 2
    %v1027 = vadd.f32 %v1025, %v1026
    %v1028 = vrot.slane %v1027, 1
    %v1029 = vadd.f32 %v1027, %v1028
    %v1030 = vsel %vm1022, %v1021, 0.0
    %v1031 = vrot.slane %v1030, 4
    %v1032 = vadd.f32 %v1030, %v1031
    %v1033 = vrot.slane %v1032, 2
    %v1034 = vadd.f32 %v1032, %v1033
    %v1035 = vrot.slane %v1034, 1
    %v1036 = vadd.f32 %v1034, %v1035
    %v1039 = vsel %vm942, %v1036, %v1029
    %1040 = vrot.lane.b32.xlu0 %v1039, 96
    %v1041 = vpop.permute.xlu0 %1040
    %v1042 = vsel %vm85, %v1041, 0
    %1044 = vmatpush.msra.mxu0 0.0
    %1045 = vmatpush.msra.mxu0 0.0
    %1046 = vmatpush.msra.mxu0 0.0
    %1047 = vmatpush.msra.mxu0 0.0
    %1048 = vmatpush.msra.mxu0 0.0
    %1049 = vmatpush.msra.mxu0 0.0
    %1050 = vmatpush.msra.mxu0 0.0
    %1051 = vmatpush.msra.mxu0 0.0
    %1052 = vmatpush.msra.mxu0 0.0
    %1053 = vmatpush.msra.mxu0 0.0
    %1054 = vmatpush.msra.mxu0 0.0
    %1055 = vmatpush.msra.mxu0 0.0
    %1056 = vmatpush.msra.mxu0 %v43
    %1057 = vmatpush.msra.mxu0 %v42
    %1058 = vmatpush.msra.mxu0 %v41
    %1059 = vmatpush.msra.mxu0 %v40
    %1060 = vmatmul.f32.gmra.mxu0 %v1042
    %v1061 = vpop.f32.mrf.mxu0
    %v1062 = vadd.f32 0.0, %v1061
    %1063 = vdwg.mxu0
    %v1065 = vsel %vm61, %v863, 0
    %1067 = vmatpush.msra.mxu0 0.0
    %1068 = vmatpush.msra.mxu0 0.0
    %1069 = vmatpush.msra.mxu0 0.0
    %1070 = vmatpush.msra.mxu0 0.0
    %1071 = vmatpush.msra.mxu0 0.0
    %1072 = vmatpush.msra.mxu0 0.0
    %1073 = vmatpush.msra.mxu0 0.0
    %1074 = vmatpush.msra.mxu0 0.0
    %1075 = vmatpush.msra.mxu0 0.0
    %1076 = vmatpush.msra.mxu0 0.0
    %1077 = vmatpush.msra.mxu0 0.0
    %1078 = vmatpush.msra.mxu0 0.0
    %1079 = vmatpush.msra.mxu0 0.0
    %1080 = vmatpush.msra.mxu0 0.0
    %1081 = vmatpush.msra.mxu0 %v39
    %1082 = vmatpush.msra.mxu0 %v38
    %1083 = vmatmul.f32.gmra.mxu0 %v1065
    %v1084 = vpop.f32.mrf.mxu0
    %v1085 = vadd.f32 %v1062, %v1084
    %1086 = vdwg.mxu0
    %v1087 = vadd.f32 %v1085, %v53
    %v1088 = vadd.f32 %v1087, %v886
    %v1089 = vxor.u32 %v1088, 2147483648
    %v1090 = vmul.f32 %v1089, 1.442695
    %v1091 = vpow.pop %v1090
    %v1092 = vadd.f32 %v1091, 1.0
    %v1093 = vrcp.pop %v1092
    %v1094 = vmul.f32 %v1092, %v1093
    %v1095 = vsub.f32 1.0, %v1094
    %v1096 = vmul.f32 %v1093, %v1095
    %v1097 = vadd.f32 %v1093, %v1096
    %vm1098 = vweird.f32 %v1092
    %vm1099 = vweird.f32 %v1093
    %vm1100 = vmor %vm1098, %vm1099
    %v1101 = vsel %vm1100, %v1093, %v1097
    %v1102 = vand.u32 2147483647, %v1092
    %vm1103 = vcmp.eq.f32.partialorder %v1102, 8.507059e+37
    %v1104 = vand.u32 %v1092, 2147483648
    %v1105 = vor.u32 1.1754944e-38, %v1104
    %v1106 = vsel %vm1103, %v1105, %v1101
    %v1107 = vmul.f32 1.0, %v1106
    %1108 = vrot.lane.b32.xlu0 %v886, 64
    %v1109 = vpop.permute.xlu0 %1108
    %v1111 = vmul.f32 %v1107, %v1109
    %1113 = vrot.lane.b32.xlu0 %v1111, 64
    %v1114 = vpop.permute.xlu0 %1113
    %v1116 = vadd.f32 %v1087, %v1114
    %v1117 = vtanh.pop %v1116
    %v1118 = vsub.f32 1.0, %v1107
    %1120 = vrot.lane.b32.xlu0 %v1117, 96
    %v1121 = vpop.permute.xlu0 %1120
    %v1123 = vmul.f32 %v1118, %v1121
    %v1124 = vmul.f32 %v1107, %v770
    %v1125 = vadd.f32 %v1123, %v1124
    %1127 = vrot.lane.b32.xlu0 %v1125, 96
    %v1128 = vpop.permute.xlu0 %1127
    %v1129 = vsel %vm85, %v1128, 0
    %1131 = vmatpush.msra.mxu0 0.0
    %1132 = vmatpush.msra.mxu0 0.0
    %1133 = vmatpush.msra.mxu0 0.0
    %1134 = vmatpush.msra.mxu0 0.0
    %1135 = vmatpush.msra.mxu0 0.0
    %1136 = vmatpush.msra.mxu0 0.0
    %1137 = vmatpush.msra.mxu0 0.0
    %1138 = vmatpush.msra.mxu0 0.0
    %1139 = vmatpush.msra.mxu0 0.0
    %1140 = vmatpush.msra.mxu0 0.0
    %1141 = vmatpush.msra.mxu0 0.0
    %1142 = vmatpush.msra.mxu0 0.0
    %1143 = vmatpush.msra.mxu0 %v47
    %1144 = vmatpush.msra.mxu0 %v46
    %1145 = vmatpush.msra.mxu0 %v45
    %1146 = vmatpush.msra.mxu0 %v44
    %1147 = vmatmul.f32.gmra.mxu0 %v1129
    %v1148 = vpop.f32.mrf.mxu0
    %v1149 = vadd.f32 0.0, %v1148
    %1150 = vdwg.mxu0
    %v1151 = vadd.f32 %v1087, %v1149
    %v1152 = vadd.f32 %v1151, %v58
    %s1153 = scalar_lea.vmem %s1, 2
    %v1154 = vld [vmem:[%s1153] sm:$0x3]
    %1155 = vmatpush.msra.mxu0 0.0
    %1156 = vmatpush.msra.mxu0 0.0
    %1157 = vmatpush.msra.mxu0 0.0
    %1158 = vmatpush.msra.mxu0 0.0
    %1159 = vmatpush.msra.mxu0 0.0
    %1160 = vmatpush.msra.mxu0 0.0
    %1161 = vmatpush.msra.mxu0 0.0
    %1162 = vmatpush.msra.mxu0 0.0
    %1163 = vmatpush.msra.mxu0 0.0
    %1164 = vmatpush.msra.mxu0 0.0
    %1165 = vmatpush.msra.mxu0 0.0
    %1166 = vmatpush.msra.mxu0 0.0
    %1167 = vmatpush.msra.mxu0 %v37
    %1168 = vmatpush.msra.mxu0 %v36
    %1169 = vmatpush.msra.mxu0 %v35
    %1170 = vmatpush.msra.mxu0 %v34
    %1171 = vmatmul.f32.gmra.mxu0 %v1129
    %v1172 = vpop.f32.mrf.mxu0
    %v1173 = vadd.f32 %v55, %v1172
    %1174 = vdwg.mxu0
    %v1176 = vrot.slane %v1173, 1
    %v1177 = vperm.slane %v1173, 0
    %v1178 = vperm.slane %v1176, 0
    %1179 = vrot.lane.b32.xlu0 %v1177, 32
    %v1180 = vpop.permute.xlu0 %1179
    %1181 = vrot.lane.b32.xlu0 %v1178, 32
    %v1182 = vpop.permute.xlu0 %1181
    %v1185 = vadd.f32 %v858, %v1180
    %v1186 = vadd.f32 %v861, %v1182
    %v1187 = vtanh.pop %v1185
    %v1188 = vtanh.pop %v1186
    %v1189 = vmul.f32 %v1187, %v902
    %v1190 = vmul.f32 %v1188, %v902
    %v1191 = vsel %vm85, %v1189, 0.0
    %1192 = vadd.xlane.f32.xlu0 %v1191
    %v1193 = vpop.xlane.xlu0 %1192
    %v1194 = vsel %vm85, %v1190, 0.0
    %1195 = vadd.xlane.f32.xlu0 %v1194
    %v1196 = vpop.xlane.xlu0 %1195
    %v1197 = vadd.f32 %v1193, %v918
    %v1198 = vadd.f32 %v1196, %v925
    %1201 = vset.pattern.permute.xlu0 0
    %1202 = vperm.xlu0 %1201, %v1197
    %v1203 = vpop.permute.xlu0 %1202
    %1204 = vset.pattern.permute.xlu0 0
    %1205 = vperm.xlu0 %1204, %v1198
    %v1206 = vpop.permute.xlu0 %1205
    %v1207 = vperm.slane %v1203, %v939
    %v1208 = vperm.slane %v1206, %v939
    %v1209 = vsel %vm942, %v1208, %v1207
    %v1211 = vsel %vm945, %v1209, -inf
    %1212 = vmax.xlane.f32.xlu0 %v1211
    %v1213 = vpop.xlane.xlu0 %1212
    %v1215 = vperm.slane %v1213, 0
    %v1216 = vperm.slane %v1213, 1
    %v1219 = vsub.f32 %v1197, %v1215
    %v1220 = vsub.f32 %v1198, %v1216
    %v1221 = vmul.f32 %v1219, 1.442695
    %v1222 = vpow.pop %v1221
    %v1223 = vmul.f32 %v1220, 1.442695
    %v1224 = vpow.pop %v1223
    %1227 = vset.pattern.permute.xlu0 0
    %1228 = vperm.xlu0 %1227, %v1222
    %v1229 = vpop.permute.xlu0 %1228
    %1230 = vset.pattern.permute.xlu0 0
    %1231 = vperm.xlu0 %1230, %v1224
    %v1232 = vpop.permute.xlu0 %1231
    %v1233 = vperm.slane %v1229, %v939
    %v1234 = vperm.slane %v1232, %v939
    %v1235 = vsel %vm942, %v1234, %v1233
    %v1237 = vsel %vm945, %v1235, 0.0
    %1238 = vadd.xlane.f32.xlu0 %v1237
    %v1239 = vpop.xlane.xlu0 %1238
    %v1241 = vperm.slane %v1239, 0
    %v1242 = vperm.slane %v1239, 1
    %v1245 = vrcp.pop %v1241
    %v1246 = vmul.f32 %v1241, %v1245
    %v1247 = vsub.f32 1.0, %v1246
    %v1248 = vmul.f32 %v1245, %v1247
    %v1249 = vadd.f32 %v1245, %v1248
    %vm1250 = vweird.f32 %v1241
    %vm1251 = vweird.f32 %v1245
    %vm1252 = vmor %vm1250, %vm1251
    %v1253 = vsel %vm1252, %v1245, %v1249
    %v1254 = vand.u32 2147483647, %v1241
    %vm1255 = vcmp.eq.f32.partialorder %v1254, 8.507059e+37
    %v1256 = vand.u32 %v1241, 2147483648
    %v1257 = vor.u32 1.1754944e-38, %v1256
    %v1258 = vsel %vm1255, %v1257, %v1253
    %v1259 = vmul.f32 %v1222, %v1258
    %v1260 = vrcp.pop %v1242
    %v1261 = vmul.f32 %v1242, %v1260
    %v1262 = vsub.f32 1.0, %v1261
    %v1263 = vmul.f32 %v1260, %v1262
    %v1264 = vadd.f32 %v1260, %v1263
    %vm1265 = vweird.f32 %v1242
    %vm1266 = vweird.f32 %v1260
    %vm1267 = vmor %vm1265, %vm1266
    %v1268 = vsel %vm1267, %v1260, %v1264
    %v1269 = vand.u32 2147483647, %v1242
    %vm1270 = vcmp.eq.f32.partialorder %v1269, 8.507059e+37
    %v1271 = vand.u32 %v1242, 2147483648
    %v1272 = vor.u32 1.1754944e-38, %v1271
    %v1273 = vsel %vm1270, %v1272, %v1268
    %v1274 = vmul.f32 %v1224, %v1273
    %1276 = vset.pattern.permute.xlu0 0
    %1277 = vperm.xlu0 %1276, %v1259
    %v1278 = vpop.permute.xlu0 %1277
    %1281 = vset.pattern.permute.xlu0 0
    %1282 = vperm.xlu0 %1281, %v1274
    %v1283 = vpop.permute.xlu0 %1282
    %v1285 = vmul.f32 %v1278, %v828
    %v1286 = vmul.f32 %v1283, %v829
    %v1287 = vsel %vm1022, %v1285, 0.0
    %v1288 = vrot.slane %v1287, 4
    %v1289 = vadd.f32 %v1287, %v1288
    %v1290 = vrot.slane %v1289, 2
    %v1291 = vadd.f32 %v1289, %v1290
    %v1292 = vrot.slane %v1291, 1
    %v1293 = vadd.f32 %v1291, %v1292
    %v1294 = vsel %vm1022, %v1286, 0.0
    %v1295 = vrot.slane %v1294, 4
    %v1296 = vadd.f32 %v1294, %v1295
    %v1297 = vrot.slane %v1296, 2
    %v1298 = vadd.f32 %v1296, %v1297
    %v1299 = vrot.slane %v1298, 1
    %v1300 = vadd.f32 %v1298, %v1299
    %v1303 = vsel %vm942, %v1300, %v1293
    %1304 = vrot.lane.b32.xlu0 %v1303, 96
    %v1305 = vpop.permute.xlu0 %1304
    %v1306 = vsel %vm85, %v1305, 0
    %1308 = vmatpush.msra.mxu0 0.0
    %1309 = vmatpush.msra.mxu0 0.0
    %1310 = vmatpush.msra.mxu0 0.0
    %1311 = vmatpush.msra.mxu0 0.0
    %1312 = vmatpush.msra.mxu0 0.0
    %1313 = vmatpush.msra.mxu0 0.0
    %1314 = vmatpush.msra.mxu0 0.0
    %1315 = vmatpush.msra.mxu0 0.0
    %1316 = vmatpush.msra.mxu0 0.0
    %1317 = vmatpush.msra.mxu0 0.0
    %1318 = vmatpush.msra.mxu0 0.0
    %1319 = vmatpush.msra.mxu0 0.0
    %1320 = vmatpush.msra.mxu0 %v43
    %1321 = vmatpush.msra.mxu0 %v42
    %1322 = vmatpush.msra.mxu0 %v41
    %1323 = vmatpush.msra.mxu0 %v40
    %1324 = vmatmul.f32.gmra.mxu0 %v1306
    %v1325 = vpop.f32.mrf.mxu0
    %v1326 = vadd.f32 0.0, %v1325
    %1327 = vdwg.mxu0
    %v1329 = vsel %vm61, %v1154, 0
    %1331 = vmatpush.msra.mxu0 0.0
    %1332 = vmatpush.msra.mxu0 0.0
    %1333 = vmatpush.msra.mxu0 0.0
    %1334 = vmatpush.msra.mxu0 0.0
    %1335 = vmatpush.msra.mxu0 0.0
    %1336 = vmatpush.msra.mxu0 0.0
    %1337 = vmatpush.msra.mxu0 0.0
    %1338 = vmatpush.msra.mxu0 0.0
    %1339 = vmatpush.msra.mxu0 0.0
    %1340 = vmatpush.msra.mxu0 0.0
    %1341 = vmatpush.msra.mxu0 0.0
    %1342 = vmatpush.msra.mxu0 0.0
    %1343 = vmatpush.msra.mxu0 0.0
    %1344 = vmatpush.msra.mxu0 0.0
    %1345 = vmatpush.msra.mxu0 %v39
    %1346 = vmatpush.msra.mxu0 %v38
    %1347 = vmatmul.f32.gmra.mxu0 %v1329
    %v1348 = vpop.f32.mrf.mxu0
    %v1349 = vadd.f32 %v1326, %v1348
    %1350 = vdwg.mxu0
    %v1351 = vadd.f32 %v1349, %v53
    %v1352 = vadd.f32 %v1351, %v1173
    %v1353 = vxor.u32 %v1352, 2147483648
    %v1354 = vmul.f32 %v1353, 1.442695
    %v1355 = vpow.pop %v1354
    %v1356 = vadd.f32 %v1355, 1.0
    %v1357 = vrcp.pop %v1356
    %v1358 = vmul.f32 %v1356, %v1357
    %v1359 = vsub.f32 1.0, %v1358
    %v1360 = vmul.f32 %v1357, %v1359
    %v1361 = vadd.f32 %v1357, %v1360
    %vm1362 = vweird.f32 %v1356
    %vm1363 = vweird.f32 %v1357
    %vm1364 = vmor %vm1362, %vm1363
    %v1365 = vsel %vm1364, %v1357, %v1361
    %v1366 = vand.u32 2147483647, %v1356
    %vm1367 = vcmp.eq.f32.partialorder %v1366, 8.507059e+37
    %v1368 = vand.u32 %v1356, 2147483648
    %v1369 = vor.u32 1.1754944e-38, %v1368
    %v1370 = vsel %vm1367, %v1369, %v1365
    %v1371 = vmul.f32 1.0, %v1370
    %1372 = vrot.lane.b32.xlu0 %v1173, 64
    %v1373 = vpop.permute.xlu0 %1372
    %v1375 = vmul.f32 %v1371, %v1373
    %1377 = vrot.lane.b32.xlu0 %v1375, 64
    %v1378 = vpop.permute.xlu0 %1377
    %v1380 = vadd.f32 %v1351, %v1378
    %v1381 = vtanh.pop %v1380
    %v1382 = vsub.f32 1.0, %v1371
    %1384 = vrot.lane.b32.xlu0 %v1381, 96
    %v1385 = vpop.permute.xlu0 %1384
    %v1387 = vmul.f32 %v1382, %v1385
    %v1388 = vmul.f32 %v1371, %v1125
    %v1389 = vadd.f32 %v1387, %v1388
    %1391 = vrot.lane.b32.xlu0 %v1389, 96
    %v1392 = vpop.permute.xlu0 %1391
    %v1393 = vsel %vm85, %v1392, 0
    %1395 = vmatpush.msra.mxu0 0.0
    %1396 = vmatpush.msra.mxu0 0.0
    %1397 = vmatpush.msra.mxu0 0.0
    %1398 = vmatpush.msra.mxu0 0.0
    %1399 = vmatpush.msra.mxu0 0.0
    %1400 = vmatpush.msra.mxu0 0.0
    %1401 = vmatpush.msra.mxu0 0.0
    %1402 = vmatpush.msra.mxu0 0.0
    %1403 = vmatpush.msra.mxu0 0.0
    %1404 = vmatpush.msra.mxu0 0.0
    %1405 = vmatpush.msra.mxu0 0.0
    %1406 = vmatpush.msra.mxu0 0.0
    %1407 = vmatpush.msra.mxu0 %v47
    %1408 = vmatpush.msra.mxu0 %v46
    %1409 = vmatpush.msra.mxu0 %v45
    %1410 = vmatpush.msra.mxu0 %v44
    %1411 = vmatmul.f32.gmra.mxu0 %v1393
    %v1412 = vpop.f32.mrf.mxu0
    %v1413 = vadd.f32 0.0, %v1412
    %1414 = vdwg.mxu0
    %v1415 = vadd.f32 %v1351, %v1413
    %v1416 = vadd.f32 %v1415, %v58
    %s1417 = scalar_lea.vmem %s1, 4
    %v1418 = vld [vmem:[%s1417] sm:$0x3]
    %1419 = vmatpush.msra.mxu0 0.0
    %1420 = vmatpush.msra.mxu0 0.0
    %1421 = vmatpush.msra.mxu0 0.0
    %1422 = vmatpush.msra.mxu0 0.0
    %1423 = vmatpush.msra.mxu0 0.0
    %1424 = vmatpush.msra.mxu0 0.0
    %1425 = vmatpush.msra.mxu0 0.0
    %1426 = vmatpush.msra.mxu0 0.0
    %1427 = vmatpush.msra.mxu0 0.0
    %1428 = vmatpush.msra.mxu0 0.0
    %1429 = vmatpush.msra.mxu0 0.0
    %1430 = vmatpush.msra.mxu0 0.0
    %1431 = vmatpush.msra.mxu0 %v37
    %1432 = vmatpush.msra.mxu0 %v36
    %1433 = vmatpush.msra.mxu0 %v35
    %1434 = vmatpush.msra.mxu0 %v34
    %1435 = vmatmul.f32.gmra.mxu0 %v1393
    %v1436 = vpop.f32.mrf.mxu0
    %v1437 = vadd.f32 %v55, %v1436
    %1438 = vdwg.mxu0
    %v1440 = vrot.slane %v1437, 1
    %v1441 = vperm.slane %v1437, 0
    %v1442 = vperm.slane %v1440, 0
    %1443 = vrot.lane.b32.xlu0 %v1441, 32
    %v1444 = vpop.permute.xlu0 %1443
    %1445 = vrot.lane.b32.xlu0 %v1442, 32
    %v1446 = vpop.permute.xlu0 %1445
    %v1449 = vadd.f32 %v858, %v1444
    %v1450 = vadd.f32 %v861, %v1446
    %v1451 = vtanh.pop %v1449
    %v1452 = vtanh.pop %v1450
    %v1453 = vmul.f32 %v1451, %v902
    %v1454 = vmul.f32 %v1452, %v902
    %v1455 = vsel %vm85, %v1453, 0.0
    %1456 = vadd.xlane.f32.xlu0 %v1455
    %v1457 = vpop.xlane.xlu0 %1456
    %v1458 = vsel %vm85, %v1454, 0.0
    %1459 = vadd.xlane.f32.xlu0 %v1458
    %v1460 = vpop.xlane.xlu0 %1459
    %v1461 = vadd.f32 %v1457, %v918
    %v1462 = vadd.f32 %v1460, %v925
    %1465 = vset.pattern.permute.xlu0 0
    %1466 = vperm.xlu0 %1465, %v1461
    %v1467 = vpop.permute.xlu0 %1466
    %1468 = vset.pattern.permute.xlu0 0
    %1469 = vperm.xlu0 %1468, %v1462
    %v1470 = vpop.permute.xlu0 %1469
    %v1471 = vperm.slane %v1467, %v939
    %v1472 = vperm.slane %v1470, %v939
    %v1473 = vsel %vm942, %v1472, %v1471
    %v1475 = vsel %vm945, %v1473, -inf
    %1476 = vmax.xlane.f32.xlu0 %v1475
    %v1477 = vpop.xlane.xlu0 %1476
    %v1479 = vperm.slane %v1477, 0
    %v1480 = vperm.slane %v1477, 1
    %v1483 = vsub.f32 %v1461, %v1479
    %v1484 = vsub.f32 %v1462, %v1480
    %v1485 = vmul.f32 %v1483, 1.442695
    %v1486 = vpow.pop %v1485
    %v1487 = vmul.f32 %v1484, 1.442695
    %v1488 = vpow.pop %v1487
    %1491 = vset.pattern.permute.xlu0 0
    %1492 = vperm.xlu0 %1491, %v1486
    %v1493 = vpop.permute.xlu0 %1492
    %1494 = vset.pattern.permute.xlu0 0
    %1495 = vperm.xlu0 %1494, %v1488
    %v1496 = vpop.permute.xlu0 %1495
    %v1497 = vperm.slane %v1493, %v939
    %v1498 = vperm.slane %v1496, %v939
    %v1499 = vsel %vm942, %v1498, %v1497
    %v1501 = vsel %vm945, %v1499, 0.0
    %1502 = vadd.xlane.f32.xlu0 %v1501
    %v1503 = vpop.xlane.xlu0 %1502
    %v1505 = vperm.slane %v1503, 0
    %v1506 = vperm.slane %v1503, 1
    %v1509 = vrcp.pop %v1505
    %v1510 = vmul.f32 %v1505, %v1509
    %v1511 = vsub.f32 1.0, %v1510
    %v1512 = vmul.f32 %v1509, %v1511
    %v1513 = vadd.f32 %v1509, %v1512
    %vm1514 = vweird.f32 %v1505
    %vm1515 = vweird.f32 %v1509
    %vm1516 = vmor %vm1514, %vm1515
    %v1517 = vsel %vm1516, %v1509, %v1513
    %v1518 = vand.u32 2147483647, %v1505
    %vm1519 = vcmp.eq.f32.partialorder %v1518, 8.507059e+37
    %v1520 = vand.u32 %v1505, 2147483648
    %v1521 = vor.u32 1.1754944e-38, %v1520
    %v1522 = vsel %vm1519, %v1521, %v1517
    %v1523 = vmul.f32 %v1486, %v1522
    %v1524 = vrcp.pop %v1506
    %v1525 = vmul.f32 %v1506, %v1524
    %v1526 = vsub.f32 1.0, %v1525
    %v1527 = vmul.f32 %v1524, %v1526
    %v1528 = vadd.f32 %v1524, %v1527
    %vm1529 = vweird.f32 %v1506
    %vm1530 = vweird.f32 %v1524
    %vm1531 = vmor %vm1529, %vm1530
    %v1532 = vsel %vm1531, %v1524, %v1528
    %v1533 = vand.u32 2147483647, %v1506
    %vm1534 = vcmp.eq.f32.partialorder %v1533, 8.507059e+37
    %v1535 = vand.u32 %v1506, 2147483648
    %v1536 = vor.u32 1.1754944e-38, %v1535
    %v1537 = vsel %vm1534, %v1536, %v1532
    %v1538 = vmul.f32 %v1488, %v1537
    %1540 = vset.pattern.permute.xlu0 0
    %1541 = vperm.xlu0 %1540, %v1523
    %v1542 = vpop.permute.xlu0 %1541
    %1545 = vset.pattern.permute.xlu0 0
    %1546 = vperm.xlu0 %1545, %v1538
    %v1547 = vpop.permute.xlu0 %1546
    %v1549 = vmul.f32 %v1542, %v828
    %v1550 = vmul.f32 %v1547, %v829
    %v1551 = vsel %vm1022, %v1549, 0.0
    %v1552 = vrot.slane %v1551, 4
    %v1553 = vadd.f32 %v1551, %v1552
    %v1554 = vrot.slane %v1553, 2
    %v1555 = vadd.f32 %v1553, %v1554
    %v1556 = vrot.slane %v1555, 1
    %v1557 = vadd.f32 %v1555, %v1556
    %v1558 = vsel %vm1022, %v1550, 0.0
    %v1559 = vrot.slane %v1558, 4
    %v1560 = vadd.f32 %v1558, %v1559
    %v1561 = vrot.slane %v1560, 2
    %v1562 = vadd.f32 %v1560, %v1561
    %v1563 = vrot.slane %v1562, 1
    %v1564 = vadd.f32 %v1562, %v1563
    %v1567 = vsel %vm942, %v1564, %v1557
    %1568 = vrot.lane.b32.xlu0 %v1567, 96
    %v1569 = vpop.permute.xlu0 %1568
    %v1570 = vsel %vm85, %v1569, 0
    %1572 = vmatpush.msra.mxu0 0.0
    %1573 = vmatpush.msra.mxu0 0.0
    %1574 = vmatpush.msra.mxu0 0.0
    %1575 = vmatpush.msra.mxu0 0.0
    %1576 = vmatpush.msra.mxu0 0.0
    %1577 = vmatpush.msra.mxu0 0.0
    %1578 = vmatpush.msra.mxu0 0.0
    %1579 = vmatpush.msra.mxu0 0.0
    %1580 = vmatpush.msra.mxu0 0.0
    %1581 = vmatpush.msra.mxu0 0.0
    %1582 = vmatpush.msra.mxu0 0.0
    %1583 = vmatpush.msra.mxu0 0.0
    %1584 = vmatpush.msra.mxu0 %v43
    %1585 = vmatpush.msra.mxu0 %v42
    %1586 = vmatpush.msra.mxu0 %v41
    %1587 = vmatpush.msra.mxu0 %v40
    %1588 = vmatmul.f32.gmra.mxu0 %v1570
    %v1589 = vpop.f32.mrf.mxu0
    %v1590 = vadd.f32 0.0, %v1589
    %1591 = vdwg.mxu0
    %v1593 = vsel %vm61, %v1418, 0
    %1595 = vmatpush.msra.mxu0 0.0
    %1596 = vmatpush.msra.mxu0 0.0
    %1597 = vmatpush.msra.mxu0 0.0
    %1598 = vmatpush.msra.mxu0 0.0
    %1599 = vmatpush.msra.mxu0 0.0
    %1600 = vmatpush.msra.mxu0 0.0
    %1601 = vmatpush.msra.mxu0 0.0
    %1602 = vmatpush.msra.mxu0 0.0
    %1603 = vmatpush.msra.mxu0 0.0
    %1604 = vmatpush.msra.mxu0 0.0
    %1605 = vmatpush.msra.mxu0 0.0
    %1606 = vmatpush.msra.mxu0 0.0
    %1607 = vmatpush.msra.mxu0 0.0
    %1608 = vmatpush.msra.mxu0 0.0
    %1609 = vmatpush.msra.mxu0 %v39
    %1610 = vmatpush.msra.mxu0 %v38
    %1611 = vmatmul.f32.gmra.mxu0 %v1593
    %v1612 = vpop.f32.mrf.mxu0
    %v1613 = vadd.f32 %v1590, %v1612
    %1614 = vdwg.mxu0
    %v1615 = vadd.f32 %v1613, %v53
    %v1616 = vadd.f32 %v1615, %v1437
    %v1617 = vxor.u32 %v1616, 2147483648
    %v1618 = vmul.f32 %v1617, 1.442695
    %v1619 = vpow.pop %v1618
    %v1620 = vadd.f32 %v1619, 1.0
    %v1621 = vrcp.pop %v1620
    %v1622 = vmul.f32 %v1620, %v1621
    %v1623 = vsub.f32 1.0, %v1622
    %v1624 = vmul.f32 %v1621, %v1623
    %v1625 = vadd.f32 %v1621, %v1624
    %vm1626 = vweird.f32 %v1620
    %vm1627 = vweird.f32 %v1621
    %vm1628 = vmor %vm1626, %vm1627
    %v1629 = vsel %vm1628, %v1621, %v1625
    %v1630 = vand.u32 2147483647, %v1620
    %vm1631 = vcmp.eq.f32.partialorder %v1630, 8.507059e+37
    %v1632 = vand.u32 %v1620, 2147483648
    %v1633 = vor.u32 1.1754944e-38, %v1632
    %v1634 = vsel %vm1631, %v1633, %v1629
    %v1635 = vmul.f32 1.0, %v1634
    %1636 = vrot.lane.b32.xlu0 %v1437, 64
    %v1637 = vpop.permute.xlu0 %1636
    %v1639 = vmul.f32 %v1635, %v1637
    %1641 = vrot.lane.b32.xlu0 %v1639, 64
    %v1642 = vpop.permute.xlu0 %1641
    %v1644 = vadd.f32 %v1615, %v1642
    %v1645 = vtanh.pop %v1644
    %v1646 = vsub.f32 1.0, %v1635
    %1648 = vrot.lane.b32.xlu0 %v1645, 96
    %v1649 = vpop.permute.xlu0 %1648
    %v1651 = vmul.f32 %v1646, %v1649
    %v1652 = vmul.f32 %v1635, %v1389
    %v1653 = vadd.f32 %v1651, %v1652
    %1655 = vrot.lane.b32.xlu0 %v1653, 96
    %v1656 = vpop.permute.xlu0 %1655
    %v1657 = vsel %vm85, %v1656, 0
    %1659 = vmatpush.msra.mxu0 0.0
    %1660 = vmatpush.msra.mxu0 0.0
    %1661 = vmatpush.msra.mxu0 0.0
    %1662 = vmatpush.msra.mxu0 0.0
    %1663 = vmatpush.msra.mxu0 0.0
    %1664 = vmatpush.msra.mxu0 0.0
    %1665 = vmatpush.msra.mxu0 0.0
    %1666 = vmatpush.msra.mxu0 0.0
    %1667 = vmatpush.msra.mxu0 0.0
    %1668 = vmatpush.msra.mxu0 0.0
    %1669 = vmatpush.msra.mxu0 0.0
    %1670 = vmatpush.msra.mxu0 0.0
    %1671 = vmatpush.msra.mxu0 %v47
    %1672 = vmatpush.msra.mxu0 %v46
    %1673 = vmatpush.msra.mxu0 %v45
    %1674 = vmatpush.msra.mxu0 %v44
    %1675 = vmatmul.f32.gmra.mxu0 %v1657
    %v1676 = vpop.f32.mrf.mxu0
    %v1677 = vadd.f32 0.0, %v1676
    %1678 = vdwg.mxu0
    %v1679 = vadd.f32 %v1615, %v1677
    %v1680 = vadd.f32 %v1679, %v58
    %s1681 = scalar_lea.vmem %s1, 6
    %v1682 = vld [vmem:[%s1681] sm:$0x3]
    %1683 = vmatpush.msra.mxu0 0.0
    %1684 = vmatpush.msra.mxu0 0.0
    %1685 = vmatpush.msra.mxu0 0.0
    %1686 = vmatpush.msra.mxu0 0.0
    %1687 = vmatpush.msra.mxu0 0.0
    %1688 = vmatpush.msra.mxu0 0.0
    %1689 = vmatpush.msra.mxu0 0.0
    %1690 = vmatpush.msra.mxu0 0.0
    %1691 = vmatpush.msra.mxu0 0.0
    %1692 = vmatpush.msra.mxu0 0.0
    %1693 = vmatpush.msra.mxu0 0.0
    %1694 = vmatpush.msra.mxu0 0.0
    %1695 = vmatpush.msra.mxu0 %v37
    %1696 = vmatpush.msra.mxu0 %v36
    %1697 = vmatpush.msra.mxu0 %v35
    %1698 = vmatpush.msra.mxu0 %v34
    %1699 = vmatmul.f32.gmra.mxu0 %v1657
    %v1700 = vpop.f32.mrf.mxu0
    %v1701 = vadd.f32 %v55, %v1700
    %1702 = vdwg.mxu0
    %v1704 = vrot.slane %v1701, 1
    %v1705 = vperm.slane %v1701, 0
    %v1706 = vperm.slane %v1704, 0
    %1707 = vrot.lane.b32.xlu0 %v1705, 32
    %v1708 = vpop.permute.xlu0 %1707
    %1709 = vrot.lane.b32.xlu0 %v1706, 32
    %v1710 = vpop.permute.xlu0 %1709
    %v1713 = vadd.f32 %v858, %v1708
    %v1714 = vadd.f32 %v861, %v1710
    %v1715 = vtanh.pop %v1713
    %v1716 = vtanh.pop %v1714
    %v1717 = vmul.f32 %v1715, %v902
    %v1718 = vmul.f32 %v1716, %v902
    %v1719 = vsel %vm85, %v1717, 0.0
    %1720 = vadd.xlane.f32.xlu0 %v1719
    %v1721 = vpop.xlane.xlu0 %1720
    %v1722 = vsel %vm85, %v1718, 0.0
    %1723 = vadd.xlane.f32.xlu0 %v1722
    %v1724 = vpop.xlane.xlu0 %1723
    %v1725 = vadd.f32 %v1721, %v918
    %v1726 = vadd.f32 %v1724, %v925
    %1729 = vset.pattern.permute.xlu0 0
    %1730 = vperm.xlu0 %1729, %v1725
    %v1731 = vpop.permute.xlu0 %1730
    %1732 = vset.pattern.permute.xlu0 0
    %1733 = vperm.xlu0 %1732, %v1726
    %v1734 = vpop.permute.xlu0 %1733
    %v1735 = vperm.slane %v1731, %v939
    %v1736 = vperm.slane %v1734, %v939
    %v1737 = vsel %vm942, %v1736, %v1735
    %v1739 = vsel %vm945, %v1737, -inf
    %1740 = vmax.xlane.f32.xlu0 %v1739
    %v1741 = vpop.xlane.xlu0 %1740
    %v1743 = vperm.slane %v1741, 0
    %v1744 = vperm.slane %v1741, 1
    %v1747 = vsub.f32 %v1725, %v1743
    %v1748 = vsub.f32 %v1726, %v1744
    %v1749 = vmul.f32 %v1747, 1.442695
    %v1750 = vpow.pop %v1749
    %v1751 = vmul.f32 %v1748, 1.442695
    %v1752 = vpow.pop %v1751
    %1755 = vset.pattern.permute.xlu0 0
    %1756 = vperm.xlu0 %1755, %v1750
    %v1757 = vpop.permute.xlu0 %1756
    %1758 = vset.pattern.permute.xlu0 0
    %1759 = vperm.xlu0 %1758, %v1752
    %v1760 = vpop.permute.xlu0 %1759
    %v1761 = vperm.slane %v1757, %v939
    %v1762 = vperm.slane %v1760, %v939
    %v1763 = vsel %vm942, %v1762, %v1761
    %v1765 = vsel %vm945, %v1763, 0.0
    %1766 = vadd.xlane.f32.xlu0 %v1765
    %v1767 = vpop.xlane.xlu0 %1766
    %v1769 = vperm.slane %v1767, 0
    %v1770 = vperm.slane %v1767, 1
    %v1773 = vrcp.pop %v1769
    %v1774 = vmul.f32 %v1769, %v1773
    %v1775 = vsub.f32 1.0, %v1774
    %v1776 = vmul.f32 %v1773, %v1775
    %v1777 = vadd.f32 %v1773, %v1776
    %vm1778 = vweird.f32 %v1769
    %vm1779 = vweird.f32 %v1773
    %vm1780 = vmor %vm1778, %vm1779
    %v1781 = vsel %vm1780, %v1773, %v1777
    %v1782 = vand.u32 2147483647, %v1769
    %vm1783 = vcmp.eq.f32.partialorder %v1782, 8.507059e+37
    %v1784 = vand.u32 %v1769, 2147483648
    %v1785 = vor.u32 1.1754944e-38, %v1784
    %v1786 = vsel %vm1783, %v1785, %v1781
    %v1787 = vmul.f32 %v1750, %v1786
    %v1788 = vrcp.pop %v1770
    %v1789 = vmul.f32 %v1770, %v1788
    %v1790 = vsub.f32 1.0, %v1789
    %v1791 = vmul.f32 %v1788, %v1790
    %v1792 = vadd.f32 %v1788, %v1791
    %vm1793 = vweird.f32 %v1770
    %vm1794 = vweird.f32 %v1788
    %vm1795 = vmor %vm1793, %vm1794
    %v1796 = vsel %vm1795, %v1788, %v1792
    %v1797 = vand.u32 2147483647, %v1770
    %vm1798 = vcmp.eq.f32.partialorder %v1797, 8.507059e+37
    %v1799 = vand.u32 %v1770, 2147483648
    %v1800 = vor.u32 1.1754944e-38, %v1799
    %v1801 = vsel %vm1798, %v1800, %v1796
    %v1802 = vmul.f32 %v1752, %v1801
    %1804 = vset.pattern.permute.xlu0 0
    %1805 = vperm.xlu0 %1804, %v1787
    %v1806 = vpop.permute.xlu0 %1805
    %1809 = vset.pattern.permute.xlu0 0
    %1810 = vperm.xlu0 %1809, %v1802
    %v1811 = vpop.permute.xlu0 %1810
    %v1813 = vmul.f32 %v1806, %v828
    %v1814 = vmul.f32 %v1811, %v829
    %v1815 = vsel %vm1022, %v1813, 0.0
    %v1816 = vrot.slane %v1815, 4
    %v1817 = vadd.f32 %v1815, %v1816
    %v1818 = vrot.slane %v1817, 2
    %v1819 = vadd.f32 %v1817, %v1818
    %v1820 = vrot.slane %v1819, 1
    %v1821 = vadd.f32 %v1819, %v1820
    %v1822 = vsel %vm1022, %v1814, 0.0
    %v1823 = vrot.slane %v1822, 4
    %v1824 = vadd.f32 %v1822, %v1823
    %v1825 = vrot.slane %v1824, 2
    %v1826 = vadd.f32 %v1824, %v1825
    %v1827 = vrot.slane %v1826, 1
    %v1828 = vadd.f32 %v1826, %v1827
    %v1831 = vsel %vm942, %v1828, %v1821
    %1832 = vrot.lane.b32.xlu0 %v1831, 96
    %v1833 = vpop.permute.xlu0 %1832
    %v1834 = vsel %vm85, %v1833, 0
    %1836 = vmatpush.msra.mxu0 0.0
    %1837 = vmatpush.msra.mxu0 0.0
    %1838 = vmatpush.msra.mxu0 0.0
    %1839 = vmatpush.msra.mxu0 0.0
    %1840 = vmatpush.msra.mxu0 0.0
    %1841 = vmatpush.msra.mxu0 0.0
    %1842 = vmatpush.msra.mxu0 0.0
    %1843 = vmatpush.msra.mxu0 0.0
    %1844 = vmatpush.msra.mxu0 0.0
    %1845 = vmatpush.msra.mxu0 0.0
    %1846 = vmatpush.msra.mxu0 0.0
    %1847 = vmatpush.msra.mxu0 0.0
    %1848 = vmatpush.msra.mxu0 %v43
    %1849 = vmatpush.msra.mxu0 %v42
    %1850 = vmatpush.msra.mxu0 %v41
    %1851 = vmatpush.msra.mxu0 %v40
    %1852 = vmatmul.f32.gmra.mxu0 %v1834
    %v1853 = vpop.f32.mrf.mxu0
    %v1854 = vadd.f32 0.0, %v1853
    %1855 = vdwg.mxu0
    %v1857 = vsel %vm61, %v1682, 0
    %1859 = vmatpush.msra.mxu0 0.0
    %1860 = vmatpush.msra.mxu0 0.0
    %1861 = vmatpush.msra.mxu0 0.0
    %1862 = vmatpush.msra.mxu0 0.0
    %1863 = vmatpush.msra.mxu0 0.0
    %1864 = vmatpush.msra.mxu0 0.0
    %1865 = vmatpush.msra.mxu0 0.0
    %1866 = vmatpush.msra.mxu0 0.0
    %1867 = vmatpush.msra.mxu0 0.0
    %1868 = vmatpush.msra.mxu0 0.0
    %1869 = vmatpush.msra.mxu0 0.0
    %1870 = vmatpush.msra.mxu0 0.0
    %1871 = vmatpush.msra.mxu0 0.0
    %1872 = vmatpush.msra.mxu0 0.0
    %1873 = vmatpush.msra.mxu0 %v39
    %1874 = vmatpush.msra.mxu0 %v38
    %1875 = vmatmul.f32.gmra.mxu0 %v1857
    %v1876 = vpop.f32.mrf.mxu0
    %v1877 = vadd.f32 %v1854, %v1876
    %1878 = vdwg.mxu0
    %v1879 = vadd.f32 %v1877, %v53
    %v1880 = vadd.f32 %v1879, %v1701
    %v1881 = vxor.u32 %v1880, 2147483648
    %v1882 = vmul.f32 %v1881, 1.442695
    %v1883 = vpow.pop %v1882
    %v1884 = vadd.f32 %v1883, 1.0
    %v1885 = vrcp.pop %v1884
    %v1886 = vmul.f32 %v1884, %v1885
    %v1887 = vsub.f32 1.0, %v1886
    %v1888 = vmul.f32 %v1885, %v1887
    %v1889 = vadd.f32 %v1885, %v1888
    %vm1890 = vweird.f32 %v1884
    %vm1891 = vweird.f32 %v1885
    %vm1892 = vmor %vm1890, %vm1891
    %v1893 = vsel %vm1892, %v1885, %v1889
    %v1894 = vand.u32 2147483647, %v1884
    %vm1895 = vcmp.eq.f32.partialorder %v1894, 8.507059e+37
    %v1896 = vand.u32 %v1884, 2147483648
    %v1897 = vor.u32 1.1754944e-38, %v1896
    %v1898 = vsel %vm1895, %v1897, %v1893
    %v1899 = vmul.f32 1.0, %v1898
    %1900 = vrot.lane.b32.xlu0 %v1701, 64
    %v1901 = vpop.permute.xlu0 %1900
    %v1903 = vmul.f32 %v1899, %v1901
    %1905 = vrot.lane.b32.xlu0 %v1903, 64
    %v1906 = vpop.permute.xlu0 %1905
    %v1908 = vadd.f32 %v1879, %v1906
    %v1909 = vtanh.pop %v1908
    %v1910 = vsub.f32 1.0, %v1899
    %1912 = vrot.lane.b32.xlu0 %v1909, 96
    %v1913 = vpop.permute.xlu0 %1912
    %v1915 = vmul.f32 %v1910, %v1913
    %v1916 = vmul.f32 %v1899, %v1653
    %v1917 = vadd.f32 %v1915, %v1916
    %1919 = vrot.lane.b32.xlu0 %v1917, 96
    %v1920 = vpop.permute.xlu0 %1919
    %v1921 = vsel %vm85, %v1920, 0
    %1923 = vmatpush.msra.mxu0 0.0
    %1924 = vmatpush.msra.mxu0 0.0
    %1925 = vmatpush.msra.mxu0 0.0
    %1926 = vmatpush.msra.mxu0 0.0
    %1927 = vmatpush.msra.mxu0 0.0
    %1928 = vmatpush.msra.mxu0 0.0
    %1929 = vmatpush.msra.mxu0 0.0
    %1930 = vmatpush.msra.mxu0 0.0
    %1931 = vmatpush.msra.mxu0 0.0
    %1932 = vmatpush.msra.mxu0 0.0
    %1933 = vmatpush.msra.mxu0 0.0
    %1934 = vmatpush.msra.mxu0 0.0
    %1935 = vmatpush.msra.mxu0 %v47
    %1936 = vmatpush.msra.mxu0 %v46
    %1937 = vmatpush.msra.mxu0 %v45
    %1938 = vmatpush.msra.mxu0 %v44
    %1939 = vmatmul.f32.gmra.mxu0 %v1921
    %v1940 = vpop.f32.mrf.mxu0
    %v1941 = vadd.f32 0.0, %v1940
    %1942 = vdwg.mxu0
    %v1943 = vadd.f32 %v1879, %v1941
    %v1944 = vadd.f32 %v1943, %v58
    %s1945 = scalar_lea.vmem %s1, 8
    %v1946 = vld [vmem:[%s1945] sm:$0x3]
    %1947 = vmatpush.msra.mxu0 0.0
    %1948 = vmatpush.msra.mxu0 0.0
    %1949 = vmatpush.msra.mxu0 0.0
    %1950 = vmatpush.msra.mxu0 0.0
    %1951 = vmatpush.msra.mxu0 0.0
    %1952 = vmatpush.msra.mxu0 0.0
    %1953 = vmatpush.msra.mxu0 0.0
    %1954 = vmatpush.msra.mxu0 0.0
    %1955 = vmatpush.msra.mxu0 0.0
    %1956 = vmatpush.msra.mxu0 0.0
    %1957 = vmatpush.msra.mxu0 0.0
    %1958 = vmatpush.msra.mxu0 0.0
    %1959 = vmatpush.msra.mxu0 %v37
    %1960 = vmatpush.msra.mxu0 %v36
    %1961 = vmatpush.msra.mxu0 %v35
    %1962 = vmatpush.msra.mxu0 %v34
    %1963 = vmatmul.f32.gmra.mxu0 %v1921
    %v1964 = vpop.f32.mrf.mxu0
    %v1965 = vadd.f32 %v55, %v1964
    %1966 = vdwg.mxu0
    %v1968 = vrot.slane %v1965, 1
    %v1969 = vperm.slane %v1965, 0
    %v1970 = vperm.slane %v1968, 0
    %1971 = vrot.lane.b32.xlu0 %v1969, 32
    %v1972 = vpop.permute.xlu0 %1971
    %1973 = vrot.lane.b32.xlu0 %v1970, 32
    %v1974 = vpop.permute.xlu0 %1973
    %v1977 = vadd.f32 %v858, %v1972
    %v1978 = vadd.f32 %v861, %v1974
    %v1979 = vtanh.pop %v1977
    %v1980 = vtanh.pop %v1978
    %v1981 = vmul.f32 %v1979, %v902
    %v1982 = vmul.f32 %v1980, %v902
    %v1983 = vsel %vm85, %v1981, 0.0
    %1984 = vadd.xlane.f32.xlu0 %v1983
    %v1985 = vpop.xlane.xlu0 %1984
    %v1986 = vsel %vm85, %v1982, 0.0
    %1987 = vadd.xlane.f32.xlu0 %v1986
    %v1988 = vpop.xlane.xlu0 %1987
    %v1989 = vadd.f32 %v1985, %v918
    %v1990 = vadd.f32 %v1988, %v925
    %1993 = vset.pattern.permute.xlu0 0
    %1994 = vperm.xlu0 %1993, %v1989
    %v1995 = vpop.permute.xlu0 %1994
    %1996 = vset.pattern.permute.xlu0 0
    %1997 = vperm.xlu0 %1996, %v1990
    %v1998 = vpop.permute.xlu0 %1997
    %v1999 = vperm.slane %v1995, %v939
    %v2000 = vperm.slane %v1998, %v939
    %v2001 = vsel %vm942, %v2000, %v1999
    %v2003 = vsel %vm945, %v2001, -inf
    %2004 = vmax.xlane.f32.xlu0 %v2003
    %v2005 = vpop.xlane.xlu0 %2004
    %v2007 = vperm.slane %v2005, 0
    %v2008 = vperm.slane %v2005, 1
    %v2011 = vsub.f32 %v1989, %v2007
    %v2012 = vsub.f32 %v1990, %v2008
    %v2013 = vmul.f32 %v2011, 1.442695
    %v2014 = vpow.pop %v2013
    %v2015 = vmul.f32 %v2012, 1.442695
    %v2016 = vpow.pop %v2015
    %2019 = vset.pattern.permute.xlu0 0
    %2020 = vperm.xlu0 %2019, %v2014
    %v2021 = vpop.permute.xlu0 %2020
    %2022 = vset.pattern.permute.xlu0 0
    %2023 = vperm.xlu0 %2022, %v2016
    %v2024 = vpop.permute.xlu0 %2023
    %v2025 = vperm.slane %v2021, %v939
    %v2026 = vperm.slane %v2024, %v939
    %v2027 = vsel %vm942, %v2026, %v2025
    %v2029 = vsel %vm945, %v2027, 0.0
    %2030 = vadd.xlane.f32.xlu0 %v2029
    %v2031 = vpop.xlane.xlu0 %2030
    %v2033 = vperm.slane %v2031, 0
    %v2034 = vperm.slane %v2031, 1
    %v2037 = vrcp.pop %v2033
    %v2038 = vmul.f32 %v2033, %v2037
    %v2039 = vsub.f32 1.0, %v2038
    %v2040 = vmul.f32 %v2037, %v2039
    %v2041 = vadd.f32 %v2037, %v2040
    %vm2042 = vweird.f32 %v2033
    %vm2043 = vweird.f32 %v2037
    %vm2044 = vmor %vm2042, %vm2043
    %v2045 = vsel %vm2044, %v2037, %v2041
    %v2046 = vand.u32 2147483647, %v2033
    %vm2047 = vcmp.eq.f32.partialorder %v2046, 8.507059e+37
    %v2048 = vand.u32 %v2033, 2147483648
    %v2049 = vor.u32 1.1754944e-38, %v2048
    %v2050 = vsel %vm2047, %v2049, %v2045
    %v2051 = vmul.f32 %v2014, %v2050
    %v2052 = vrcp.pop %v2034
    %v2053 = vmul.f32 %v2034, %v2052
    %v2054 = vsub.f32 1.0, %v2053
    %v2055 = vmul.f32 %v2052, %v2054
    %v2056 = vadd.f32 %v2052, %v2055
    %vm2057 = vweird.f32 %v2034
    %vm2058 = vweird.f32 %v2052
    %vm2059 = vmor %vm2057, %vm2058
    %v2060 = vsel %vm2059, %v2052, %v2056
    %v2061 = vand.u32 2147483647, %v2034
    %vm2062 = vcmp.eq.f32.partialorder %v2061, 8.507059e+37
    %v2063 = vand.u32 %v2034, 2147483648
    %v2064 = vor.u32 1.1754944e-38, %v2063
    %v2065 = vsel %vm2062, %v2064, %v2060
    %v2066 = vmul.f32 %v2016, %v2065
    %2068 = vset.pattern.permute.xlu0 0
    %2069 = vperm.xlu0 %2068, %v2051
    %v2070 = vpop.permute.xlu0 %2069
    %2073 = vset.pattern.permute.xlu0 0
    %2074 = vperm.xlu0 %2073, %v2066
    %v2075 = vpop.permute.xlu0 %2074
    %v2077 = vmul.f32 %v2070, %v828
    %v2078 = vmul.f32 %v2075, %v829
    %v2079 = vsel %vm1022, %v2077, 0.0
    %v2080 = vrot.slane %v2079, 4
    %v2081 = vadd.f32 %v2079, %v2080
    %v2082 = vrot.slane %v2081, 2
    %v2083 = vadd.f32 %v2081, %v2082
    %v2084 = vrot.slane %v2083, 1
    %v2085 = vadd.f32 %v2083, %v2084
    %v2086 = vsel %vm1022, %v2078, 0.0
    %v2087 = vrot.slane %v2086, 4
    %v2088 = vadd.f32 %v2086, %v2087
    %v2089 = vrot.slane %v2088, 2
    %v2090 = vadd.f32 %v2088, %v2089
    %v2091 = vrot.slane %v2090, 1
    %v2092 = vadd.f32 %v2090, %v2091
    %v2095 = vsel %vm942, %v2092, %v2085
    %2096 = vrot.lane.b32.xlu0 %v2095, 96
    %v2097 = vpop.permute.xlu0 %2096
    %v2098 = vsel %vm85, %v2097, 0
    %2100 = vmatpush.msra.mxu0 0.0
    %2101 = vmatpush.msra.mxu0 0.0
    %2102 = vmatpush.msra.mxu0 0.0
    %2103 = vmatpush.msra.mxu0 0.0
    %2104 = vmatpush.msra.mxu0 0.0
    %2105 = vmatpush.msra.mxu0 0.0
    %2106 = vmatpush.msra.mxu0 0.0
    %2107 = vmatpush.msra.mxu0 0.0
    %2108 = vmatpush.msra.mxu0 0.0
    %2109 = vmatpush.msra.mxu0 0.0
    %2110 = vmatpush.msra.mxu0 0.0
    %2111 = vmatpush.msra.mxu0 0.0
    %2112 = vmatpush.msra.mxu0 %v43
    %2113 = vmatpush.msra.mxu0 %v42
    %2114 = vmatpush.msra.mxu0 %v41
    %2115 = vmatpush.msra.mxu0 %v40
    %2116 = vmatmul.f32.gmra.mxu0 %v2098
    %v2117 = vpop.f32.mrf.mxu0
    %v2118 = vadd.f32 0.0, %v2117
    %2119 = vdwg.mxu0
    %v2121 = vsel %vm61, %v1946, 0
    %2123 = vmatpush.msra.mxu0 0.0
    %2124 = vmatpush.msra.mxu0 0.0
    %2125 = vmatpush.msra.mxu0 0.0
    %2126 = vmatpush.msra.mxu0 0.0
    %2127 = vmatpush.msra.mxu0 0.0
    %2128 = vmatpush.msra.mxu0 0.0
    %2129 = vmatpush.msra.mxu0 0.0
    %2130 = vmatpush.msra.mxu0 0.0
    %2131 = vmatpush.msra.mxu0 0.0
    %2132 = vmatpush.msra.mxu0 0.0
    %2133 = vmatpush.msra.mxu0 0.0
    %2134 = vmatpush.msra.mxu0 0.0
    %2135 = vmatpush.msra.mxu0 0.0
    %2136 = vmatpush.msra.mxu0 0.0
    %2137 = vmatpush.msra.mxu0 %v39
    %2138 = vmatpush.msra.mxu0 %v38
    %2139 = vmatmul.f32.gmra.mxu0 %v2121
    %v2140 = vpop.f32.mrf.mxu0
    %v2141 = vadd.f32 %v2118, %v2140
    %2142 = vdwg.mxu0
    %v2143 = vadd.f32 %v2141, %v53
    %v2144 = vadd.f32 %v2143, %v1965
    %v2145 = vxor.u32 %v2144, 2147483648
    %v2146 = vmul.f32 %v2145, 1.442695
    %v2147 = vpow.pop %v2146
    %v2148 = vadd.f32 %v2147, 1.0
    %v2149 = vrcp.pop %v2148
    %v2150 = vmul.f32 %v2148, %v2149
    %v2151 = vsub.f32 1.0, %v2150
    %v2152 = vmul.f32 %v2149, %v2151
    %v2153 = vadd.f32 %v2149, %v2152
    %vm2154 = vweird.f32 %v2148
    %vm2155 = vweird.f32 %v2149
    %vm2156 = vmor %vm2154, %vm2155
    %v2157 = vsel %vm2156, %v2149, %v2153
    %v2158 = vand.u32 2147483647, %v2148
    %vm2159 = vcmp.eq.f32.partialorder %v2158, 8.507059e+37
    %v2160 = vand.u32 %v2148, 2147483648
    %v2161 = vor.u32 1.1754944e-38, %v2160
    %v2162 = vsel %vm2159, %v2161, %v2157
    %v2163 = vmul.f32 1.0, %v2162
    %2164 = vrot.lane.b32.xlu0 %v1965, 64
    %v2165 = vpop.permute.xlu0 %2164
    %v2167 = vmul.f32 %v2163, %v2165
    %2169 = vrot.lane.b32.xlu0 %v2167, 64
    %v2170 = vpop.permute.xlu0 %2169
    %v2172 = vadd.f32 %v2143, %v2170
    %v2173 = vtanh.pop %v2172
    %v2174 = vsub.f32 1.0, %v2163
    %2176 = vrot.lane.b32.xlu0 %v2173, 96
    %v2177 = vpop.permute.xlu0 %2176
    %v2179 = vmul.f32 %v2174, %v2177
    %v2180 = vmul.f32 %v2163, %v1917
    %v2181 = vadd.f32 %v2179, %v2180
    %2183 = vrot.lane.b32.xlu0 %v2181, 96
    %v2184 = vpop.permute.xlu0 %2183
    %v2185 = vsel %vm85, %v2184, 0
    %2187 = vmatpush.msra.mxu0 0.0
    %2188 = vmatpush.msra.mxu0 0.0
    %2189 = vmatpush.msra.mxu0 0.0
    %2190 = vmatpush.msra.mxu0 0.0
    %2191 = vmatpush.msra.mxu0 0.0
    %2192 = vmatpush.msra.mxu0 0.0
    %2193 = vmatpush.msra.mxu0 0.0
    %2194 = vmatpush.msra.mxu0 0.0
    %2195 = vmatpush.msra.mxu0 0.0
    %2196 = vmatpush.msra.mxu0 0.0
    %2197 = vmatpush.msra.mxu0 0.0
    %2198 = vmatpush.msra.mxu0 0.0
    %2199 = vmatpush.msra.mxu0 %v47
    %2200 = vmatpush.msra.mxu0 %v46
    %2201 = vmatpush.msra.mxu0 %v45
    %2202 = vmatpush.msra.mxu0 %v44
    %2203 = vmatmul.f32.gmra.mxu0 %v2185
    %v2204 = vpop.f32.mrf.mxu0
    %v2205 = vadd.f32 0.0, %v2204
    %2206 = vdwg.mxu0
    %v2207 = vadd.f32 %v2143, %v2205
    %v2208 = vadd.f32 %v2207, %v58
    %2214 = vrot.lane.b32.xlu0 %v1152, 32
    %v2215 = vpop.permute.xlu0 %2214
    %2216 = vrot.lane.b32.xlu0 %v1416, 32
    %v2217 = vpop.permute.xlu0 %2216
    %2218 = vrot.lane.b32.xlu0 %v1680, 32
    %v2219 = vpop.permute.xlu0 %2218
    %2220 = vrot.lane.b32.xlu0 %v1944, 32
    %v2221 = vpop.permute.xlu0 %2220
    %2222 = vrot.lane.b32.xlu0 %v2208, 32
    %v2223 = vpop.permute.xlu0 %2222
    %vm2229 = vcmask 254976
    %2230 = vst.msk [vmem:[#allocation2] sm:$0x3] %vm2229, 0.0
    %2231 = vst.msk [vmem:[#allocation2 + $0x2] sm:$0x3] %vm2229, %v2215
    %2232 = vst.msk [vmem:[#allocation2 + $0x4] sm:$0x3] %vm2229, %v2217
    %2233 = vst.msk [vmem:[#allocation2 + $0x6] sm:$0x3] %vm2229, %v2219
    %2234 = vst.msk [vmem:[#allocation2 + $0x8] sm:$0x3] %vm2229, %v2221
    %2235 = vst.msk [vmem:[#allocation2 + $0xa] sm:$0x3] %vm2229, %v2223
    %v2236 = vperm.slane %v1013, %v939
    %v2237 = vperm.slane %v1018, %v939
    %v2238 = vperm.slane %v1278, %v939
    %v2239 = vperm.slane %v1283, %v939
    %v2240 = vperm.slane %v1542, %v939
    %v2241 = vperm.slane %v1547, %v939
    %v2242 = vperm.slane %v1806, %v939
    %v2243 = vperm.slane %v1811, %v939
    %v2244 = vperm.slane %v2070, %v939
    %v2245 = vperm.slane %v2075, %v939
    %v2246 = vsel %vm942, %v2237, %v2236
    %v2247 = vsel %vm942, %v2239, %v2238
    %v2248 = vsel %vm942, %v2241, %v2240
    %v2249 = vsel %vm942, %v2243, %v2242
    %v2250 = vsel %vm942, %v2245, %v2244
    %2256 = vst.msk [vmem:[#allocation4] sm:$0x3] %vm945, %v2246
    %2257 = vst.msk [vmem:[#allocation4 + $0x2] sm:$0x3] %vm945, %v2247
    %2258 = vst.msk [vmem:[#allocation4 + $0x4] sm:$0x3] %vm945, %v2248
    %2259 = vst.msk [vmem:[#allocation4 + $0x6] sm:$0x3] %vm945, %v2249
    %2260 = vst.msk [vmem:[#allocation4 + $0x8] sm:$0x3] %vm945, %v2250
    // Predicated region
    $region22: #{_lambda_.1} parent=1 // pred_check
      _
    $region23: #{_lambda_.1} parent=1 // pred_check_branch
      %2262 = sbr.rel (0) target = $region25
    $region24: #{_lambda_.1} parent=1 // pred_region
      %2264 = vsyncadd [#allocation3], 0
      %s2265 = sshll.u32 [#allocation2], 4
      %s2266 = int_to_ptr.vmem [resolvable:$true] %s2265
      %s2267 = sshll.u32 %s5, 4
      %s2268 = int_to_ptr.hbm [resolvable:$true] %s2267
      %2273 = dma.vmem_to_hbm [thread:$0]  %s2266, 192, %s2268, [#allocation3], 32, 32, 2
    $region25: #{_lambda_.1} parent=1 // pred_fallthru
      _
    // Predicated region
    $region26: #{_lambda_.1} parent=1 // pred_check
      _
    $region27: #{_lambda_.1} parent=1 // pred_check_branch
      %2275 = sbr.rel (0) target = $region29
    $region28: #{_lambda_.1} parent=1 // pred_region
      %2277 = vsyncadd [#allocation5], 0
      %s2278 = sshll.u32 [#allocation4], 4
      %s2279 = int_to_ptr.vmem [resolvable:$true] %s2278
      %s2280 = sshll.u32 %s6, 4
      %s2281 = int_to_ptr.hbm [resolvable:$true] %s2280
      %2286 = dma.vmem_to_hbm [thread:$0]  %s2279, 160, %s2281, [#allocation5], 32, 32, 2
    $region29: #{_lambda_.1} parent=1 // pred_fallthru
      _
    // Predicated region
    $region30: #{_lambda_.1} parent=1 // pred_check
      _
    $region31: #{_lambda_.1} parent=1 // pred_check_branch
      %2288 = sbr.rel (0) target = $region33
    $region32: #{_lambda_.1} parent=1 // pred_region
      %2290 = dma.done [#allocation3], 192
    $region33: #{_lambda_.1} parent=1 // pred_fallthru
      _
    // Predicated region
    $region34: #{_lambda_.1} parent=1 // pred_check
      _
    $region35: #{_lambda_.1} parent=1 // pred_check_branch
      %2292 = sbr.rel (0) target = $region37
    $region36: #{_lambda_.1} parent=1 // pred_region
      %2294 = dma.done [#allocation5], 160
    $region37: #{_lambda_.1} parent=1 // pred_fallthru
      _
    %2295 = vsyncpa [#allocation3], 1
    %2296 = vsyncpa [#allocation5], 1

</llo_original>
